<compile_context>
chip_gen: v7x
topology: tpu7x:2x2x1
jax: 0.10.0
libtpu: 0.0.40
codegen_flags: <defaults>
</compile_context>

<pallas_src>
import functools

import jax
import jax.numpy as jnp
import numpy as np
from jax.experimental import pallas as pl
from jax.experimental.pallas import tpu as pltpu

EPS = 1e-5


def _make_conv_kernel(C, H, W, L, pad_left, apply_input_affine, mxu_dtype):
    """3x3 conv (stride 1, pad 1) on one (C, H*W) image + BN partial sums.

    If `apply_input_affine` the input is first transformed with a per-channel
    affine (folded BatchNorm) followed by ReLU (i.e. this kernel computes
    conv2(relu(bn1(.)))); otherwise the raw input is convolved (conv1).
    """
    S = H * W
    data_start = pad_left + W          # 128-aligned interior start (lane axis)

    def kernel(*refs):
        if apply_input_affine:
            scale_ref, shift_ref, a_ref, w_ref, y_ref, s_ref, ss_ref, pad_ref = refs
        else:
            a_ref, w_ref, y_ref, s_ref, ss_ref, pad_ref = refs

        step = pl.program_id(0)

        # Zero ONLY the halo, once.  [0, data_start) = left margin + top zero
        # row; [data_start+S, L) = bottom zero row + right margin.  They are
        # never overwritten, so they stay zero for all later grid steps (the
        # batch axis is "arbitrary" -> sequential on one core).
        @pl.when(step == 0)
        def _():
            pad_ref[:, 0:data_start] = jnp.zeros((C, data_start), mxu_dtype)
            pad_ref[:, data_start + S:L] = jnp.zeros(
                (C, L - data_start - S), mxu_dtype)

        a = a_ref[...]                                    # (C, S) f32
        if apply_input_affine:
            # bn1 as a per-channel affine (batch stats folded in) + ReLU.
            a = jnp.maximum(a * scale_ref[...] + shift_ref[...], 0.0)
        # Lane-dense, 128-aligned interior store into the padded scratch.
        pad_ref[:, data_start:data_start + S] = a.astype(mxu_dtype)

        # Lane masks for the two tap shifts that would wrap across image rows
        # (left/right image border in the flattened layout).
        col = jax.lax.broadcasted_iota(jnp.int32, (C, S), 1) % W
        left_ok = col != 0
        right_ok = col != (W - 1)

        acc = jnp.zeros((C, S), jnp.float32)
        for t in range(9):                                 # static, unrolled
            dh, dw = divmod(t, 3)
            off = pad_left + dh * W + dw - 1               # static lane offset
            tap = pad_ref[:, off:off + S]                  # (Cin, S) shifted view
            if dw == 0:
                tap = jnp.where(left_ok, tap, jnp.zeros_like(tap))
            elif dw == 2:
                tap = jnp.where(right_ok, tap, jnp.zeros_like(tap))
            acc = acc + jnp.dot(w_ref[t], tap,
                                preferred_element_type=jnp.float32)

        y_ref[...] = acc                                   # lane-dense store

        # Per-channel partial sums for training-mode BN, accumulated across
        # the batch grid into resident (C, 1) outputs (constant index map).
        ps = jnp.sum(acc, axis=1, keepdims=True)
        pss = jnp.sum(acc * acc, axis=1, keepdims=True)

        @pl.when(step == 0)
        def _():
            s_ref[...] = ps
            ss_ref[...] = pss

        @pl.when(step > 0)
        def _():
            s_ref[...] = s_ref[...] + ps
            ss_ref[...] = ss_ref[...] + pss

    return kernel


def _conv3x3_batchstats(a, w_taps, H, W, mxu_dtype, scale=None, shift=None):
    """Batched 3x3 conv over (N, C, H*W) + per-channel batch sum / sum-sq."""
    N, C, S = a.shape
    assert S == H * W
    pad_left = (-W) % 128 or 128                 # keep interior 128-aligned
    L = -(-(pad_left + 2 * W + S + 1) // 128) * 128
    affine = scale is not None
    kernel = _make_conv_kernel(C, H, W, L, pad_left, affine, mxu_dtype)

    img = pl.BlockSpec((None, C, S), lambda i: (i, 0, 0))       # per-image block
    cvec = pl.BlockSpec((C, 1), lambda i: (0, 0))               # VMEM-resident
    wspec = pl.BlockSpec((9, C, C), lambda i: (0, 0, 0))        # VMEM-resident

    in_specs = ([cvec, cvec] if affine else []) + [img, wspec]
    operands = ([scale, shift] if affine else []) + [a, w_taps]

    cost = pl.CostEstimate(
        flops=2 * 9 * C * C * S * N,
        transcendentals=0,
        bytes_accessed=2 * N * C * S * 4 + 9 * C * C * jnp.dtype(mxu_dtype).itemsize)

    return pl.pallas_call(
        kernel,
        grid=(N,),
        in_specs=in_specs,
        out_specs=[img, cvec, cvec],
        out_shape=[
            jax.ShapeDtypeStruct((N, C, S), jnp.float32),   # raw conv output
            jax.ShapeDtypeStruct((C, 1), jnp.float32),      # sum(y)
            jax.ShapeDtypeStruct((C, 1), jnp.float32),      # sum(y*y)
        ],
        scratch_shapes=[pltpu.VMEM((C, L), mxu_dtype)],
        compiler_params=pltpu.CompilerParams(
            # Batch axis must be sequential: the BN-stats outputs are
            # revisited accumulators and the pad halo is zeroed only once.
            dimension_semantics=("arbitrary",),
            vmem_limit_bytes=32 * 1024 * 1024,
        ),
        cost_estimate=cost,
    )(*operands)


def _bn_residual_relu_kernel(scale_ref, shift_ref, y_ref, x_ref, o_ref):
    # relu(bn2(y) + identity), all lane-dense (C, H*W).
    o_ref[...] = jnp.maximum(
        y_ref[...] * scale_ref[...] + shift_ref[...] + x_ref[...], 0.0)


def _bn_residual_relu(y, scale, shift, x):
    N, C, S = y.shape
    img = pl.BlockSpec((None, C, S), lambda i: (i, 0, 0))
    cvec = pl.BlockSpec((C, 1), lambda i: (0, 0))
    return pl.pallas_call(
        _bn_residual_relu_kernel,
        grid=(N,),
        in_specs=[cvec, cvec, img, img],
        out_specs=img,
        out_shape=jax.ShapeDtypeStruct((N, C, S), jnp.float32),
        compiler_params=pltpu.CompilerParams(
            dimension_semantics=("parallel",)),   # images are independent here
    )(scale, shift, y, x)


def _bn_fold(psum, psumsq, count, gamma, beta):
    """Fold batch statistics + gamma/beta into a per-channel affine (scale, shift)."""
    mean = psum / count                                     # (C, 1)
    # One-pass biased variance; clamp guards the (tiny) negative round-off case.
    var = jnp.maximum(psumsq / count - mean * mean, 0.0)
    scale = gamma.reshape(-1, 1) * jax.lax.rsqrt(var + EPS)
    shift = beta.reshape(-1, 1) - mean * scale
    return scale, shift


@functools.partial(jax.jit, static_argnames=("mxu_dtype",))
def basic_block_pallas(x_nchw, w1_oihw, g1, b1, w2_oihw, g2, b2,
                       mxu_dtype=jnp.float32):
    """BasicBlock forward.  x: (N, C, H, W) f32, conv weights OIHW, no bias."""
    # TODO(synk): stride != 1 and the optional `downsample` branch of
    # BasicBlock are not implemented (the module defaults used here are
    # stride=1, downsample=None); for H*W too large for one grid step the
    # next step is an H-strip grid with halo-aware index_maps.
    N, C, H, W = x_nchw.shape
    S = H * W

    x = x_nchw.reshape(N, C, S)                 # free view of NCHW (row-major)
    # Fold OIHW -> (tap, Cout, Cin) with tap t = dh*3 + dw.
    w1t = jnp.transpose(w1_oihw, (2, 3, 0, 1)).reshape(9, C, C).astype(mxu_dtype)
    w2t = jnp.transpose(w2_oihw, (2, 3, 0, 1)).reshape(9, C, C).astype(mxu_dtype)

    # Pass 1: conv1 + per-channel batch sums.
    y1, s1, ss1 = _conv3x3_batchstats(x, w1t, H, W, mxu_dtype)
    scale1, shift1 = _bn_fold(s1, ss1, N * S, g1, b1)
    # Pass 2: bn1 + relu + conv2 + per-channel batch sums.
    y2, s2, ss2 = _conv3x3_batchstats(y1, w2t, H, W, mxu_dtype, scale1, shift1)
    scale2, shift2 = _bn_fold(s2, ss2, N * S, g2, b2)
    # Pass 3: bn2 + residual add + relu.
    out = _bn_residual_relu(y2, scale2, shift2, x)
    return out.reshape(N, C, H, W)


def basic_block_reference(x, w1, g1, b1, w2, g2, b2):
    """Pure-JAX reference (PyTorch semantics, NCHW / OIHW) for verification."""
    def conv(v, w):
        return jax.lax.conv_general_dilated(
            v, w, window_strides=(1, 1), padding=((1, 1), (1, 1)),
            dimension_numbers=("NCHW", "OIHW", "NCHW"))

    def bn(y, g, b):
        mean = y.mean(axis=(0, 2, 3), keepdims=True)
        var = ((y - mean) ** 2).mean(axis=(0, 2, 3), keepdims=True)
        return ((y - mean) * jax.lax.rsqrt(var + EPS)
                * g.reshape(1, -1, 1, 1) + b.reshape(1, -1, 1, 1))

    out = jax.nn.relu(bn(conv(x, w1), g1, b1))
    return jax.nn.relu(bn(conv(out, w2), g2, b2) + x)


if __name__ == "__main__":
    # Small, PyTorch-consistent shapes: batch=2, channels=8, spatial 16x16
    # (in_channels == out_channels so the identity residual applies).
    N, C, H, W = 2, 8, 16, 16

    key = jax.random.PRNGKey(0)
    kx, kw1, kw2, kg1, kb1, kg2, kb2 = jax.random.split(key, 7)

    x = jax.random.normal(kx, (N, C, H, W), dtype=jnp.float32)          # NCHW
    w1 = 0.1 * jax.random.normal(kw1, (C, C, 3, 3), dtype=jnp.float32)  # OIHW
    w2 = 0.1 * jax.random.normal(kw2, (C, C, 3, 3), dtype=jnp.float32)
    g1 = 1.0 + 0.1 * jax.random.normal(kg1, (C,), dtype=jnp.float32)
    b1 = 0.1 * jax.random.normal(kb1, (C,), dtype=jnp.float32)
    g2 = 1.0 + 0.1 * jax.random.normal(kg2, (C,), dtype=jnp.float32)
    b2 = 0.1 * jax.random.normal(kb2, (C,), dtype=jnp.float32)

    ref = basic_block_reference(x, w1, g1, b1, w2, g2, b2)

    # Strict f32 MXU path.
    out_f32 = jax.block_until_ready(
        basic_block_pallas(x, w1, g1, b1, w2, g2, b2, mxu_dtype=jnp.float32))
    np.testing.assert_allclose(np.asarray(out_f32), np.asarray(ref),
                               rtol=1e-4, atol=1e-4)

    # bf16 MXU-operand path (f32 accumulation / BN math), relaxed tolerance.
    out_bf16 = jax.block_until_ready(
        basic_block_pallas(x, w1, g1, b1, w2, g2, b2, mxu_dtype=jnp.bfloat16))
    np.testing.assert_allclose(np.asarray(out_bf16), np.asarray(ref),
                               rtol=2e-2, atol=2e-2)

    print("KERNEL_OK")
</pallas_src>

<mosaic_0001>
module attributes {stable_mosaic.version = 11 : i64} {
  func.func @kernel(%arg0: i32, %arg1: memref<8x1xf32, #tpu.memory_space<vmem>>, %arg2: memref<8x1xf32, #tpu.memory_space<vmem>>, %arg3: memref<1x8x256xf32, #tpu.memory_space<vmem>>, %arg4: memref<9x8x8xf32, #tpu.memory_space<vmem>>, %arg5: memref<1x8x256xf32, #tpu.memory_space<vmem>>, %arg6: memref<8x1xf32, #tpu.memory_space<vmem>>, %arg7: memref<8x1xf32, #tpu.memory_space<vmem>>, %arg8: memref<8x512xf32, #tpu.memory_space<vmem>>) attributes {dimension_semantics = [#tpu.dimension_semantics<arbitrary>], iteration_bounds = array<i64: 2>, scalar_prefetch = 0 : i64, scratch_operands = 1 : i64, tpu.core_type = #tpu.core_type<tc>, window_params = [{pipeline_mode = #tpu.pipeline_mode<synchronous>, transform_indices = @transform_0, window_bounds = array<i64: 8, 1>}, {pipeline_mode = #tpu.pipeline_mode<synchronous>, transform_indices = @transform_1, window_bounds = array<i64: 8, 1>}, {transform_indices = @transform_2, window_bounds = array<i64: 1, 8, 256>}, {pipeline_mode = #tpu.pipeline_mode<synchronous>, transform_indices = @transform_3, window_bounds = array<i64: 9, 8, 8>}, {transform_indices = @transform_4, window_bounds = array<i64: 1, 8, 256>}, {pipeline_mode = #tpu.pipeline_mode<synchronous>, transform_indices = @transform_5, window_bounds = array<i64: 8, 1>}, {pipeline_mode = #tpu.pipeline_mode<synchronous>, transform_indices = @transform_6, window_bounds = array<i64: 8, 1>}]} {
    %c0_i32 = arith.constant 0 : i32
    %0 = arith.cmpi eq, %arg0, %c0_i32 : i32
    %1 = arith.extui %0 : i1 to i32
    %c0_i32_0 = arith.constant 0 : i32
    %2 = arith.cmpi ne, %1, %c0_i32_0 : i32
    scf.if %2 {
      %cst_67 = arith.constant 0.000000e+00 : f32
      %107 = vector.broadcast %cst_67 : f32 to vector<8x128xf32>
      %c0_68 = arith.constant 0 : index
      %c0_69 = arith.constant 0 : index
      %108 = vector.load %arg8[%c0_68, %c0_69] : memref<8x512xf32, #tpu.memory_space<vmem>>, vector<8x128xf32>
      tpu.vector_store %arg8[%c0_68, %c0_69], %107 {strides = array<i32>} : memref<8x512xf32, #tpu.memory_space<vmem>>, vector<8x128xf32>,
      %cst_70 = arith.constant 0.000000e+00 : f32
      %109 = vector.broadcast %cst_70 : f32 to vector<8x128xf32>
      %c0_71 = arith.constant 0 : index
      %c384 = arith.constant 384 : index
      %110 = vector.load %arg8[%c0_71, %c384] : memref<8x512xf32, #tpu.memory_space<vmem>>, vector<8x128xf32>
      tpu.vector_store %arg8[%c0_71, %c384], %109 {strides = array<i32>} : memref<8x512xf32, #tpu.memory_space<vmem>>, vector<8x128xf32>,
    } else {
    }
    %c0 = arith.constant 0 : index
    %c0_1 = arith.constant 0 : index
    %c0_2 = arith.constant 0 : index
    %3 = vector.load %arg3[%c0, %c0_1, %c0_2] : memref<1x8x256xf32, #tpu.memory_space<vmem>>, vector<1x8x256xf32>
    %4 = vector.shape_cast %3 : vector<1x8x256xf32> to vector<8x256xf32>
    %c0_3 = arith.constant 0 : index
    %c0_4 = arith.constant 0 : index
    %5 = vector.load %arg1[%c0_3, %c0_4] : memref<8x1xf32, #tpu.memory_space<vmem>>, vector<8x1xf32>
    %6 = vector.broadcast %5 : vector<8x1xf32> to vector<8x256xf32>
    %7 = arith.mulf %4, %6 : vector<8x256xf32>
    %c0_5 = arith.constant 0 : index
    %c0_6 = arith.constant 0 : index
    %8 = vector.load %arg2[%c0_5, %c0_6] : memref<8x1xf32, #tpu.memory_space<vmem>>, vector<8x1xf32>
    %9 = vector.broadcast %8 : vector<8x1xf32> to vector<8x256xf32>
    %10 = arith.addf %7, %9 : vector<8x256xf32>
    %cst = arith.constant 0.000000e+00 : f32
    %11 = vector.broadcast %cst : f32 to vector<8x256xf32>
    %12 = arith.maximumf %10, %11 : vector<8x256xf32>
    %c0_7 = arith.constant 0 : index
    %c128 = arith.constant 128 : index
    %13 = vector.load %arg8[%c0_7, %c128] : memref<8x512xf32, #tpu.memory_space<vmem>>, vector<8x256xf32>
    tpu.vector_store %arg8[%c0_7, %c128], %12 {strides = array<i32>} : memref<8x512xf32, #tpu.memory_space<vmem>>, vector<8x256xf32>,
    %14 = tpu.iota {dimensions = array<i32: 1>} : vector<8x256xi32>
    %c16_i32 = arith.constant 16 : i32
    %c0_i32_8 = arith.constant 0 : i32
    %15 = arith.cmpi eq, %c16_i32, %c0_i32_8 : i32
    %c1_i32 = arith.constant 1 : i32
    %16 = arith.select %15, %c1_i32, %c16_i32 : i32
    %17 = vector.broadcast %16 : i32 to vector<8x256xi32>
    %18 = arith.remsi %14, %17 : vector<8x256xi32>
    %c0_i32_9 = arith.constant 0 : i32
    %19 = vector.broadcast %c0_i32_9 : i32 to vector<8x256xi32>
    %20 = arith.cmpi ne, %18, %19 : vector<8x256xi32>
    %c0_i32_10 = arith.constant 0 : i32
    %21 = vector.broadcast %c0_i32_10 : i32 to vector<8x256xi32>
    %22 = arith.cmpi slt, %18, %21 : vector<8x256xi32>
    %c0_i32_11 = arith.constant 0 : i32
    %23 = arith.cmpi slt, %16, %c0_i32_11 : i32
    %24 = vector.broadcast %23 : i1 to vector<8x256xi1>
    %25 = vector.broadcast %24 : vector<8x256xi1> to vector<8x256xi1>
    %26 = arith.xori %22, %25 : vector<8x256xi1>
    %27 = arith.andi %26, %20 : vector<8x256xi1>
    %28 = vector.broadcast %16 : i32 to vector<8x256xi32>
    %29 = arith.addi %18, %28 : vector<8x256xi32>
    %30 = arith.select %27, %29, %18 : vector<8x256xi1>, vector<8x256xi32>
    %c0_i32_12 = arith.constant 0 : i32
    %31 = vector.broadcast %c0_i32_12 : i32 to vector<8x256xi32>
    %32 = arith.cmpi ne, %30, %31 : vector<8x256xi32>
    %c15_i32 = arith.constant 15 : i32
    %33 = vector.broadcast %c15_i32 : i32 to vector<8x256xi32>
    %34 = arith.cmpi ne, %30, %33 : vector<8x256xi32>
    %cst_13 = arith.constant 0.000000e+00 : f32
    %35 = vector.broadcast %cst_13 : f32 to vector<8x256xf32>
    %c0_14 = arith.constant 0 : index
    %c111 = arith.constant 111 : index
    %36 = vector.load %arg8[%c0_14, %c111] : memref<8x512xf32, #tpu.memory_space<vmem>>, vector<8x256xf32>
    %cst_15 = arith.constant 0.000000e+00 : f32
    %37 = vector.broadcast %cst_15 : f32 to vector<8x256xf32>
    %38 = arith.select %32, %36, %37 : vector<8x256xi1>, vector<8x256xf32>
    %c0_16 = arith.constant 0 : index
    %c0_17 = arith.constant 0 : index
    %c0_18 = arith.constant 0 : index
    %39 = vector.load %arg4[%c0_16, %c0_17, %c0_18] : memref<9x8x8xf32, #tpu.memory_space<vmem>>, vector<1x8x8xf32>
    %40 = vector.shape_cast %39 : vector<1x8x8xf32> to vector<8x8xf32>
    %cst_19 = arith.constant dense<0.000000e+00> : vector<8x256xf32>
    %41 = tpu.matmul %40, %38, %cst_19 {dimension_numbers = #tpu.dot_dimension_numbers<[1], [0], [0], [1], [0, 0, 1, 1], [], []>} : vector<8x8xf32>, vector<8x256xf32>, vector<8x256xf32> -> vector<8x256xf32>
    %42 = arith.addf %35, %41 : vector<8x256xf32>
    %c0_20 = arith.constant 0 : index
    %c112 = arith.constant 112 : index
    %43 = vector.load %arg8[%c0_20, %c112] : memref<8x512xf32, #tpu.memory_space<vmem>>, vector<8x256xf32>
    %c1 = arith.constant 1 : index
    %c0_21 = arith.constant 0 : index
    %c0_22 = arith.constant 0 : index
    %44 = vector.load %arg4[%c1, %c0_21, %c0_22] : memref<9x8x8xf32, #tpu.memory_space<vmem>>, vector<1x8x8xf32>
    %45 = vector.shape_cast %44 : vector<1x8x8xf32> to vector<8x8xf32>
    %cst_23 = arith.constant dense<0.000000e+00> : vector<8x256xf32>
    %46 = tpu.matmul %45, %43, %cst_23 {dimension_numbers = #tpu.dot_dimension_numbers<[1], [0], [0], [1], [0, 0, 1, 1], [], []>} : vector<8x8xf32>, vector<8x256xf32>, vector<8x256xf32> -> vector<8x256xf32>
    %47 = arith.addf %42, %46 : vector<8x256xf32>
    %c0_24 = arith.constant 0 : index
    %c113 = arith.constant 113 : index
    %48 = vector.load %arg8[%c0_24, %c113] : memref<8x512xf32, #tpu.memory_space<vmem>>, vector<8x256xf32>
    %cst_25 = arith.constant 0.000000e+00 : f32
    %49 = vector.broadcast %cst_25 : f32 to vector<8x256xf32>
    %50 = arith.select %34, %48, %49 : vector<8x256xi1>, vector<8x256xf32>
    %c2 = arith.constant 2 : index
    %c0_26 = arith.constant 0 : index
    %c0_27 = arith.constant 0 : index
    %51 = vector.load %arg4[%c2, %c0_26, %c0_27] : memref<9x8x8xf32, #tpu.memory_space<vmem>>, vector<1x8x8xf32>
    %52 = vector.shape_cast %51 : vector<1x8x8xf32> to vector<8x8xf32>
    %cst_28 = arith.constant dense<0.000000e+00> : vector<8x256xf32>
    %53 = tpu.matmul %52, %50, %cst_28 {dimension_numbers = #tpu.dot_dimension_numbers<[1], [0], [0], [1], [0, 0, 1, 1], [], []>} : vector<8x8xf32>, vector<8x256xf32>, vector<8x256xf32> -> vector<8x256xf32>
    %54 = arith.addf %47, %53 : vector<8x256xf32>
    %c0_29 = arith.constant 0 : index
    %c127 = arith.constant 127 : index
    %55 = vector.load %arg8[%c0_29, %c127] : memref<8x512xf32, #tpu.memory_space<vmem>>, vector<8x256xf32>
    %cst_30 = arith.constant 0.000000e+00 : f32
    %56 = vector.broadcast %cst_30 : f32 to vector<8x256xf32>
    %57 = arith.select %32, %55, %56 : vector<8x256xi1>, vector<8x256xf32>
    %c3 = arith.constant 3 : index
    %c0_31 = arith.constant 0 : index
    %c0_32 = arith.constant 0 : index
    %58 = vector.load %arg4[%c3, %c0_31, %c0_32] : memref<9x8x8xf32, #tpu.memory_space<vmem>>, vector<1x8x8xf32>
    %59 = vector.shape_cast %58 : vector<1x8x8xf32> to vector<8x8xf32>
    %cst_33 = arith.constant dense<0.000000e+00> : vector<8x256xf32>
    %60 = tpu.matmul %59, %57, %cst_33 {dimension_numbers = #tpu.dot_dimension_numbers<[1], [0], [0], [1], [0, 0, 1, 1], [], []>} : vector<8x8xf32>, vector<8x256xf32>, vector<8x256xf32> -> vector<8x256xf32>
    %61 = arith.addf %54, %60 : vector<8x256xf32>
    %c0_34 = arith.constant 0 : index
    %c128_35 = arith.constant 128 : index
    %62 = vector.load %arg8[%c0_34, %c128_35] : memref<8x512xf32, #tpu.memory_space<vmem>>, vector<8x256xf32>
    %c4 = arith.constant 4 : index
    %c0_36 = arith.constant 0 : index
    %c0_37 = arith.constant 0 : index
    %63 = vector.load %arg4[%c4, %c0_36, %c0_37] : memref<9x8x8xf32, #tpu.memory_space<vmem>>, vector<1x8x8xf32>
    %64 = vector.shape_cast %63 : vector<1x8x8xf32> to vector<8x8xf32>
    %cst_38 = arith.constant dense<0.000000e+00> : vector<8x256xf32>
    %65 = tpu.matmul %64, %62, %cst_38 {dimension_numbers = #tpu.dot_dimension_numbers<[1], [0], [0], [1], [0, 0, 1, 1], [], []>} : vector<8x8xf32>, vector<8x256xf32>, vector<8x256xf32> -> vector<8x256xf32>
    %66 = arith.addf %61, %65 : vector<8x256xf32>
    %c0_39 = arith.constant 0 : index
    %c129 = arith.constant 129 : index
    %67 = vector.load %arg8[%c0_39, %c129] : memref<8x512xf32, #tpu.memory_space<vmem>>, vector<8x256xf32>
    %cst_40 = arith.constant 0.000000e+00 : f32
    %68 = vector.broadcast %cst_40 : f32 to vector<8x256xf32>
    %69 = arith.select %34, %67, %68 : vector<8x256xi1>, vector<8x256xf32>
    %c5 = arith.constant 5 : index
    %c0_41 = arith.constant 0 : index
    %c0_42 = arith.constant 0 : index
    %70 = vector.load %arg4[%c5, %c0_41, %c0_42] : memref<9x8x8xf32, #tpu.memory_space<vmem>>, vector<1x8x8xf32>
    %71 = vector.shape_cast %70 : vector<1x8x8xf32> to vector<8x8xf32>
    %cst_43 = arith.constant dense<0.000000e+00> : vector<8x256xf32>
    %72 = tpu.matmul %71, %69, %cst_43 {dimension_numbers = #tpu.dot_dimension_numbers<[1], [0], [0], [1], [0, 0, 1, 1], [], []>} : vector<8x8xf32>, vector<8x256xf32>, vector<8x256xf32> -> vector<8x256xf32>
    %73 = arith.addf %66, %72 : vector<8x256xf32>
    %c0_44 = arith.constant 0 : index
    %c143 = arith.constant 143 : index
    %74 = vector.load %arg8[%c0_44, %c143] : memref<8x512xf32, #tpu.memory_space<vmem>>, vector<8x256xf32>
    %cst_45 = arith.constant 0.000000e+00 : f32
    %75 = vector.broadcast %cst_45 : f32 to vector<8x256xf32>
    %76 = arith.select %32, %74, %75 : vector<8x256xi1>, vector<8x256xf32>
    %c6 = arith.constant 6 : index
    %c0_46 = arith.constant 0 : index
    %c0_47 = arith.constant 0 : index
    %77 = vector.load %arg4[%c6, %c0_46, %c0_47] : memref<9x8x8xf32, #tpu.memory_space<vmem>>, vector<1x8x8xf32>
    %78 = vector.shape_cast %77 : vector<1x8x8xf32> to vector<8x8xf32>
    %cst_48 = arith.constant dense<0.000000e+00> : vector<8x256xf32>
    %79 = tpu.matmul %78, %76, %cst_48 {dimension_numbers = #tpu.dot_dimension_numbers<[1], [0], [0], [1], [0, 0, 1, 1], [], []>} : vector<8x8xf32>, vector<8x256xf32>, vector<8x256xf32> -> vector<8x256xf32>
    %80 = arith.addf %73, %79 : vector<8x256xf32>
    %c0_49 = arith.constant 0 : index
    %c144 = arith.constant 144 : index
    %81 = vector.load %arg8[%c0_49, %c144] : memref<8x512xf32, #tpu.memory_space<vmem>>, vector<8x256xf32>
    %c7 = arith.constant 7 : index
    %c0_50 = arith.constant 0 : index
    %c0_51 = arith.constant 0 : index
    %82 = vector.load %arg4[%c7, %c0_50, %c0_51] : memref<9x8x8xf32, #tpu.memory_space<vmem>>, vector<1x8x8xf32>
    %83 = vector.shape_cast %82 : vector<1x8x8xf32> to vector<8x8xf32>
    %cst_52 = arith.constant dense<0.000000e+00> : vector<8x256xf32>
    %84 = tpu.matmul %83, %81, %cst_52 {dimension_numbers = #tpu.dot_dimension_numbers<[1], [0], [0], [1], [0, 0, 1, 1], [], []>} : vector<8x8xf32>, vector<8x256xf32>, vector<8x256xf32> -> vector<8x256xf32>
    %85 = arith.addf %80, %84 : vector<8x256xf32>
    %c0_53 = arith.constant 0 : index
    %c145 = arith.constant 145 : index
    %86 = vector.load %arg8[%c0_53, %c145] : memref<8x512xf32, #tpu.memory_space<vmem>>, vector<8x256xf32>
    %cst_54 = arith.constant 0.000000e+00 : f32
    %87 = vector.broadcast %cst_54 : f32 to vector<8x256xf32>
    %88 = arith.select %34, %86, %87 : vector<8x256xi1>, vector<8x256xf32>
    %c8 = arith.constant 8 : index
    %c0_55 = arith.constant 0 : index
    %c0_56 = arith.constant 0 : index
    %89 = vector.load %arg4[%c8, %c0_55, %c0_56] : memref<9x8x8xf32, #tpu.memory_space<vmem>>, vector<1x8x8xf32>
    %90 = vector.shape_cast %89 : vector<1x8x8xf32> to vector<8x8xf32>
    %cst_57 = arith.constant dense<0.000000e+00> : vector<8x256xf32>
    %91 = tpu.matmul %90, %88, %cst_57 {dimension_numbers = #tpu.dot_dimension_numbers<[1], [0], [0], [1], [0, 0, 1, 1], [], []>} : vector<8x8xf32>, vector<8x256xf32>, vector<8x256xf32> -> vector<8x256xf32>
    %92 = arith.addf %85, %91 : vector<8x256xf32>
    %c0_58 = arith.constant 0 : index
    %c0_59 = arith.constant 0 : index
    %c0_60 = arith.constant 0 : index
    %93 = vector.load %arg5[%c0_58, %c0_59, %c0_60] : memref<1x8x256xf32, #tpu.memory_space<vmem>>, vector<1x8x256xf32>
    %94 = vector.shape_cast %93 : vector<1x8x256xf32> to vector<8x256xf32>
    %95 = vector.shape_cast %92 : vector<8x256xf32> to vector<1x8x256xf32>
    tpu.vector_store %arg5[%c0_58, %c0_59, %c0_60], %95 {strides = array<i32>} : memref<1x8x256xf32, #tpu.memory_space<vmem>>, vector<1x8x256xf32>,
    %cst_61 = arith.constant dense<0.000000e+00> : vector<8xf32>
    %96 = vector.multi_reduction <add>, %92, %cst_61 [1] : vector<8x256xf32> to vector<8xf32>
    %97 = vector.shape_cast %96 : vector<8xf32> to vector<8x1xf32>
    %98 = arith.mulf %92, %92 : vector<8x256xf32>
    %cst_62 = arith.constant dense<0.000000e+00> : vector<8xf32>
    %99 = vector.multi_reduction <add>, %98, %cst_62 [1] : vector<8x256xf32> to vector<8xf32>
    %100 = vector.shape_cast %99 : vector<8xf32> to vector<8x1xf32>
    %c0_i32_63 = arith.constant 0 : i32
    %101 = arith.cmpi eq, %arg0, %c0_i32_63 : i32
    %102 = arith.extui %101 : i1 to i32
    %c0_i32_64 = arith.constant 0 : i32
    %103 = arith.cmpi ne, %102, %c0_i32_64 : i32
    scf.if %103 {
      %c0_67 = arith.constant 0 : index
      %c0_68 = arith.constant 0 : index
      %107 = vector.load %arg6[%c0_67, %c0_68] : memref<8x1xf32, #tpu.memory_space<vmem>>, vector<8x1xf32>
      tpu.vector_store %arg6[%c0_67, %c0_68], %97 {strides = array<i32>} : memref<8x1xf32, #tpu.memory_space<vmem>>, vector<8x1xf32>,
      %c0_69 = arith.constant 0 : index
      %c0_70 = arith.constant 0 : index
      %108 = vector.load %arg7[%c0_69, %c0_70] : memref<8x1xf32, #tpu.memory_space<vmem>>, vector<8x1xf32>
      tpu.vector_store %arg7[%c0_69, %c0_70], %100 {strides = array<i32>} : memref<8x1xf32, #tpu.memory_space<vmem>>, vector<8x1xf32>,
    } else {
    }
    %c0_i32_65 = arith.constant 0 : i32
    %104 = arith.cmpi sgt, %arg0, %c0_i32_65 : i32
    %105 = arith.extui %104 : i1 to i32
    %c0_i32_66 = arith.constant 0 : i32
    %106 = arith.cmpi ne, %105, %c0_i32_66 : i32
    scf.if %106 {
      %c0_67 = arith.constant 0 : index
      %c0_68 = arith.constant 0 : index
      %107 = vector.load %arg6[%c0_67, %c0_68] : memref<8x1xf32, #tpu.memory_space<vmem>>, vector<8x1xf32>
      %108 = arith.addf %107, %97 : vector<8x1xf32>
      %c0_69 = arith.constant 0 : index
      %c0_70 = arith.constant 0 : index
      %109 = vector.load %arg6[%c0_69, %c0_70] : memref<8x1xf32, #tpu.memory_space<vmem>>, vector<8x1xf32>
      tpu.vector_store %arg6[%c0_69, %c0_70], %108 {strides = array<i32>} : memref<8x1xf32, #tpu.memory_space<vmem>>, vector<8x1xf32>,
      %c0_71 = arith.constant 0 : index
      %c0_72 = arith.constant 0 : index
      %110 = vector.load %arg7[%c0_71, %c0_72] : memref<8x1xf32, #tpu.memory_space<vmem>>, vector<8x1xf32>
      %111 = arith.addf %110, %100 : vector<8x1xf32>
      %c0_73 = arith.constant 0 : index
      %c0_74 = arith.constant 0 : index
      %112 = vector.load %arg7[%c0_73, %c0_74] : memref<8x1xf32, #tpu.memory_space<vmem>>, vector<8x1xf32>
      tpu.vector_store %arg7[%c0_73, %c0_74], %111 {strides = array<i32>} : memref<8x1xf32, #tpu.memory_space<vmem>>, vector<8x1xf32>,
    } else {
    }
    return
  }
  func.func @transform_0(%arg0: i32) -> (i32, i32) {
    %c0_i32 = arith.constant 0 : i32
    %c0_i32_0 = arith.constant 0 : i32
    %c0_i32_1 = arith.constant 0 : i32
    return %c0_i32, %c0_i32_0 : i32, i32
  }
  func.func @transform_1(%arg0: i32) -> (i32, i32) {
    %c0_i32 = arith.constant 0 : i32
    %c0_i32_0 = arith.constant 0 : i32
    %c0_i32_1 = arith.constant 0 : i32
    return %c0_i32, %c0_i32_0 : i32, i32
  }
  func.func @transform_2(%arg0: i32) -> (i32, i32, i32) {
    %c0_i32 = arith.constant 0 : i32
    %c0_i32_0 = arith.constant 0 : i32
    %c0_i32_1 = arith.constant 0 : i32
    return %arg0, %c0_i32, %c0_i32_0 : i32, i32, i32
  }
  func.func @transform_3(%arg0: i32) -> (i32, i32, i32) {
    %c0_i32 = arith.constant 0 : i32
    %c0_i32_0 = arith.constant 0 : i32
    %c0_i32_1 = arith.constant 0 : i32
    %c0_i32_2 = arith.constant 0 : i32
    return %c0_i32, %c0_i32_0, %c0_i32_1 : i32, i32, i32
  }
  func.func @transform_4(%arg0: i32) -> (i32, i32, i32) {
    %c0_i32 = arith.constant 0 : i32
    %c0_i32_0 = arith.constant 0 : i32
    %c0_i32_1 = arith.constant 0 : i32
    return %arg0, %c0_i32, %c0_i32_0 : i32, i32, i32
  }
  func.func @transform_5(%arg0: i32) -> (i32, i32) {
    %c0_i32 = arith.constant 0 : i32
    %c0_i32_0 = arith.constant 0 : i32
    %c0_i32_1 = arith.constant 0 : i32
    return %c0_i32, %c0_i32_0 : i32, i32
  }
  func.func @transform_6(%arg0: i32) -> (i32, i32) {
    %c0_i32 = arith.constant 0 : i32
    %c0_i32_0 = arith.constant 0 : i32
    %c0_i32_1 = arith.constant 0 : i32
    return %c0_i32, %c0_i32_0 : i32, i32
  }
}

module attributes {stable_mosaic.version = 11 : i64} {
  func.func @kernel(%arg0: i32, %arg1: memref<1x8x256xf32, #tpu.memory_space<vmem>>, %arg2: memref<9x8x8xf32, #tpu.memory_space<vmem>>, %arg3: memref<1x8x256xf32, #tpu.memory_space<vmem>>, %arg4: memref<8x1xf32, #tpu.memory_space<vmem>>, %arg5: memref<8x1xf32, #tpu.memory_space<vmem>>, %arg6: memref<8x512xf32, #tpu.memory_space<vmem>>) attributes {dimension_semantics = [#tpu.dimension_semantics<arbitrary>], iteration_bounds = array<i64: 2>, scalar_prefetch = 0 : i64, scratch_operands = 1 : i64, tpu.core_type = #tpu.core_type<tc>, window_params = [{transform_indices = @transform_0, window_bounds = array<i64: 1, 8, 256>}, {pipeline_mode = #tpu.pipeline_mode<synchronous>, transform_indices = @transform_1, window_bounds = array<i64: 9, 8, 8>}, {transform_indices = @transform_2, window_bounds = array<i64: 1, 8, 256>}, {pipeline_mode = #tpu.pipeline_mode<synchronous>, transform_indices = @transform_3, window_bounds = array<i64: 8, 1>}, {pipeline_mode = #tpu.pipeline_mode<synchronous>, transform_indices = @transform_4, window_bounds = array<i64: 8, 1>}]} {
    %c0_i32 = arith.constant 0 : i32
    %0 = arith.cmpi eq, %arg0, %c0_i32 : i32
    %1 = arith.extui %0 : i1 to i32
    %c0_i32_0 = arith.constant 0 : i32
    %2 = arith.cmpi ne, %1, %c0_i32_0 : i32
    scf.if %2 {
      %cst_62 = arith.constant 0.000000e+00 : f32
      %99 = vector.broadcast %cst_62 : f32 to vector<8x128xf32>
      %c0_63 = arith.constant 0 : index
      %c0_64 = arith.constant 0 : index
      %100 = vector.load %arg6[%c0_63, %c0_64] : memref<8x512xf32, #tpu.memory_space<vmem>>, vector<8x128xf32>
      tpu.vector_store %arg6[%c0_63, %c0_64], %99 {strides = array<i32>} : memref<8x512xf32, #tpu.memory_space<vmem>>, vector<8x128xf32>,
      %cst_65 = arith.constant 0.000000e+00 : f32
      %101 = vector.broadcast %cst_65 : f32 to vector<8x128xf32>
      %c0_66 = arith.constant 0 : index
      %c384 = arith.constant 384 : index
      %102 = vector.load %arg6[%c0_66, %c384] : memref<8x512xf32, #tpu.memory_space<vmem>>, vector<8x128xf32>
      tpu.vector_store %arg6[%c0_66, %c384], %101 {strides = array<i32>} : memref<8x512xf32, #tpu.memory_space<vmem>>, vector<8x128xf32>,
    } else {
    }
    %c0 = arith.constant 0 : index
    %c0_1 = arith.constant 0 : index
    %c0_2 = arith.constant 0 : index
    %3 = vector.load %arg1[%c0, %c0_1, %c0_2] : memref<1x8x256xf32, #tpu.memory_space<vmem>>, vector<1x8x256xf32>
    %4 = vector.shape_cast %3 : vector<1x8x256xf32> to vector<8x256xf32>
    %c0_3 = arith.constant 0 : index
    %c128 = arith.constant 128 : index
    %5 = vector.load %arg6[%c0_3, %c128] : memref<8x512xf32, #tpu.memory_space<vmem>>, vector<8x256xf32>
    tpu.vector_store %arg6[%c0_3, %c128], %4 {strides = array<i32>} : memref<8x512xf32, #tpu.memory_space<vmem>>, vector<8x256xf32>,
    %6 = tpu.iota {dimensions = array<i32: 1>} : vector<8x256xi32>
    %c16_i32 = arith.constant 16 : i32
    %c0_i32_4 = arith.constant 0 : i32
    %7 = arith.cmpi eq, %c16_i32, %c0_i32_4 : i32
    %c1_i32 = arith.constant 1 : i32
    %8 = arith.select %7, %c1_i32, %c16_i32 : i32
    %9 = vector.broadcast %8 : i32 to vector<8x256xi32>
    %10 = arith.remsi %6, %9 : vector<8x256xi32>
    %c0_i32_5 = arith.constant 0 : i32
    %11 = vector.broadcast %c0_i32_5 : i32 to vector<8x256xi32>
    %12 = arith.cmpi ne, %10, %11 : vector<8x256xi32>
    %c0_i32_6 = arith.constant 0 : i32
    %13 = vector.broadcast %c0_i32_6 : i32 to vector<8x256xi32>
    %14 = arith.cmpi slt, %10, %13 : vector<8x256xi32>
    %c0_i32_7 = arith.constant 0 : i32
    %15 = arith.cmpi slt, %8, %c0_i32_7 : i32
    %16 = vector.broadcast %15 : i1 to vector<8x256xi1>
    %17 = vector.broadcast %16 : vector<8x256xi1> to vector<8x256xi1>
    %18 = arith.xori %14, %17 : vector<8x256xi1>
    %19 = arith.andi %18, %12 : vector<8x256xi1>
    %20 = vector.broadcast %8 : i32 to vector<8x256xi32>
    %21 = arith.addi %10, %20 : vector<8x256xi32>
    %22 = arith.select %19, %21, %10 : vector<8x256xi1>, vector<8x256xi32>
    %c0_i32_8 = arith.constant 0 : i32
    %23 = vector.broadcast %c0_i32_8 : i32 to vector<8x256xi32>
    %24 = arith.cmpi ne, %22, %23 : vector<8x256xi32>
    %c15_i32 = arith.constant 15 : i32
    %25 = vector.broadcast %c15_i32 : i32 to vector<8x256xi32>
    %26 = arith.cmpi ne, %22, %25 : vector<8x256xi32>
    %cst = arith.constant 0.000000e+00 : f32
    %27 = vector.broadcast %cst : f32 to vector<8x256xf32>
    %c0_9 = arith.constant 0 : index
    %c111 = arith.constant 111 : index
    %28 = vector.load %arg6[%c0_9, %c111] : memref<8x512xf32, #tpu.memory_space<vmem>>, vector<8x256xf32>
    %cst_10 = arith.constant 0.000000e+00 : f32
    %29 = vector.broadcast %cst_10 : f32 to vector<8x256xf32>
    %30 = arith.select %24, %28, %29 : vector<8x256xi1>, vector<8x256xf32>
    %c0_11 = arith.constant 0 : index
    %c0_12 = arith.constant 0 : index
    %c0_13 = arith.constant 0 : index
    %31 = vector.load %arg2[%c0_11, %c0_12, %c0_13] : memref<9x8x8xf32, #tpu.memory_space<vmem>>, vector<1x8x8xf32>
    %32 = vector.shape_cast %31 : vector<1x8x8xf32> to vector<8x8xf32>
    %cst_14 = arith.constant dense<0.000000e+00> : vector<8x256xf32>
    %33 = tpu.matmul %32, %30, %cst_14 {dimension_numbers = #tpu.dot_dimension_numbers<[1], [0], [0], [1], [0, 0, 1, 1], [], []>} : vector<8x8xf32>, vector<8x256xf32>, vector<8x256xf32> -> vector<8x256xf32>
    %34 = arith.addf %27, %33 : vector<8x256xf32>
    %c0_15 = arith.constant 0 : index
    %c112 = arith.constant 112 : index
    %35 = vector.load %arg6[%c0_15, %c112] : memref<8x512xf32, #tpu.memory_space<vmem>>, vector<8x256xf32>
    %c1 = arith.constant 1 : index
    %c0_16 = arith.constant 0 : index
    %c0_17 = arith.constant 0 : index
    %36 = vector.load %arg2[%c1, %c0_16, %c0_17] : memref<9x8x8xf32, #tpu.memory_space<vmem>>, vector<1x8x8xf32>
    %37 = vector.shape_cast %36 : vector<1x8x8xf32> to vector<8x8xf32>
    %cst_18 = arith.constant dense<0.000000e+00> : vector<8x256xf32>
    %38 = tpu.matmul %37, %35, %cst_18 {dimension_numbers = #tpu.dot_dimension_numbers<[1], [0], [0], [1], [0, 0, 1, 1], [], []>} : vector<8x8xf32>, vector<8x256xf32>, vector<8x256xf32> -> vector<8x256xf32>
    %39 = arith.addf %34, %38 : vector<8x256xf32>
    %c0_19 = arith.constant 0 : index
    %c113 = arith.constant 113 : index
    %40 = vector.load %arg6[%c0_19, %c113] : memref<8x512xf32, #tpu.memory_space<vmem>>, vector<8x256xf32>
    %cst_20 = arith.constant 0.000000e+00 : f32
    %41 = vector.broadcast %cst_20 : f32 to vector<8x256xf32>
    %42 = arith.select %26, %40, %41 : vector<8x256xi1>, vector<8x256xf32>
    %c2 = arith.constant 2 : index
    %c0_21 = arith.constant 0 : index
    %c0_22 = arith.constant 0 : index
    %43 = vector.load %arg2[%c2, %c0_21, %c0_22] : memref<9x8x8xf32, #tpu.memory_space<vmem>>, vector<1x8x8xf32>
    %44 = vector.shape_cast %43 : vector<1x8x8xf32> to vector<8x8xf32>
    %cst_23 = arith.constant dense<0.000000e+00> : vector<8x256xf32>
    %45 = tpu.matmul %44, %42, %cst_23 {dimension_numbers = #tpu.dot_dimension_numbers<[1], [0], [0], [1], [0, 0, 1, 1], [], []>} : vector<8x8xf32>, vector<8x256xf32>, vector<8x256xf32> -> vector<8x256xf32>
    %46 = arith.addf %39, %45 : vector<8x256xf32>
    %c0_24 = arith.constant 0 : index
    %c127 = arith.constant 127 : index
    %47 = vector.load %arg6[%c0_24, %c127] : memref<8x512xf32, #tpu.memory_space<vmem>>, vector<8x256xf32>
    %cst_25 = arith.constant 0.000000e+00 : f32
    %48 = vector.broadcast %cst_25 : f32 to vector<8x256xf32>
    %49 = arith.select %24, %47, %48 : vector<8x256xi1>, vector<8x256xf32>
    %c3 = arith.constant 3 : index
    %c0_26 = arith.constant 0 : index
    %c0_27 = arith.constant 0 : index
    %50 = vector.load %arg2[%c3, %c0_26, %c0_27] : memref<9x8x8xf32, #tpu.memory_space<vmem>>, vector<1x8x8xf32>
    %51 = vector.shape_cast %50 : vector<1x8x8xf32> to vector<8x8xf32>
    %cst_28 = arith.constant dense<0.000000e+00> : vector<8x256xf32>
    %52 = tpu.matmul %51, %49, %cst_28 {dimension_numbers = #tpu.dot_dimension_numbers<[1], [0], [0], [1], [0, 0, 1, 1], [], []>} : vector<8x8xf32>, vector<8x256xf32>, vector<8x256xf32> -> vector<8x256xf32>
    %53 = arith.addf %46, %52 : vector<8x256xf32>
    %c0_29 = arith.constant 0 : index
    %c128_30 = arith.constant 128 : index
    %54 = vector.load %arg6[%c0_29, %c128_30] : memref<8x512xf32, #tpu.memory_space<vmem>>, vector<8x256xf32>
    %c4 = arith.constant 4 : index
    %c0_31 = arith.constant 0 : index
    %c0_32 = arith.constant 0 : index
    %55 = vector.load %arg2[%c4, %c0_31, %c0_32] : memref<9x8x8xf32, #tpu.memory_space<vmem>>, vector<1x8x8xf32>
    %56 = vector.shape_cast %55 : vector<1x8x8xf32> to vector<8x8xf32>
    %cst_33 = arith.constant dense<0.000000e+00> : vector<8x256xf32>
    %57 = tpu.matmul %56, %54, %cst_33 {dimension_numbers = #tpu.dot_dimension_numbers<[1], [0], [0], [1], [0, 0, 1, 1], [], []>} : vector<8x8xf32>, vector<8x256xf32>, vector<8x256xf32> -> vector<8x256xf32>
    %58 = arith.addf %53, %57 : vector<8x256xf32>
    %c0_34 = arith.constant 0 : index
    %c129 = arith.constant 129 : index
    %59 = vector.load %arg6[%c0_34, %c129] : memref<8x512xf32, #tpu.memory_space<vmem>>, vector<8x256xf32>
    %cst_35 = arith.constant 0.000000e+00 : f32
    %60 = vector.broadcast %cst_35 : f32 to vector<8x256xf32>
    %61 = arith.select %26, %59, %60 : vector<8x256xi1>, vector<8x256xf32>
    %c5 = arith.constant 5 : index
    %c0_36 = arith.constant 0 : index
    %c0_37 = arith.constant 0 : index
    %62 = vector.load %arg2[%c5, %c0_36, %c0_37] : memref<9x8x8xf32, #tpu.memory_space<vmem>>, vector<1x8x8xf32>
    %63 = vector.shape_cast %62 : vector<1x8x8xf32> to vector<8x8xf32>
    %cst_38 = arith.constant dense<0.000000e+00> : vector<8x256xf32>
    %64 = tpu.matmul %63, %61, %cst_38 {dimension_numbers = #tpu.dot_dimension_numbers<[1], [0], [0], [1], [0, 0, 1, 1], [], []>} : vector<8x8xf32>, vector<8x256xf32>, vector<8x256xf32> -> vector<8x256xf32>
    %65 = arith.addf %58, %64 : vector<8x256xf32>
    %c0_39 = arith.constant 0 : index
    %c143 = arith.constant 143 : index
    %66 = vector.load %arg6[%c0_39, %c143] : memref<8x512xf32, #tpu.memory_space<vmem>>, vector<8x256xf32>
    %cst_40 = arith.constant 0.000000e+00 : f32
    %67 = vector.broadcast %cst_40 : f32 to vector<8x256xf32>
    %68 = arith.select %24, %66, %67 : vector<8x256xi1>, vector<8x256xf32>
    %c6 = arith.constant 6 : index
    %c0_41 = arith.constant 0 : index
    %c0_42 = arith.constant 0 : index
    %69 = vector.load %arg2[%c6, %c0_41, %c0_42] : memref<9x8x8xf32, #tpu.memory_space<vmem>>, vector<1x8x8xf32>
    %70 = vector.shape_cast %69 : vector<1x8x8xf32> to vector<8x8xf32>
    %cst_43 = arith.constant dense<0.000000e+00> : vector<8x256xf32>
    %71 = tpu.matmul %70, %68, %cst_43 {dimension_numbers = #tpu.dot_dimension_numbers<[1], [0], [0], [1], [0, 0, 1, 1], [], []>} : vector<8x8xf32>, vector<8x256xf32>, vector<8x256xf32> -> vector<8x256xf32>
    %72 = arith.addf %65, %71 : vector<8x256xf32>
    %c0_44 = arith.constant 0 : index
    %c144 = arith.constant 144 : index
    %73 = vector.load %arg6[%c0_44, %c144] : memref<8x512xf32, #tpu.memory_space<vmem>>, vector<8x256xf32>
    %c7 = arith.constant 7 : index
    %c0_45 = arith.constant 0 : index
    %c0_46 = arith.constant 0 : index
    %74 = vector.load %arg2[%c7, %c0_45, %c0_46] : memref<9x8x8xf32, #tpu.memory_space<vmem>>, vector<1x8x8xf32>
    %75 = vector.shape_cast %74 : vector<1x8x8xf32> to vector<8x8xf32>
    %cst_47 = arith.constant dense<0.000000e+00> : vector<8x256xf32>
    %76 = tpu.matmul %75, %73, %cst_47 {dimension_numbers = #tpu.dot_dimension_numbers<[1], [0], [0], [1], [0, 0, 1, 1], [], []>} : vector<8x8xf32>, vector<8x256xf32>, vector<8x256xf32> -> vector<8x256xf32>
    %77 = arith.addf %72, %76 : vector<8x256xf32>
    %c0_48 = arith.constant 0 : index
    %c145 = arith.constant 145 : index
    %78 = vector.load %arg6[%c0_48, %c145] : memref<8x512xf32, #tpu.memory_space<vmem>>, vector<8x256xf32>
    %cst_49 = arith.constant 0.000000e+00 : f32
    %79 = vector.broadcast %cst_49 : f32 to vector<8x256xf32>
    %80 = arith.select %26, %78, %79 : vector<8x256xi1>, vector<8x256xf32>
    %c8 = arith.constant 8 : index
    %c0_50 = arith.constant 0 : index
    %c0_51 = arith.constant 0 : index
    %81 = vector.load %arg2[%c8, %c0_50, %c0_51] : memref<9x8x8xf32, #tpu.memory_space<vmem>>, vector<1x8x8xf32>
    %82 = vector.shape_cast %81 : vector<1x8x8xf32> to vector<8x8xf32>
    %cst_52 = arith.constant dense<0.000000e+00> : vector<8x256xf32>
    %83 = tpu.matmul %82, %80, %cst_52 {dimension_numbers = #tpu.dot_dimension_numbers<[1], [0], [0], [1], [0, 0, 1, 1], [], []>} : vector<8x8xf32>, vector<8x256xf32>, vector<8x256xf32> -> vector<8x256xf32>
    %84 = arith.addf %77, %83 : vector<8x256xf32>
    %c0_53 = arith.constant 0 : index
    %c0_54 = arith.constant 0 : index
    %c0_55 = arith.constant 0 : index
    %85 = vector.load %arg3[%c0_53, %c0_54, %c0_55] : memref<1x8x256xf32, #tpu.memory_space<vmem>>, vector<1x8x256xf32>
    %86 = vector.shape_cast %85 : vector<1x8x256xf32> to vector<8x256xf32>
    %87 = vector.shape_cast %84 : vector<8x256xf32> to vector<1x8x256xf32>
    tpu.vector_store %arg3[%c0_53, %c0_54, %c0_55], %87 {strides = array<i32>} : memref<1x8x256xf32, #tpu.memory_space<vmem>>, vector<1x8x256xf32>,
    %cst_56 = arith.constant dense<0.000000e+00> : vector<8xf32>
    %88 = vector.multi_reduction <add>, %84, %cst_56 [1] : vector<8x256xf32> to vector<8xf32>
    %89 = vector.shape_cast %88 : vector<8xf32> to vector<8x1xf32>
    %90 = arith.mulf %84, %84 : vector<8x256xf32>
    %cst_57 = arith.constant dense<0.000000e+00> : vector<8xf32>
    %91 = vector.multi_reduction <add>, %90, %cst_57 [1] : vector<8x256xf32> to vector<8xf32>
    %92 = vector.shape_cast %91 : vector<8xf32> to vector<8x1xf32>
    %c0_i32_58 = arith.constant 0 : i32
    %93 = arith.cmpi eq, %arg0, %c0_i32_58 : i32
    %94 = arith.extui %93 : i1 to i32
    %c0_i32_59 = arith.constant 0 : i32
    %95 = arith.cmpi ne, %94, %c0_i32_59 : i32
    scf.if %95 {
      %c0_62 = arith.constant 0 : index
      %c0_63 = arith.constant 0 : index
      %99 = vector.load %arg4[%c0_62, %c0_63] : memref<8x1xf32, #tpu.memory_space<vmem>>, vector<8x1xf32>
      tpu.vector_store %arg4[%c0_62, %c0_63], %89 {strides = array<i32>} : memref<8x1xf32, #tpu.memory_space<vmem>>, vector<8x1xf32>,
      %c0_64 = arith.constant 0 : index
      %c0_65 = arith.constant 0 : index
      %100 = vector.load %arg5[%c0_64, %c0_65] : memref<8x1xf32, #tpu.memory_space<vmem>>, vector<8x1xf32>
      tpu.vector_store %arg5[%c0_64, %c0_65], %92 {strides = array<i32>} : memref<8x1xf32, #tpu.memory_space<vmem>>, vector<8x1xf32>,
    } else {
    }
    %c0_i32_60 = arith.constant 0 : i32
    %96 = arith.cmpi sgt, %arg0, %c0_i32_60 : i32
    %97 = arith.extui %96 : i1 to i32
    %c0_i32_61 = arith.constant 0 : i32
    %98 = arith.cmpi ne, %97, %c0_i32_61 : i32
    scf.if %98 {
      %c0_62 = arith.constant 0 : index
      %c0_63 = arith.constant 0 : index
      %99 = vector.load %arg4[%c0_62, %c0_63] : memref<8x1xf32, #tpu.memory_space<vmem>>, vector<8x1xf32>
      %100 = arith.addf %99, %89 : vector<8x1xf32>
      %c0_64 = arith.constant 0 : index
      %c0_65 = arith.constant 0 : index
      %101 = vector.load %arg4[%c0_64, %c0_65] : memref<8x1xf32, #tpu.memory_space<vmem>>, vector<8x1xf32>
      tpu.vector_store %arg4[%c0_64, %c0_65], %100 {strides = array<i32>} : memref<8x1xf32, #tpu.memory_space<vmem>>, vector<8x1xf32>,
      %c0_66 = arith.constant 0 : index
      %c0_67 = arith.constant 0 : index
      %102 = vector.load %arg5[%c0_66, %c0_67] : memref<8x1xf32, #tpu.memory_space<vmem>>, vector<8x1xf32>
      %103 = arith.addf %102, %92 : vector<8x1xf32>
      %c0_68 = arith.constant 0 : index
      %c0_69 = arith.constant 0 : index
      %104 = vector.load %arg5[%c0_68, %c0_69] : memref<8x1xf32, #tpu.memory_space<vmem>>, vector<8x1xf32>
      tpu.vector_store %arg5[%c0_68, %c0_69], %103 {strides = array<i32>} : memref<8x1xf32, #tpu.memory_space<vmem>>, vector<8x1xf32>,
    } else {
    }
    return
  }
  func.func @transform_0(%arg0: i32) -> (i32, i32, i32) {
    %c0_i32 = arith.constant 0 : i32
    %c0_i32_0 = arith.constant 0 : i32
    %c0_i32_1 = arith.constant 0 : i32
    return %arg0, %c0_i32, %c0_i32_0 : i32, i32, i32
  }
  func.func @transform_1(%arg0: i32) -> (i32, i32, i32) {
    %c0_i32 = arith.constant 0 : i32
    %c0_i32_0 = arith.constant 0 : i32
    %c0_i32_1 = arith.constant 0 : i32
    %c0_i32_2 = arith.constant 0 : i32
    return %c0_i32, %c0_i32_0, %c0_i32_1 : i32, i32, i32
  }
  func.func @transform_2(%arg0: i32) -> (i32, i32, i32) {
    %c0_i32 = arith.constant 0 : i32
    %c0_i32_0 = arith.constant 0 : i32
    %c0_i32_1 = arith.constant 0 : i32
    return %arg0, %c0_i32, %c0_i32_0 : i32, i32, i32
  }
  func.func @transform_3(%arg0: i32) -> (i32, i32) {
    %c0_i32 = arith.constant 0 : i32
    %c0_i32_0 = arith.constant 0 : i32
    %c0_i32_1 = arith.constant 0 : i32
    return %c0_i32, %c0_i32_0 : i32, i32
  }
  func.func @transform_4(%arg0: i32) -> (i32, i32) {
    %c0_i32 = arith.constant 0 : i32
    %c0_i32_0 = arith.constant 0 : i32
    %c0_i32_1 = arith.constant 0 : i32
    return %c0_i32, %c0_i32_0 : i32, i32
  }
}

module attributes {stable_mosaic.version = 11 : i64} {
  func.func @_bn_residual_relu_kernel(%arg0: i32, %arg1: memref<8x1xf32, #tpu.memory_space<vmem>>, %arg2: memref<8x1xf32, #tpu.memory_space<vmem>>, %arg3: memref<1x8x256xf32, #tpu.memory_space<vmem>>, %arg4: memref<1x8x256xf32, #tpu.memory_space<vmem>>, %arg5: memref<1x8x256xf32, #tpu.memory_space<vmem>>) attributes {dimension_semantics = [#tpu.dimension_semantics<parallel>], iteration_bounds = array<i64: 2>, scalar_prefetch = 0 : i64, scratch_operands = 0 : i64, tpu.core_type = #tpu.core_type<tc>, window_params = [{pipeline_mode = #tpu.pipeline_mode<synchronous>, transform_indices = @transform_0, window_bounds = array<i64: 8, 1>}, {pipeline_mode = #tpu.pipeline_mode<synchronous>, transform_indices = @transform_1, window_bounds = array<i64: 8, 1>}, {transform_indices = @transform_2, window_bounds = array<i64: 1, 8, 256>}, {transform_indices = @transform_3, window_bounds = array<i64: 1, 8, 256>}, {transform_indices = @transform_4, window_bounds = array<i64: 1, 8, 256>}]} {
    %c0 = arith.constant 0 : index
    %c0_0 = arith.constant 0 : index
    %c0_1 = arith.constant 0 : index
    %0 = vector.load %arg3[%c0, %c0_0, %c0_1] : memref<1x8x256xf32, #tpu.memory_space<vmem>>, vector<1x8x256xf32>
    %1 = vector.shape_cast %0 : vector<1x8x256xf32> to vector<8x256xf32>
    %c0_2 = arith.constant 0 : index
    %c0_3 = arith.constant 0 : index
    %2 = vector.load %arg1[%c0_2, %c0_3] : memref<8x1xf32, #tpu.memory_space<vmem>>, vector<8x1xf32>
    %3 = vector.broadcast %2 : vector<8x1xf32> to vector<8x256xf32>
    %4 = arith.mulf %1, %3 : vector<8x256xf32>
    %c0_4 = arith.constant 0 : index
    %c0_5 = arith.constant 0 : index
    %5 = vector.load %arg2[%c0_4, %c0_5] : memref<8x1xf32, #tpu.memory_space<vmem>>, vector<8x1xf32>
    %6 = vector.broadcast %5 : vector<8x1xf32> to vector<8x256xf32>
    %7 = arith.addf %4, %6 : vector<8x256xf32>
    %c0_6 = arith.constant 0 : index
    %c0_7 = arith.constant 0 : index
    %c0_8 = arith.constant 0 : index
    %8 = vector.load %arg4[%c0_6, %c0_7, %c0_8] : memref<1x8x256xf32, #tpu.memory_space<vmem>>, vector<1x8x256xf32>
    %9 = vector.shape_cast %8 : vector<1x8x256xf32> to vector<8x256xf32>
    %10 = arith.addf %7, %9 : vector<8x256xf32>
    %cst = arith.constant 0.000000e+00 : f32
    %11 = vector.broadcast %cst : f32 to vector<8x256xf32>
    %12 = arith.maximumf %10, %11 : vector<8x256xf32>
    %c0_9 = arith.constant 0 : index
    %c0_10 = arith.constant 0 : index
    %c0_11 = arith.constant 0 : index
    %13 = vector.load %arg5[%c0_9, %c0_10, %c0_11] : memref<1x8x256xf32, #tpu.memory_space<vmem>>, vector<1x8x256xf32>
    %14 = vector.shape_cast %13 : vector<1x8x256xf32> to vector<8x256xf32>
    %15 = vector.shape_cast %12 : vector<8x256xf32> to vector<1x8x256xf32>
    tpu.vector_store %arg5[%c0_9, %c0_10, %c0_11], %15 {strides = array<i32>} : memref<1x8x256xf32, #tpu.memory_space<vmem>>, vector<1x8x256xf32>,
    return
  }
  func.func @transform_0(%arg0: i32) -> (i32, i32) {
    %c0_i32 = arith.constant 0 : i32
    %c0_i32_0 = arith.constant 0 : i32
    %c0_i32_1 = arith.constant 0 : i32
    return %c0_i32, %c0_i32_0 : i32, i32
  }
  func.func @transform_1(%arg0: i32) -> (i32, i32) {
    %c0_i32 = arith.constant 0 : i32
    %c0_i32_0 = arith.constant 0 : i32
    %c0_i32_1 = arith.constant 0 : i32
    return %c0_i32, %c0_i32_0 : i32, i32
  }
  func.func @transform_2(%arg0: i32) -> (i32, i32, i32) {
    %c0_i32 = arith.constant 0 : i32
    %c0_i32_0 = arith.constant 0 : i32
    %c0_i32_1 = arith.constant 0 : i32
    return %arg0, %c0_i32, %c0_i32_0 : i32, i32, i32
  }
  func.func @transform_3(%arg0: i32) -> (i32, i32, i32) {
    %c0_i32 = arith.constant 0 : i32
    %c0_i32_0 = arith.constant 0 : i32
    %c0_i32_1 = arith.constant 0 : i32
    return %arg0, %c0_i32, %c0_i32_0 : i32, i32, i32
  }
  func.func @transform_4(%arg0: i32) -> (i32, i32, i32) {
    %c0_i32 = arith.constant 0 : i32
    %c0_i32_0 = arith.constant 0 : i32
    %c0_i32_1 = arith.constant 0 : i32
    return %arg0, %c0_i32, %c0_i32_0 : i32, i32, i32
  }
}

</mosaic_0001>

<llo_original>
// kernel: basic_block_pallas.5
$region0: #{basic_block_pallas.5}
  #allocation0 [shape = 'u32[]', space=smem, size = 0x4, offset = 0x4, fixed_abs, tag = 'smem constant byte address 0x4 - core index']
  #allocation1 [shape = 'u32[144,128]{1,0:T(1,128)}', space=vmem, size = 0x12000, scoped, tag = 'internal scratch']
  %s0 = inlined_call_operand.vmem [shape: f32[8,1], index: 0, kind: input, shape index: {}]
  %s1 = inlined_call_operand.vmem [shape: f32[8,1], index: 1, kind: input, shape index: {}]
  %s2 = inlined_call_operand.vmem [shape: f32[2,8,256], index: 2, kind: input, shape index: {}]
  %s3 = inlined_call_operand.vmem [shape: f32[2,8,256], index: 3, kind: input, shape index: {}]
  %s4 = inlined_call_operand.vmem [shape: f32[2,8,256], index: 4, kind: output, shape index: {}]
  %s5 = sld [smem:[#allocation0]]
  $region49: #{basic_block_pallas.5} parent=0
    _
  %s7 = ssub.s32 1, %s5
  %s8 = scalar_select 0, %s7, %s5
  loop: start=0, step=1, limit=4
  $region2: #{basic_block_pallas.5} parent=0 // loop_pre_header
    _
  $region3: #{basic_block_pallas.5} parent=0 // loop_header
    %s10 = sphi 0, %s14
    %p11 = scmp.ge.s32.totalorder %s10, 4
    %s18 = sphi 0, %s18
    %s20 = sphi 0, %s18
    %s21 = sphi 0, %s20
    %s35 = sphi 0, %s21
    %s39 = sphi 0, %s39
    %s41 = sphi 0, %s39
    %s42 = sphi 0, %s41
    %s56 = sphi 0, %s42
    %s62 = sphi 0, %s64
    %s65 = sphi 0, %s62
    %s66 = sphi 0, %s65
    %s82 = sphi 0, %s66
    %s88 = sphi 0, %s90
    %s91 = sphi 0, %s88
    %s92 = sphi 0, %s91
    %s108 = sphi 0, %s92
    %s114 = sphi 0, %s116
    %s117 = sphi 0, %s114
    %s118 = sphi 0, %s117
    %s134 = sphi 0, %s118
  $region4: #{basic_block_pallas.5} parent=0 // loop_header_branch
    %13 = sbr.rel (%p11) target = $region8
  $region5: #{basic_block_pallas.5} parent=0 // loop_body
    %s15 = ssub.s32 %s10, 1
    %s16 = ssub.s32 %s10, 2
    %s17 = sadd.s32 %s10, 1
    %s19 = sadd.s32 %s18, 1
    %p22 = scmp.eq.s32.totalorder %s10, 1
    %p23 = scmp.ne.s32.totalorder %s18, %s20
    %p24 = scmp.eq.s32.totalorder %s10, 0
    %p25 = por %p23, %p24
    %p26 = scmp.ne.s32.totalorder %s18, %s20
    %p27 = scmp.eq.s32.totalorder %s15, 1
    %p28 = por %p26, %p27
    %p29 = scmp.ne.s32.totalorder %s20, %s21
    %p30 = scmp.eq.s32.totalorder %s15, 0
    %p31 = por %p29, %p30
    %p32 = scmp.ne.s32.totalorder %s20, %s21
    %p33 = scmp.eq.s32.totalorder %s16, 1
    %p34 = por %p32, %p33
    %p36 = scmp.ne.s32.totalorder %s21, %s35
    %p37 = scmp.eq.s32.totalorder %s16, 0
    %p38 = por %p36, %p37
    %s40 = sadd.s32 %s39, 1
    %p43 = scmp.eq.s32.totalorder %s10, 1
    %p44 = scmp.ne.s32.totalorder %s39, %s41
    %p45 = scmp.eq.s32.totalorder %s10, 0
    %p46 = por %p44, %p45
    %p47 = scmp.ne.s32.totalorder %s39, %s41
    %p48 = scmp.eq.s32.totalorder %s15, 1
    %p49 = por %p47, %p48
    %p50 = scmp.ne.s32.totalorder %s41, %s42
    %p51 = scmp.eq.s32.totalorder %s15, 0
    %p52 = por %p50, %p51
    %p53 = scmp.ne.s32.totalorder %s41, %s42
    %p54 = scmp.eq.s32.totalorder %s16, 1
    %p55 = por %p53, %p54
    %p57 = scmp.ne.s32.totalorder %s42, %s56
    %p58 = scmp.eq.s32.totalorder %s16, 0
    %p59 = por %p57, %p58
    %s60 = ssub.s32 %s10, %s17
    %p61 = scmp.eq.s32.totalorder %s60, 0
    %s63 = sadd.s32 %s62, 1
    %s64 = scalar_select %p61, %s62, %s63
    %p67 = pneg %p61
    %p68 = scmp.eq.s32.totalorder %s10, 1
    %p69 = por %p67, %p68
    %p70 = scmp.ne.s32.totalorder %s62, %s65
    %p71 = scmp.eq.s32.totalorder %s10, 0
    %p72 = por %p70, %p71
    %p73 = scmp.ne.s32.totalorder %s62, %s65
    %p74 = scmp.eq.s32.totalorder %s15, 1
    %p75 = por %p73, %p74
    %p76 = scmp.ne.s32.totalorder %s65, %s66
    %p77 = scmp.eq.s32.totalorder %s15, 0
    %p78 = por %p76, %p77
    %p79 = scmp.ne.s32.totalorder %s65, %s66
    %p80 = scmp.eq.s32.totalorder %s16, 1
    %p81 = por %p79, %p80
    %p83 = scmp.ne.s32.totalorder %s66, %s82
    %p84 = scmp.eq.s32.totalorder %s16, 0
    %p85 = por %p83, %p84
    %s86 = ssub.s32 %s10, %s17
    %p87 = scmp.eq.s32.totalorder %s86, 0
    %s89 = sadd.s32 %s88, 1
    %s90 = scalar_select %p87, %s88, %s89
    %p93 = pneg %p87
    %p94 = scmp.eq.s32.totalorder %s10, 1
    %p95 = por %p93, %p94
    %p96 = scmp.ne.s32.totalorder %s88, %s91
    %p97 = scmp.eq.s32.totalorder %s10, 0
    %p98 = por %p96, %p97
    %p99 = scmp.ne.s32.totalorder %s88, %s91
    %p100 = scmp.eq.s32.totalorder %s15, 1
    %p101 = por %p99, %p100
    %p102 = scmp.ne.s32.totalorder %s91, %s92
    %p103 = scmp.eq.s32.totalorder %s15, 0
    %p104 = por %p102, %p103
    %p105 = scmp.ne.s32.totalorder %s91, %s92
    %p106 = scmp.eq.s32.totalorder %s16, 1
    %p107 = por %p105, %p106
    %p109 = scmp.ne.s32.totalorder %s92, %s108
    %p110 = scmp.eq.s32.totalorder %s16, 0
    %p111 = por %p109, %p110
    %s112 = ssub.s32 %s10, %s17
    %p113 = scmp.eq.s32.totalorder %s112, 0
    %s115 = sadd.s32 %s114, 1
    %s116 = scalar_select %p113, %s114, %s115
    %p119 = pneg %p113
    %p120 = scmp.eq.s32.totalorder %s10, 1
    %p121 = por %p119, %p120
    %p122 = scmp.ne.s32.totalorder %s114, %s117
    %p123 = scmp.eq.s32.totalorder %s10, 0
    %p124 = por %p122, %p123
    %p125 = scmp.ne.s32.totalorder %s114, %s117
    %p126 = scmp.eq.s32.totalorder %s15, 1
    %p127 = por %p125, %p126
    %p128 = scmp.ne.s32.totalorder %s117, %s118
    %p129 = scmp.eq.s32.totalorder %s15, 0
    %p130 = por %p128, %p129
    %p131 = scmp.ne.s32.totalorder %s117, %s118
    %p132 = scmp.eq.s32.totalorder %s16, 1
    %p133 = por %p131, %p132
    %p135 = scmp.ne.s32.totalorder %s118, %s134
    %p136 = scmp.eq.s32.totalorder %s16, 0
    %p137 = por %p135, %p136
    %p138 = scmp.le.s32.totalorder 1, %s10
    %p139 = scmp.lt.s32.totalorder %s10, 3
    %p140 = pnand %p138, %p139
    %p141 = pneg %p140
    // Predicated region
    $region9: #{basic_block_pallas.5} parent=5 // pred_check
      _
    $region10: #{basic_block_pallas.5} parent=5 // pred_check_branch
      %143 = sbr.rel (%p140) target = $region12
    $region11: #{basic_block_pallas.5} parent=5 // pred_region
      %s144 = ssub.s32 %s10, 1
      // Predicated region
      $region13: #{basic_block_pallas.5} parent=11 // pred_check
        %p145 = pneg %p31
      $region14: #{basic_block_pallas.5} parent=11 // pred_check_branch
        %147 = sbr.rel (%p145) target = $region16
      $region15: #{basic_block_pallas.5} parent=11 // pred_region
        _
      $region16: #{basic_block_pallas.5} parent=11 // pred_fallthru
        _
      // Predicated region
      $region17: #{basic_block_pallas.5} parent=11 // pred_check
        %p148 = pneg %p52
      $region18: #{basic_block_pallas.5} parent=11 // pred_check_branch
        %150 = sbr.rel (%p148) target = $region20
      $region19: #{basic_block_pallas.5} parent=11 // pred_region
        _
      $region20: #{basic_block_pallas.5} parent=11 // pred_fallthru
        _
    $region12: #{basic_block_pallas.5} parent=5 // pred_fallthru
      _
    %p151 = scmp.lt.s32.totalorder %s10, 2
    // Predicated region
    $region21: #{basic_block_pallas.5} parent=5 // pred_check
      %p152 = pneg %p151
    $region22: #{basic_block_pallas.5} parent=5 // pred_check_branch
      %154 = sbr.rel (%p152) target = $region24
    $region23: #{basic_block_pallas.5} parent=5 // pred_region
      // Predicated region
      $region25: #{basic_block_pallas.5} parent=23 // pred_check
        %p155 = pneg %p72
      $region26: #{basic_block_pallas.5} parent=23 // pred_check_branch
        %157 = sbr.rel (%p155) target = $region28
      $region27: #{basic_block_pallas.5} parent=23 // pred_region
        %p158 = scmp.lt.s32.totalorder %s10, 1
        %s159 = scalar_select %p158, %s10, 1
        %s160 = smul.addr %s159, 2
        %s161 = smul.addr %s160, 8
        %s162 = scalar_lea.vmem %s2, %s161
      $region28: #{basic_block_pallas.5} parent=23 // pred_fallthru
        _
      // Predicated region
      $region29: #{basic_block_pallas.5} parent=23 // pred_check
        %p163 = pneg %p98
      $region30: #{basic_block_pallas.5} parent=23 // pred_check_branch
        %165 = sbr.rel (%p163) target = $region32
      $region31: #{basic_block_pallas.5} parent=23 // pred_region
        %p166 = scmp.lt.s32.totalorder %s10, 1
        %s167 = scalar_select %p166, %s10, 1
        %s168 = smul.addr %s167, 2
        %s169 = smul.addr %s168, 8
        %s170 = scalar_lea.vmem %s3, %s169
      $region32: #{basic_block_pallas.5} parent=23 // pred_fallthru
        _
    $region24: #{basic_block_pallas.5} parent=5 // pred_fallthru
      _
    %p171 = scmp.le.s32.totalorder 1, %s10
    %p172 = scmp.lt.s32.totalorder %s10, 3
    %p173 = pnand %p171, %p172
    %p174 = pneg %p173
    // Predicated region
    $region33: #{basic_block_pallas.5} parent=5 // pred_check
      _
    $region34: #{basic_block_pallas.5} parent=5 // pred_check_branch
      %176 = sbr.rel (%p173) target = $region36
    $region35: #{basic_block_pallas.5} parent=5 // pred_region
      %s177 = ssub.s32 %s10, 1
      %p178 = pneg %p31
      %p179 = pneg %p28
      %p180 = pneg %p52
      %p181 = pneg %p49
      %p182 = scmp.lt.s32.totalorder %s15, 1
      %s183 = scalar_select %p182, %s15, 1
      %s184 = smul.addr %s183, 2
      %s185 = smul.addr %s184, 8
      %s186 = scalar_lea.vmem %s2, %s185
      %p187 = pneg %p78
      %p188 = pneg %p75
      %p189 = scmp.lt.s32.totalorder %s15, 1
      %s190 = scalar_select %p189, %s15, 1
      %s191 = smul.addr %s190, 2
      %s192 = smul.addr %s191, 8
      %s193 = scalar_lea.vmem %s3, %s192
      %p194 = pneg %p104
      %p195 = pneg %p101
      %p196 = pneg %p130
      %p197 = pneg %p127
      %p198 = scmp.lt.s32.totalorder %s15, 1
      %s199 = scalar_select %p198, %s15, 1
      %s200 = smul.addr %s199, 2
      %s201 = smul.addr %s200, 8
      %s202 = scalar_lea.vmem %s4, %s201
      %p203 = scmp.lt.s32.totalorder %s15, 1
      %s204 = scalar_select %p203, %s15, 1
      %s205 = smul.addr %s204, 2
      %s206 = smul.addr %s205, 8
      %s207 = scalar_lea.vmem %s2, %s206
      %p208 = scmp.lt.s32.totalorder %s15, 1
      %s209 = scalar_select %p208, %s15, 1
      %s210 = smul.addr %s209, 2
      %s211 = smul.addr %s210, 8
      %s212 = scalar_lea.vmem %s3, %s211
      %p213 = scmp.lt.s32.totalorder %s15, 1
      %s214 = scalar_select %p213, %s15, 1
      %s215 = smul.addr %s214, 2
      %s216 = smul.addr %s215, 8
      %s217 = scalar_lea.vmem %s4, %s216
      %v218 = vld [vmem:[%s207] sm:$0xff]
      %v219 = vld [vmem:[%s207 + $0x8] sm:$0xff]
      %v220 = vld [vmem:[%s0] sm:$0xff]
      %222 = vset.pattern.permute.xlu0 0
      %223 = vperm.xlu0 %222, %v220
      %v224 = vpop.permute.xlu0 %223
      %v226 = vmul.f32 %v218, %v224
      %v227 = vmul.f32 %v219, %v224
      %v228 = vld [vmem:[%s1] sm:$0xff]
      %230 = vset.pattern.permute.xlu0 0
      %231 = vperm.xlu0 %230, %v228
      %v232 = vpop.permute.xlu0 %231
      %v234 = vadd.f32 %v226, %v232
      %v235 = vadd.f32 %v227, %v232
      %v236 = vld [vmem:[%s212] sm:$0xff]
      %v237 = vld [vmem:[%s212 + $0x8] sm:$0xff]
      %v238 = vadd.f32 %v234, %v236
      %v239 = vadd.f32 %v235, %v237
      %v240 = vmax.f32 %v238, 0.0
      %v241 = vmax.f32 %v239, 0.0
      %242 = vst [vmem:[%s217] sm:$0xff] %v240
      %243 = vst [vmem:[%s217 + $0x8] sm:$0xff] %v241
      %p244 = scmp.lt.s32.totalorder %s15, 1
      %s245 = scalar_select %p244, %s15, 1
      %s246 = smul.addr %s245, 2
      %s247 = smul.addr %s246, 8
      %s248 = scalar_lea.vmem %s4, %s247
      // Predicated region
      $region37: #{basic_block_pallas.5} parent=35 // pred_check
        %p249 = pneg %p127
      $region38: #{basic_block_pallas.5} parent=35 // pred_check_branch
        %251 = sbr.rel (%p249) target = $region40
      $region39: #{basic_block_pallas.5} parent=35 // pred_region
        _
      $region40: #{basic_block_pallas.5} parent=35 // pred_fallthru
        _
    $region36: #{basic_block_pallas.5} parent=5 // pred_fallthru
      _
    %p252 = scmp.le.s32.totalorder 2, %s10
    // Predicated region
    $region41: #{basic_block_pallas.5} parent=5 // pred_check
      %p253 = pneg %p252
    $region42: #{basic_block_pallas.5} parent=5 // pred_check_branch
      %255 = sbr.rel (%p253) target = $region44
    $region43: #{basic_block_pallas.5} parent=5 // pred_region
      %s256 = ssub.s32 %s10, 2
      // Predicated region
      $region45: #{basic_block_pallas.5} parent=43 // pred_check
        %p257 = pneg %p133
      $region46: #{basic_block_pallas.5} parent=43 // pred_check_branch
        %259 = sbr.rel (%p257) target = $region48
      $region47: #{basic_block_pallas.5} parent=43 // pred_region
        %p260 = scmp.lt.s32.totalorder %s16, 1
        %s261 = scalar_select %p260, %s16, 1
        %s262 = smul.addr %s261, 2
        %s263 = smul.addr %s262, 8
        %s264 = scalar_lea.vmem %s4, %s263
      $region48: #{basic_block_pallas.5} parent=43 // pred_fallthru
        _
    $region44: #{basic_block_pallas.5} parent=5 // pred_fallthru
      _
  $region6: #{basic_block_pallas.5} parent=0 // loop_footer
    %s14 = sadd.s32 1, %s10
  $region7: #{basic_block_pallas.5} parent=0 // loop_footer_branch
    %9 = sbr.rel target = $region3
  $region8: #{basic_block_pallas.5} parent=0 // loop_exit
    _

// kernel: basic_block_pallas.3
$region0: #{basic_block_pallas.3}
  #allocation0 [shape = 'u32[]', space=smem, size = 0x4, offset = 0x4, fixed_abs, tag = 'smem constant byte address 0x4 - core index']
  #allocation1 [shape = 'u32[144,128]{1,0:T(1,128)}', space=vmem, size = 0x12000, scoped, tag = 'internal scratch']
  #allocation2 [shape = 'f32[8,512]{1,0:T(8,128)}', space=vmem, size = 0x4000, scoped, tag = 'scratch operand']
  %s0 = inlined_call_operand.vmem [shape: f32[2,8,256], index: 0, kind: input, shape index: {}]
  %s1 = inlined_call_operand.vmem [shape: f32[9,8,8], index: 1, kind: input, shape index: {}]
  %s2 = inlined_call_operand.vmem [shape: f32[2,8,256], index: 2, kind: output, shape index: {0}]
  %s3 = inlined_call_operand.vmem [shape: f32[8,1], index: 3, kind: output, shape index: {1}]
  %s4 = inlined_call_operand.vmem [shape: f32[8,1], index: 4, kind: output, shape index: {2}]
  %5 = xla_tuple %s2, %s3, %s4
  %s6 = sld [smem:[#allocation0]]
  $region69: #{basic_block_pallas.3} parent=0
    _
  %s8 = ssub.s32 1, %s6
  %s9 = scalar_select 0, %s8, %s6
  loop: start=0, step=1, limit=4
  $region2: #{basic_block_pallas.3} parent=0 // loop_pre_header
    _
  $region3: #{basic_block_pallas.3} parent=0 // loop_header
    %s11 = sphi 0, %s15
    %p12 = scmp.ge.s32.totalorder %s11, 4
    %s21 = sphi 0, %s23
    %s24 = sphi 0, %s21
    %s25 = sphi 0, %s24
    %s41 = sphi 0, %s25
    %s45 = sphi 0, %s45
    %s47 = sphi 0, %s45
    %s48 = sphi 0, %s47
    %s62 = sphi 0, %s48
    %s68 = sphi 0, %s70
    %s71 = sphi 0, %s68
    %s72 = sphi 0, %s71
    %s88 = sphi 0, %s72
    %s92 = sphi 0, %s92
    %s94 = sphi 0, %s92
    %s95 = sphi 0, %s94
    %s109 = sphi 0, %s95
    %s113 = sphi 0, %s113
    %s115 = sphi 0, %s113
    %s116 = sphi 0, %s115
    %s130 = sphi 0, %s116
  $region4: #{basic_block_pallas.3} parent=0 // loop_header_branch
    %14 = sbr.rel (%p12) target = $region8
  $region5: #{basic_block_pallas.3} parent=0 // loop_body
    %s16 = ssub.s32 %s11, 1
    %s17 = ssub.s32 %s11, 2
    %s18 = sadd.s32 %s11, 1
    %s19 = ssub.s32 %s11, %s18
    %p20 = scmp.eq.s32.totalorder %s19, 0
    %s22 = sadd.s32 %s21, 1
    %s23 = scalar_select %p20, %s21, %s22
    %p26 = pneg %p20
    %p27 = scmp.eq.s32.totalorder %s11, 1
    %p28 = por %p26, %p27
    %p29 = scmp.ne.s32.totalorder %s21, %s24
    %p30 = scmp.eq.s32.totalorder %s11, 0
    %p31 = por %p29, %p30
    %p32 = scmp.ne.s32.totalorder %s21, %s24
    %p33 = scmp.eq.s32.totalorder %s16, 1
    %p34 = por %p32, %p33
    %p35 = scmp.ne.s32.totalorder %s24, %s25
    %p36 = scmp.eq.s32.totalorder %s16, 0
    %p37 = por %p35, %p36
    %p38 = scmp.ne.s32.totalorder %s24, %s25
    %p39 = scmp.eq.s32.totalorder %s17, 1
    %p40 = por %p38, %p39
    %p42 = scmp.ne.s32.totalorder %s25, %s41
    %p43 = scmp.eq.s32.totalorder %s17, 0
    %p44 = por %p42, %p43
    %s46 = sadd.s32 %s45, 1
    %p49 = scmp.eq.s32.totalorder %s11, 1
    %p50 = scmp.ne.s32.totalorder %s45, %s47
    %p51 = scmp.eq.s32.totalorder %s11, 0
    %p52 = por %p50, %p51
    %p53 = scmp.ne.s32.totalorder %s45, %s47
    %p54 = scmp.eq.s32.totalorder %s16, 1
    %p55 = por %p53, %p54
    %p56 = scmp.ne.s32.totalorder %s47, %s48
    %p57 = scmp.eq.s32.totalorder %s16, 0
    %p58 = por %p56, %p57
    %p59 = scmp.ne.s32.totalorder %s47, %s48
    %p60 = scmp.eq.s32.totalorder %s17, 1
    %p61 = por %p59, %p60
    %p63 = scmp.ne.s32.totalorder %s48, %s62
    %p64 = scmp.eq.s32.totalorder %s17, 0
    %p65 = por %p63, %p64
    %s66 = ssub.s32 %s11, %s18
    %p67 = scmp.eq.s32.totalorder %s66, 0
    %s69 = sadd.s32 %s68, 1
    %s70 = scalar_select %p67, %s68, %s69
    %p73 = pneg %p67
    %p74 = scmp.eq.s32.totalorder %s11, 1
    %p75 = por %p73, %p74
    %p76 = scmp.ne.s32.totalorder %s68, %s71
    %p77 = scmp.eq.s32.totalorder %s11, 0
    %p78 = por %p76, %p77
    %p79 = scmp.ne.s32.totalorder %s68, %s71
    %p80 = scmp.eq.s32.totalorder %s16, 1
    %p81 = por %p79, %p80
    %p82 = scmp.ne.s32.totalorder %s71, %s72
    %p83 = scmp.eq.s32.totalorder %s16, 0
    %p84 = por %p82, %p83
    %p85 = scmp.ne.s32.totalorder %s71, %s72
    %p86 = scmp.eq.s32.totalorder %s17, 1
    %p87 = por %p85, %p86
    %p89 = scmp.ne.s32.totalorder %s72, %s88
    %p90 = scmp.eq.s32.totalorder %s17, 0
    %p91 = por %p89, %p90
    %s93 = sadd.s32 %s92, 1
    %p96 = scmp.eq.s32.totalorder %s11, 1
    %p97 = scmp.ne.s32.totalorder %s92, %s94
    %p98 = scmp.eq.s32.totalorder %s11, 0
    %p99 = por %p97, %p98
    %p100 = scmp.ne.s32.totalorder %s92, %s94
    %p101 = scmp.eq.s32.totalorder %s16, 1
    %p102 = por %p100, %p101
    %p103 = scmp.ne.s32.totalorder %s94, %s95
    %p104 = scmp.eq.s32.totalorder %s16, 0
    %p105 = por %p103, %p104
    %p106 = scmp.ne.s32.totalorder %s94, %s95
    %p107 = scmp.eq.s32.totalorder %s17, 1
    %p108 = por %p106, %p107
    %p110 = scmp.ne.s32.totalorder %s95, %s109
    %p111 = scmp.eq.s32.totalorder %s17, 0
    %p112 = por %p110, %p111
    %s114 = sadd.s32 %s113, 1
    %p117 = scmp.eq.s32.totalorder %s11, 1
    %p118 = scmp.ne.s32.totalorder %s113, %s115
    %p119 = scmp.eq.s32.totalorder %s11, 0
    %p120 = por %p118, %p119
    %p121 = scmp.ne.s32.totalorder %s113, %s115
    %p122 = scmp.eq.s32.totalorder %s16, 1
    %p123 = por %p121, %p122
    %p124 = scmp.ne.s32.totalorder %s115, %s116
    %p125 = scmp.eq.s32.totalorder %s16, 0
    %p126 = por %p124, %p125
    %p127 = scmp.ne.s32.totalorder %s115, %s116
    %p128 = scmp.eq.s32.totalorder %s17, 1
    %p129 = por %p127, %p128
    %p131 = scmp.ne.s32.totalorder %s116, %s130
    %p132 = scmp.eq.s32.totalorder %s17, 0
    %p133 = por %p131, %p132
    %p134 = scmp.le.s32.totalorder 1, %s11
    %p135 = scmp.lt.s32.totalorder %s11, 3
    %p136 = pnand %p134, %p135
    %p137 = pneg %p136
    // Predicated region
    $region9: #{basic_block_pallas.3} parent=5 // pred_check
      _
    $region10: #{basic_block_pallas.3} parent=5 // pred_check_branch
      %139 = sbr.rel (%p136) target = $region12
    $region11: #{basic_block_pallas.3} parent=5 // pred_region
      %s140 = ssub.s32 %s11, 1
      // Predicated region
      $region13: #{basic_block_pallas.3} parent=11 // pred_check
        %p141 = pneg %p58
      $region14: #{basic_block_pallas.3} parent=11 // pred_check_branch
        %143 = sbr.rel (%p141) target = $region16
      $region15: #{basic_block_pallas.3} parent=11 // pred_region
        _
      $region16: #{basic_block_pallas.3} parent=11 // pred_fallthru
        _
    $region12: #{basic_block_pallas.3} parent=5 // pred_fallthru
      _
    %p144 = scmp.lt.s32.totalorder %s11, 2
    // Predicated region
    $region17: #{basic_block_pallas.3} parent=5 // pred_check
      %p145 = pneg %p144
    $region18: #{basic_block_pallas.3} parent=5 // pred_check_branch
      %147 = sbr.rel (%p145) target = $region20
    $region19: #{basic_block_pallas.3} parent=5 // pred_region
      // Predicated region
      $region21: #{basic_block_pallas.3} parent=19 // pred_check
        %p148 = pneg %p31
      $region22: #{basic_block_pallas.3} parent=19 // pred_check_branch
        %150 = sbr.rel (%p148) target = $region24
      $region23: #{basic_block_pallas.3} parent=19 // pred_region
        %p151 = scmp.lt.s32.totalorder %s11, 1
        %s152 = scalar_select %p151, %s11, 1
        %s153 = smul.addr %s152, 2
        %s154 = smul.addr %s153, 8
        %s155 = scalar_lea.vmem %s0, %s154
      $region24: #{basic_block_pallas.3} parent=19 // pred_fallthru
        _
    $region20: #{basic_block_pallas.3} parent=5 // pred_fallthru
      _
    %p156 = scmp.le.s32.totalorder 1, %s11
    %p157 = scmp.lt.s32.totalorder %s11, 3
    %p158 = pnand %p156, %p157
    %p159 = pneg %p158
    // Predicated region
    $region25: #{basic_block_pallas.3} parent=5 // pred_check
      _
    $region26: #{basic_block_pallas.3} parent=5 // pred_check_branch
      %161 = sbr.rel (%p158) target = $region28
    $region27: #{basic_block_pallas.3} parent=5 // pred_region
      %s162 = ssub.s32 %s11, 1
      %p163 = scmp.lt.s32.totalorder %s16, 1
      %s164 = scalar_select %p163, %s16, 1
      %s165 = smul.addr %s164, 2
      %s166 = smul.addr %s165, 8
      %s167 = scalar_lea.vmem %s0, %s166
      %p168 = pneg %p37
      %p169 = pneg %p34
      %p170 = pneg %p58
      %p171 = pneg %p55
      %p172 = pneg %p84
      %p173 = pneg %p81
      %p174 = scmp.lt.s32.totalorder %s16, 1
      %s175 = scalar_select %p174, %s16, 1
      %s176 = smul.addr %s175, 2
      %s177 = smul.addr %s176, 8
      %s178 = scalar_lea.vmem %s2, %s177
      %p179 = pneg %p105
      %p180 = pneg %p102
      %p181 = pneg %p126
      %p182 = pneg %p123
      %p183 = scmp.lt.s32.totalorder %s16, 1
      %s184 = scalar_select %p183, %s16, 1
      %s185 = smul.addr %s184, 2
      %s186 = smul.addr %s185, 8
      %s187 = scalar_lea.vmem %s0, %s186
      %p188 = scmp.lt.s32.totalorder %s16, 1
      %s189 = scalar_select %p188, %s16, 1
      %s190 = smul.addr %s189, 2
      %s191 = smul.addr %s190, 8
      %s192 = scalar_lea.vmem %s2, %s191
      %p193 = scmp.eq.s32.totalorder %s16, 0
      // Predicated region
      $region29: #{basic_block_pallas.3} parent=27 // pred_check
        %p194 = pneg %p193
      $region30: #{basic_block_pallas.3} parent=27 // pred_check_branch
        %196 = sbr.rel (%p194) target = $region32
      $region31: #{basic_block_pallas.3} parent=27 // pred_region
        %197 = vst [vmem:[#allocation2] sm:$0xff] 0.0
        %198 = vst [vmem:[#allocation2 + $0x18] sm:$0xff] 0.0
      $region32: #{basic_block_pallas.3} parent=27 // pred_fallthru
        _
      %v199 = vld [vmem:[%s187] sm:$0xff]
      %v200 = vld [vmem:[%s187 + $0x8] sm:$0xff]
      %201 = vst [vmem:[#allocation2 + $0x8] sm:$0xff] %v199
      %202 = vst [vmem:[#allocation2 + $0x10] sm:$0xff] %v200
      %v203 = vlaneseq
      %v204 = vand.u32 %v203, 127
      %v205 = vadd.s32 %v204, 128
      %vm206 = vcmp.lt.s32.totalorder %v204, 0
      %v207 = vsub.s32 0, %v204
      %v208 = vsel %vm206, %v207, %v204
      %v209 = vshrl.u32 %v208, 4
      %v210 = vand.u32 %v208, 15
      %v211 = vsub.s32 0, %v210
      %v212 = vsel %vm206, %v211, %v210
      %vm213 = vcmp.lt.s32.totalorder %v205, 0
      %v214 = vsub.s32 0, %v205
      %v215 = vsel %vm213, %v214, %v205
      %v216 = vshrl.u32 %v215, 4
      %v217 = vand.u32 %v215, 15
      %v218 = vsub.s32 0, %v217
      %v219 = vsel %vm213, %v218, %v217
      %vm220 = vcmp.ne.s32.totalorder %v212, 0
      %vm221 = vcmp.ne.s32.totalorder %v219, 0
      %vm222 = vcmp.lt.s32.totalorder %v212, 0
      %vm223 = vcmp.lt.s32.totalorder %v219, 0
      %vm224 = vmand %vm222, %vm220
      %vm225 = vmand %vm223, %vm221
      %v226 = vadd.s32 %v212, 16
      %v227 = vadd.s32 %v219, 16
      %v228 = vsel %vm224, %v226, %v212
      %v229 = vsel %vm225, %v227, %v219
      %vm230 = vcmp.ne.s32.totalorder %v228, 0
      %vm231 = vcmp.ne.s32.totalorder %v229, 0
      %vm232 = vcmp.ne.s32.totalorder %v228, 15
      %vm233 = vcmp.ne.s32.totalorder %v229, 15
      %v234 = vld [vmem:[#allocation2] sm:$0xff]
      %v235 = vld [vmem:[#allocation2 + $0x8] sm:$0xff]
      %v236 = vld [vmem:[#allocation2 + $0x10] sm:$0xff]
      %240 = vrot.lane.b32.xlu0 %v234, 17
      %v241 = vpop.permute.xlu0 %240
      %242 = vrot.lane.b32.xlu0 %v235, 17
      %v243 = vpop.permute.xlu0 %242
      %244 = vrot.lane.b32.xlu0 %v236, 17
      %v245 = vpop.permute.xlu0 %244
      %vm246 = vcmask 138240
      %v247 = vsel %vm246, %v241, %v243
      %v248 = vsel %vm246, %v243, %v245
      %v251 = vsel %vm230, %v247, 0.0
      %v252 = vsel %vm231, %v248, 0.0
      %v253 = vld [vmem:[%s1] sm:$0xff]
      %s254 = scalar_lea.vmem %s1, 8
      %v255 = vld [vmem:[%s254] sm:$0xff]
      %256 = vrot.lane.b32.xlu0 %v234, 16
      %v257 = vpop.permute.xlu0 %256
      %258 = vrot.lane.b32.xlu0 %v235, 16
      %v259 = vpop.permute.xlu0 %258
      %260 = vrot.lane.b32.xlu0 %v236, 16
      %v261 = vpop.permute.xlu0 %260
      %vm262 = vcmask 130048
      %v263 = vsel %vm262, %v257, %v259
      %v264 = vsel %vm262, %v259, %v261
      %vm267 = vcmask 64512
      %v269 = vsel %vm267, %v255, 0
      %271 = vmatprep.subr.mxu0 %v264
      %272 = vmatpush1.msra.mxu0 %v263
      %273 = vmatprep.subr.mxu0 0.0
      %274 = vmatpush1.msra.mxu0 0.0
      %275 = vmatprep.subr.mxu0 0.0
      %276 = vmatpush1.msra.mxu0 0.0
      %277 = vmatprep.subr.mxu0 0.0
      %278 = vmatpush1.msra.mxu0 0.0
      %279 = vmatprep.subr.mxu0 0.0
      %280 = vmatpush1.msra.mxu0 0.0
      %281 = vmatprep.subr.mxu0 0.0
      %282 = vmatpush1.msra.mxu0 0.0
      %283 = vmatprep.subr.mxu0 0.0
      %284 = vmatpush1.msra.mxu0 0.0
      %285 = vmatprep.subr.mxu0 0.0
      %286 = vmatpush1.msra.mxu0 0.0
      %287 = vmatprep.subr.mxu0 0.0
      %288 = vmatpush1.msra.mxu0 0.0
      %289 = vmatprep.subr.mxu0 0.0
      %290 = vmatpush1.msra.mxu0 0.0
      %291 = vmatprep.subr.mxu0 0.0
      %292 = vmatpush1.msra.mxu0 0.0
      %293 = vmatprep.subr.mxu0 0.0
      %294 = vmatpush1.msra.mxu0 0.0
      %295 = vmatprep.subr.mxu0 0.0
      %296 = vmatpush1.msra.mxu0 0.0
      %297 = vmatprep.subr.mxu0 0.0
      %298 = vmatpush1.msra.mxu0 0.0
      %299 = vmatprep.subr.mxu0 0.0
      %300 = vmatpush1.msra.mxu0 0.0
      %301 = vmatprep.subr.mxu0 0.0
      %302 = vmatpush1.msra.mxu0 0.0
      %303 = vmatprep.subr.mxu0 0.0
      %304 = vmatpush1.msra.mxu0 0.0
      %305 = vmatprep.subr.mxu0 0.0
      %306 = vmatpush1.msra.mxu0 0.0
      %307 = vmatprep.subr.mxu0 0.0
      %308 = vmatpush1.msra.mxu0 0.0
      %309 = vmatprep.subr.mxu0 0.0
      %310 = vmatpush1.msra.mxu0 0.0
      %311 = vmatprep.subr.mxu0 0.0
      %312 = vmatpush1.msra.mxu0 0.0
      %313 = vmatprep.subr.mxu0 0.0
      %314 = vmatpush1.msra.mxu0 0.0
      %315 = vmatprep.subr.mxu0 0.0
      %316 = vmatpush1.msra.mxu0 0.0
      %317 = vmatprep.subr.mxu0 0.0
      %318 = vmatpush1.msra.mxu0 0.0
      %319 = vmatprep.subr.mxu0 0.0
      %320 = vmatpush1.msra.mxu0 0.0
      %321 = vmatprep.subr.mxu0 0.0
      %322 = vmatpush1.msra.mxu0 0.0
      %323 = vmatprep.subr.mxu0 0.0
      %324 = vmatpush1.msra.mxu0 0.0
      %325 = vmatprep.subr.mxu0 0.0
      %326 = vmatpush1.msra.mxu0 0.0
      %327 = vmatprep.subr.mxu0 0.0
      %328 = vmatpush1.msra.mxu0 0.0
      %329 = vmatprep.subr.mxu0 0.0
      %330 = vmatpush1.msra.mxu0 0.0
      %331 = vmatprep.subr.mxu0 0.0
      %332 = vmatpush1.msra.mxu0 0.0
      %333 = vmatprep.subr.mxu0 0.0
      %334 = vmatpush1.msra.mxu0 0.0
      %335 = vmatprep.mubr.f32.mxu0 0.0
      %336 = vmatmul.mubr.f32.gmra.mrb[0].mxu0 %v269
      %v337 = vpop.f32.mrb[0].mxu0
      %v338 = vadd.f32 0.0, %v337
      %v339 = vpop.f32.mrb[0].mxu0
      %v340 = vadd.f32 0.0, %v339
      %341 = vdwg.mxu0
      %v343 = vsel %vm267, %v253, 0
      %345 = vmatprep.subr.mxu0 %v252
      %346 = vmatpush1.msra.mxu0 %v251
      %347 = vmatprep.subr.mxu0 0.0
      %348 = vmatpush1.msra.mxu0 0.0
      %349 = vmatprep.subr.mxu0 0.0
      %350 = vmatpush1.msra.mxu0 0.0
      %351 = vmatprep.subr.mxu0 0.0
      %352 = vmatpush1.msra.mxu0 0.0
      %353 = vmatprep.subr.mxu0 0.0
      %354 = vmatpush1.msra.mxu0 0.0
      %355 = vmatprep.subr.mxu0 0.0
      %356 = vmatpush1.msra.mxu0 0.0
      %357 = vmatprep.subr.mxu0 0.0
      %358 = vmatpush1.msra.mxu0 0.0
      %359 = vmatprep.subr.mxu0 0.0
      %360 = vmatpush1.msra.mxu0 0.0
      %361 = vmatprep.subr.mxu0 0.0
      %362 = vmatpush1.msra.mxu0 0.0
      %363 = vmatprep.subr.mxu0 0.0
      %364 = vmatpush1.msra.mxu0 0.0
      %365 = vmatprep.subr.mxu0 0.0
      %366 = vmatpush1.msra.mxu0 0.0
      %367 = vmatprep.subr.mxu0 0.0
      %368 = vmatpush1.msra.mxu0 0.0
      %369 = vmatprep.subr.mxu0 0.0
      %370 = vmatpush1.msra.mxu0 0.0
      %371 = vmatprep.subr.mxu0 0.0
      %372 = vmatpush1.msra.mxu0 0.0
      %373 = vmatprep.subr.mxu0 0.0
      %374 = vmatpush1.msra.mxu0 0.0
      %375 = vmatprep.subr.mxu0 0.0
      %376 = vmatpush1.msra.mxu0 0.0
      %377 = vmatprep.subr.mxu0 0.0
      %378 = vmatpush1.msra.mxu0 0.0
      %379 = vmatprep.subr.mxu0 0.0
      %380 = vmatpush1.msra.mxu0 0.0
      %381 = vmatprep.subr.mxu0 0.0
      %382 = vmatpush1.msra.mxu0 0.0
      %383 = vmatprep.subr.mxu0 0.0
      %384 = vmatpush1.msra.mxu0 0.0
      %385 = vmatprep.subr.mxu0 0.0
      %386 = vmatpush1.msra.mxu0 0.0
      %387 = vmatprep.subr.mxu0 0.0
      %388 = vmatpush1.msra.mxu0 0.0
      %389 = vmatprep.subr.mxu0 0.0
      %390 = vmatpush1.msra.mxu0 0.0
      %391 = vmatprep.subr.mxu0 0.0
      %392 = vmatpush1.msra.mxu0 0.0
      %393 = vmatprep.subr.mxu0 0.0
      %394 = vmatpush1.msra.mxu0 0.0
      %395 = vmatprep.subr.mxu0 0.0
      %396 = vmatpush1.msra.mxu0 0.0
      %397 = vmatprep.subr.mxu0 0.0
      %398 = vmatpush1.msra.mxu0 0.0
      %399 = vmatprep.subr.mxu0 0.0
      %400 = vmatpush1.msra.mxu0 0.0
      %401 = vmatprep.subr.mxu0 0.0
      %402 = vmatpush1.msra.mxu0 0.0
      %403 = vmatprep.subr.mxu0 0.0
      %404 = vmatpush1.msra.mxu0 0.0
      %405 = vmatprep.subr.mxu0 0.0
      %406 = vmatpush1.msra.mxu0 0.0
      %407 = vmatprep.subr.mxu0 0.0
      %408 = vmatpush1.msra.mxu0 0.0
      %409 = vmatprep.mubr.f32.mxu0 0.0
      %410 = vmatmul.mubr.f32.gmra.mrb[0].mxu0 %v343
      %v411 = vpop.f32.mrb[0].mxu0
      %v412 = vadd.f32 %v338, %v411
      %v413 = vpop.f32.mrb[0].mxu0
      %v414 = vadd.f32 %v340, %v413
      %415 = vdwg.mxu0
      %416 = vrot.lane.b32.xlu0 %v234, 15
      %v417 = vpop.permute.xlu0 %416
      %418 = vrot.lane.b32.xlu0 %v235, 15
      %v419 = vpop.permute.xlu0 %418
      %420 = vrot.lane.b32.xlu0 %v236, 15
      %v421 = vpop.permute.xlu0 %420
      %vm422 = vcmask 121856
      %v423 = vsel %vm422, %v417, %v419
      %v424 = vsel %vm422, %v419, %v421
      %v427 = vsel %vm232, %v423, 0.0
      %v428 = vsel %vm233, %v424, 0.0
      %s429 = scalar_lea.vmem %s1, 16
      %v430 = vld [vmem:[%s429] sm:$0xff]
      %v432 = vsel %vm267, %v430, 0
      %434 = vmatprep.subr.mxu0 %v428
      %435 = vmatpush1.msra.mxu0 %v427
      %436 = vmatprep.subr.mxu0 0.0
      %437 = vmatpush1.msra.mxu0 0.0
      %438 = vmatprep.subr.mxu0 0.0
      %439 = vmatpush1.msra.mxu0 0.0
      %440 = vmatprep.subr.mxu0 0.0
      %441 = vmatpush1.msra.mxu0 0.0
      %442 = vmatprep.subr.mxu0 0.0
      %443 = vmatpush1.msra.mxu0 0.0
      %444 = vmatprep.subr.mxu0 0.0
      %445 = vmatpush1.msra.mxu0 0.0
      %446 = vmatprep.subr.mxu0 0.0
      %447 = vmatpush1.msra.mxu0 0.0
      %448 = vmatprep.subr.mxu0 0.0
      %449 = vmatpush1.msra.mxu0 0.0
      %450 = vmatprep.subr.mxu0 0.0
      %451 = vmatpush1.msra.mxu0 0.0
      %452 = vmatprep.subr.mxu0 0.0
      %453 = vmatpush1.msra.mxu0 0.0
      %454 = vmatprep.subr.mxu0 0.0
      %455 = vmatpush1.msra.mxu0 0.0
      %456 = vmatprep.subr.mxu0 0.0
      %457 = vmatpush1.msra.mxu0 0.0
      %458 = vmatprep.subr.mxu0 0.0
      %459 = vmatpush1.msra.mxu0 0.0
      %460 = vmatprep.subr.mxu0 0.0
      %461 = vmatpush1.msra.mxu0 0.0
      %462 = vmatprep.subr.mxu0 0.0
      %463 = vmatpush1.msra.mxu0 0.0
      %464 = vmatprep.subr.mxu0 0.0
      %465 = vmatpush1.msra.mxu0 0.0
      %466 = vmatprep.subr.mxu0 0.0
      %467 = vmatpush1.msra.mxu0 0.0
      %468 = vmatprep.subr.mxu0 0.0
      %469 = vmatpush1.msra.mxu0 0.0
      %470 = vmatprep.subr.mxu0 0.0
      %471 = vmatpush1.msra.mxu0 0.0
      %472 = vmatprep.subr.mxu0 0.0
      %473 = vmatpush1.msra.mxu0 0.0
      %474 = vmatprep.subr.mxu0 0.0
      %475 = vmatpush1.msra.mxu0 0.0
      %476 = vmatprep.subr.mxu0 0.0
      %477 = vmatpush1.msra.mxu0 0.0
      %478 = vmatprep.subr.mxu0 0.0
      %479 = vmatpush1.msra.mxu0 0.0
      %480 = vmatprep.subr.mxu0 0.0
      %481 = vmatpush1.msra.mxu0 0.0
      %482 = vmatprep.subr.mxu0 0.0
      %483 = vmatpush1.msra.mxu0 0.0
      %484 = vmatprep.subr.mxu0 0.0
      %485 = vmatpush1.msra.mxu0 0.0
      %486 = vmatprep.subr.mxu0 0.0
      %487 = vmatpush1.msra.mxu0 0.0
      %488 = vmatprep.subr.mxu0 0.0
      %489 = vmatpush1.msra.mxu0 0.0
      %490 = vmatprep.subr.mxu0 0.0
      %491 = vmatpush1.msra.mxu0 0.0
      %492 = vmatprep.subr.mxu0 0.0
      %493 = vmatpush1.msra.mxu0 0.0
      %494 = vmatprep.subr.mxu0 0.0
      %495 = vmatpush1.msra.mxu0 0.0
      %496 = vmatprep.subr.mxu0 0.0
      %497 = vmatpush1.msra.mxu0 0.0
      %498 = vmatprep.mubr.f32.mxu0 0.0
      %499 = vmatmul.mubr.f32.gmra.mrb[0].mxu0 %v432
      %v500 = vpop.f32.mrb[0].mxu0
      %v501 = vadd.f32 0.0, %v500
      %v502 = vpop.f32.mrb[0].mxu0
      %v503 = vadd.f32 0.0, %v502
      %504 = vdwg.mxu0
      %v505 = vadd.f32 %v412, %v501
      %v506 = vadd.f32 %v414, %v503
      %507 = vrot.lane.b32.xlu0 %v234, 1
      %v508 = vpop.permute.xlu0 %507
      %509 = vrot.lane.b32.xlu0 %v235, 1
      %v510 = vpop.permute.xlu0 %509
      %511 = vrot.lane.b32.xlu0 %v236, 1
      %v512 = vpop.permute.xlu0 %511
      %vm513 = vcmask 7168
      %v514 = vsel %vm513, %v508, %v510
      %v515 = vsel %vm513, %v510, %v512
      %v518 = vsel %vm230, %v514, 0.0
      %v519 = vsel %vm231, %v515, 0.0
      %s520 = scalar_lea.vmem %s1, 24
      %v521 = vld [vmem:[%s520] sm:$0xff]
      %v523 = vsel %vm267, %v521, 0
      %525 = vmatprep.subr.mxu0 %v519
      %526 = vmatpush1.msra.mxu0 %v518
      %527 = vmatprep.subr.mxu0 0.0
      %528 = vmatpush1.msra.mxu0 0.0
      %529 = vmatprep.subr.mxu0 0.0
      %530 = vmatpush1.msra.mxu0 0.0
      %531 = vmatprep.subr.mxu0 0.0
      %532 = vmatpush1.msra.mxu0 0.0
      %533 = vmatprep.subr.mxu0 0.0
      %534 = vmatpush1.msra.mxu0 0.0
      %535 = vmatprep.subr.mxu0 0.0
      %536 = vmatpush1.msra.mxu0 0.0
      %537 = vmatprep.subr.mxu0 0.0
      %538 = vmatpush1.msra.mxu0 0.0
      %539 = vmatprep.subr.mxu0 0.0
      %540 = vmatpush1.msra.mxu0 0.0
      %541 = vmatprep.subr.mxu0 0.0
      %542 = vmatpush1.msra.mxu0 0.0
      %543 = vmatprep.subr.mxu0 0.0
      %544 = vmatpush1.msra.mxu0 0.0
      %545 = vmatprep.subr.mxu0 0.0
      %546 = vmatpush1.msra.mxu0 0.0
      %547 = vmatprep.subr.mxu0 0.0
      %548 = vmatpush1.msra.mxu0 0.0
      %549 = vmatprep.subr.mxu0 0.0
      %550 = vmatpush1.msra.mxu0 0.0
      %551 = vmatprep.subr.mxu0 0.0
      %552 = vmatpush1.msra.mxu0 0.0
      %553 = vmatprep.subr.mxu0 0.0
      %554 = vmatpush1.msra.mxu0 0.0
      %555 = vmatprep.subr.mxu0 0.0
      %556 = vmatpush1.msra.mxu0 0.0
      %557 = vmatprep.subr.mxu0 0.0
      %558 = vmatpush1.msra.mxu0 0.0
      %559 = vmatprep.subr.mxu0 0.0
      %560 = vmatpush1.msra.mxu0 0.0
      %561 = vmatprep.subr.mxu0 0.0
      %562 = vmatpush1.msra.mxu0 0.0
      %563 = vmatprep.subr.mxu0 0.0
      %564 = vmatpush1.msra.mxu0 0.0
      %565 = vmatprep.subr.mxu0 0.0
      %566 = vmatpush1.msra.mxu0 0.0
      %567 = vmatprep.subr.mxu0 0.0
      %568 = vmatpush1.msra.mxu0 0.0
      %569 = vmatprep.subr.mxu0 0.0
      %570 = vmatpush1.msra.mxu0 0.0
      %571 = vmatprep.subr.mxu0 0.0
      %572 = vmatpush1.msra.mxu0 0.0
      %573 = vmatprep.subr.mxu0 0.0
      %574 = vmatpush1.msra.mxu0 0.0
      %575 = vmatprep.subr.mxu0 0.0
      %576 = vmatpush1.msra.mxu0 0.0
      %577 = vmatprep.subr.mxu0 0.0
      %578 = vmatpush1.msra.mxu0 0.0
      %579 = vmatprep.subr.mxu0 0.0
      %580 = vmatpush1.msra.mxu0 0.0
      %581 = vmatprep.subr.mxu0 0.0
      %582 = vmatpush1.msra.mxu0 0.0
      %583 = vmatprep.subr.mxu0 0.0
      %584 = vmatpush1.msra.mxu0 0.0
      %585 = vmatprep.subr.mxu0 0.0
      %586 = vmatpush1.msra.mxu0 0.0
      %587 = vmatprep.subr.mxu0 0.0
      %588 = vmatpush1.msra.mxu0 0.0
      %589 = vmatprep.mubr.f32.mxu0 0.0
      %590 = vmatmul.mubr.f32.gmra.mrb[0].mxu0 %v523
      %v591 = vpop.f32.mrb[0].mxu0
      %v592 = vadd.f32 0.0, %v591
      %v593 = vpop.f32.mrb[0].mxu0
      %v594 = vadd.f32 0.0, %v593
      %595 = vdwg.mxu0
      %v596 = vadd.f32 %v505, %v592
      %v597 = vadd.f32 %v506, %v594
      %s598 = scalar_lea.vmem %s1, 32
      %v599 = vld [vmem:[%s598] sm:$0xff]
      %v601 = vsel %vm267, %v599, 0
      %603 = vmatprep.subr.mxu0 %v236
      %604 = vmatpush1.msra.mxu0 %v235
      %605 = vmatprep.subr.mxu0 0.0
      %606 = vmatpush1.msra.mxu0 0.0
      %607 = vmatprep.subr.mxu0 0.0
      %608 = vmatpush1.msra.mxu0 0.0
      %609 = vmatprep.subr.mxu0 0.0
      %610 = vmatpush1.msra.mxu0 0.0
      %611 = vmatprep.subr.mxu0 0.0
      %612 = vmatpush1.msra.mxu0 0.0
      %613 = vmatprep.subr.mxu0 0.0
      %614 = vmatpush1.msra.mxu0 0.0
      %615 = vmatprep.subr.mxu0 0.0
      %616 = vmatpush1.msra.mxu0 0.0
      %617 = vmatprep.subr.mxu0 0.0
      %618 = vmatpush1.msra.mxu0 0.0
      %619 = vmatprep.subr.mxu0 0.0
      %620 = vmatpush1.msra.mxu0 0.0
      %621 = vmatprep.subr.mxu0 0.0
      %622 = vmatpush1.msra.mxu0 0.0
      %623 = vmatprep.subr.mxu0 0.0
      %624 = vmatpush1.msra.mxu0 0.0
      %625 = vmatprep.subr.mxu0 0.0
      %626 = vmatpush1.msra.mxu0 0.0
      %627 = vmatprep.subr.mxu0 0.0
      %628 = vmatpush1.msra.mxu0 0.0
      %629 = vmatprep.subr.mxu0 0.0
      %630 = vmatpush1.msra.mxu0 0.0
      %631 = vmatprep.subr.mxu0 0.0
      %632 = vmatpush1.msra.mxu0 0.0
      %633 = vmatprep.subr.mxu0 0.0
      %634 = vmatpush1.msra.mxu0 0.0
      %635 = vmatprep.subr.mxu0 0.0
      %636 = vmatpush1.msra.mxu0 0.0
      %637 = vmatprep.subr.mxu0 0.0
      %638 = vmatpush1.msra.mxu0 0.0
      %639 = vmatprep.subr.mxu0 0.0
      %640 = vmatpush1.msra.mxu0 0.0
      %641 = vmatprep.subr.mxu0 0.0
      %642 = vmatpush1.msra.mxu0 0.0
      %643 = vmatprep.subr.mxu0 0.0
      %644 = vmatpush1.msra.mxu0 0.0
      %645 = vmatprep.subr.mxu0 0.0
      %646 = vmatpush1.msra.mxu0 0.0
      %647 = vmatprep.subr.mxu0 0.0
      %648 = vmatpush1.msra.mxu0 0.0
      %649 = vmatprep.subr.mxu0 0.0
      %650 = vmatpush1.msra.mxu0 0.0
      %651 = vmatprep.subr.mxu0 0.0
      %652 = vmatpush1.msra.mxu0 0.0
      %653 = vmatprep.subr.mxu0 0.0
      %654 = vmatpush1.msra.mxu0 0.0
      %655 = vmatprep.subr.mxu0 0.0
      %656 = vmatpush1.msra.mxu0 0.0
      %657 = vmatprep.subr.mxu0 0.0
      %658 = vmatpush1.msra.mxu0 0.0
      %659 = vmatprep.subr.mxu0 0.0
      %660 = vmatpush1.msra.mxu0 0.0
      %661 = vmatprep.subr.mxu0 0.0
      %662 = vmatpush1.msra.mxu0 0.0
      %663 = vmatprep.subr.mxu0 0.0
      %664 = vmatpush1.msra.mxu0 0.0
      %665 = vmatprep.subr.mxu0 0.0
      %666 = vmatpush1.msra.mxu0 0.0
      %667 = vmatprep.mubr.f32.mxu0 0.0
      %668 = vmatmul.mubr.f32.gmra.mrb[0].mxu0 %v601
      %v669 = vpop.f32.mrb[0].mxu0
      %v670 = vadd.f32 0.0, %v669
      %v671 = vpop.f32.mrb[0].mxu0
      %v672 = vadd.f32 0.0, %v671
      %673 = vdwg.mxu0
      %v674 = vadd.f32 %v596, %v670
      %v675 = vadd.f32 %v597, %v672
      %v676 = vld [vmem:[#allocation2 + $0x8] sm:$0xff]
      %v677 = vld [vmem:[#allocation2 + $0x10] sm:$0xff]
      %v678 = vld [vmem:[#allocation2 + $0x18] sm:$0xff]
      %682 = vrot.lane.b32.xlu0 %v676, 127
      %v683 = vpop.permute.xlu0 %682
      %684 = vrot.lane.b32.xlu0 %v677, 127
      %v685 = vpop.permute.xlu0 %684
      %686 = vrot.lane.b32.xlu0 %v678, 127
      %v687 = vpop.permute.xlu0 %686
      %vm688 = vcmask 1039360
      %v689 = vsel %vm688, %v683, %v685
      %v690 = vsel %vm688, %v685, %v687
      %v693 = vsel %vm232, %v689, 0.0
      %v694 = vsel %vm233, %v690, 0.0
      %s695 = scalar_lea.vmem %s1, 40
      %v696 = vld [vmem:[%s695] sm:$0xff]
      %v698 = vsel %vm267, %v696, 0
      %700 = vmatprep.subr.mxu0 %v694
      %701 = vmatpush1.msra.mxu0 %v693
      %702 = vmatprep.subr.mxu0 0.0
      %703 = vmatpush1.msra.mxu0 0.0
      %704 = vmatprep.subr.mxu0 0.0
      %705 = vmatpush1.msra.mxu0 0.0
      %706 = vmatprep.subr.mxu0 0.0
      %707 = vmatpush1.msra.mxu0 0.0
      %708 = vmatprep.subr.mxu0 0.0
      %709 = vmatpush1.msra.mxu0 0.0
      %710 = vmatprep.subr.mxu0 0.0
      %711 = vmatpush1.msra.mxu0 0.0
      %712 = vmatprep.subr.mxu0 0.0
      %713 = vmatpush1.msra.mxu0 0.0
      %714 = vmatprep.subr.mxu0 0.0
      %715 = vmatpush1.msra.mxu0 0.0
      %716 = vmatprep.subr.mxu0 0.0
      %717 = vmatpush1.msra.mxu0 0.0
      %718 = vmatprep.subr.mxu0 0.0
      %719 = vmatpush1.msra.mxu0 0.0
      %720 = vmatprep.subr.mxu0 0.0
      %721 = vmatpush1.msra.mxu0 0.0
      %722 = vmatprep.subr.mxu0 0.0
      %723 = vmatpush1.msra.mxu0 0.0
      %724 = vmatprep.subr.mxu0 0.0
      %725 = vmatpush1.msra.mxu0 0.0
      %726 = vmatprep.subr.mxu0 0.0
      %727 = vmatpush1.msra.mxu0 0.0
      %728 = vmatprep.subr.mxu0 0.0
      %729 = vmatpush1.msra.mxu0 0.0
      %730 = vmatprep.subr.mxu0 0.0
      %731 = vmatpush1.msra.mxu0 0.0
      %732 = vmatprep.subr.mxu0 0.0
      %733 = vmatpush1.msra.mxu0 0.0
      %734 = vmatprep.subr.mxu0 0.0
      %735 = vmatpush1.msra.mxu0 0.0
      %736 = vmatprep.subr.mxu0 0.0
      %737 = vmatpush1.msra.mxu0 0.0
      %738 = vmatprep.subr.mxu0 0.0
      %739 = vmatpush1.msra.mxu0 0.0
      %740 = vmatprep.subr.mxu0 0.0
      %741 = vmatpush1.msra.mxu0 0.0
      %742 = vmatprep.subr.mxu0 0.0
      %743 = vmatpush1.msra.mxu0 0.0
      %744 = vmatprep.subr.mxu0 0.0
      %745 = vmatpush1.msra.mxu0 0.0
      %746 = vmatprep.subr.mxu0 0.0
      %747 = vmatpush1.msra.mxu0 0.0
      %748 = vmatprep.subr.mxu0 0.0
      %749 = vmatpush1.msra.mxu0 0.0
      %750 = vmatprep.subr.mxu0 0.0
      %751 = vmatpush1.msra.mxu0 0.0
      %752 = vmatprep.subr.mxu0 0.0
      %753 = vmatpush1.msra.mxu0 0.0
      %754 = vmatprep.subr.mxu0 0.0
      %755 = vmatpush1.msra.mxu0 0.0
      %756 = vmatprep.subr.mxu0 0.0
      %757 = vmatpush1.msra.mxu0 0.0
      %758 = vmatprep.subr.mxu0 0.0
      %759 = vmatpush1.msra.mxu0 0.0
      %760 = vmatprep.subr.mxu0 0.0
      %761 = vmatpush1.msra.mxu0 0.0
      %762 = vmatprep.subr.mxu0 0.0
      %763 = vmatpush1.msra.mxu0 0.0
      %764 = vmatprep.mubr.f32.mxu0 0.0
      %765 = vmatmul.mubr.f32.gmra.mrb[0].mxu0 %v698
      %v766 = vpop.f32.mrb[0].mxu0
      %v767 = vadd.f32 0.0, %v766
      %v768 = vpop.f32.mrb[0].mxu0
      %v769 = vadd.f32 0.0, %v768
      %770 = vdwg.mxu0
      %v771 = vadd.f32 %v674, %v767
      %v772 = vadd.f32 %v675, %v769
      %773 = vrot.lane.b32.xlu0 %v676, 113
      %v774 = vpop.permute.xlu0 %773
      %775 = vrot.lane.b32.xlu0 %v677, 113
      %v776 = vpop.permute.xlu0 %775
      %777 = vrot.lane.b32.xlu0 %v678, 113
      %v778 = vpop.permute.xlu0 %777
      %vm779 = vcmask 924672
      %v780 = vsel %vm779, %v774, %v776
      %v781 = vsel %vm779, %v776, %v778
      %v784 = vsel %vm230, %v780, 0.0
      %v785 = vsel %vm231, %v781, 0.0
      %s786 = scalar_lea.vmem %s1, 48
      %v787 = vld [vmem:[%s786] sm:$0xff]
      %v789 = vsel %vm267, %v787, 0
      %791 = vmatprep.subr.mxu0 %v785
      %792 = vmatpush1.msra.mxu0 %v784
      %793 = vmatprep.subr.mxu0 0.0
      %794 = vmatpush1.msra.mxu0 0.0
      %795 = vmatprep.subr.mxu0 0.0
      %796 = vmatpush1.msra.mxu0 0.0
      %797 = vmatprep.subr.mxu0 0.0
      %798 = vmatpush1.msra.mxu0 0.0
      %799 = vmatprep.subr.mxu0 0.0
      %800 = vmatpush1.msra.mxu0 0.0
      %801 = vmatprep.subr.mxu0 0.0
      %802 = vmatpush1.msra.mxu0 0.0
      %803 = vmatprep.subr.mxu0 0.0
      %804 = vmatpush1.msra.mxu0 0.0
      %805 = vmatprep.subr.mxu0 0.0
      %806 = vmatpush1.msra.mxu0 0.0
      %807 = vmatprep.subr.mxu0 0.0
      %808 = vmatpush1.msra.mxu0 0.0
      %809 = vmatprep.subr.mxu0 0.0
      %810 = vmatpush1.msra.mxu0 0.0
      %811 = vmatprep.subr.mxu0 0.0
      %812 = vmatpush1.msra.mxu0 0.0
      %813 = vmatprep.subr.mxu0 0.0
      %814 = vmatpush1.msra.mxu0 0.0
      %815 = vmatprep.subr.mxu0 0.0
      %816 = vmatpush1.msra.mxu0 0.0
      %817 = vmatprep.subr.mxu0 0.0
      %818 = vmatpush1.msra.mxu0 0.0
      %819 = vmatprep.subr.mxu0 0.0
      %820 = vmatpush1.msra.mxu0 0.0
      %821 = vmatprep.subr.mxu0 0.0
      %822 = vmatpush1.msra.mxu0 0.0
      %823 = vmatprep.subr.mxu0 0.0
      %824 = vmatpush1.msra.mxu0 0.0
      %825 = vmatprep.subr.mxu0 0.0
      %826 = vmatpush1.msra.mxu0 0.0
      %827 = vmatprep.subr.mxu0 0.0
      %828 = vmatpush1.msra.mxu0 0.0
      %829 = vmatprep.subr.mxu0 0.0
      %830 = vmatpush1.msra.mxu0 0.0
      %831 = vmatprep.subr.mxu0 0.0
      %832 = vmatpush1.msra.mxu0 0.0
      %833 = vmatprep.subr.mxu0 0.0
      %834 = vmatpush1.msra.mxu0 0.0
      %835 = vmatprep.subr.mxu0 0.0
      %836 = vmatpush1.msra.mxu0 0.0
      %837 = vmatprep.subr.mxu0 0.0
      %838 = vmatpush1.msra.mxu0 0.0
      %839 = vmatprep.subr.mxu0 0.0
      %840 = vmatpush1.msra.mxu0 0.0
      %841 = vmatprep.subr.mxu0 0.0
      %842 = vmatpush1.msra.mxu0 0.0
      %843 = vmatprep.subr.mxu0 0.0
      %844 = vmatpush1.msra.mxu0 0.0
      %845 = vmatprep.subr.mxu0 0.0
      %846 = vmatpush1.msra.mxu0 0.0
      %847 = vmatprep.subr.mxu0 0.0
      %848 = vmatpush1.msra.mxu0 0.0
      %849 = vmatprep.subr.mxu0 0.0
      %850 = vmatpush1.msra.mxu0 0.0
      %851 = vmatprep.subr.mxu0 0.0
      %852 = vmatpush1.msra.mxu0 0.0
      %853 = vmatprep.subr.mxu0 0.0
      %854 = vmatpush1.msra.mxu0 0.0
      %855 = vmatprep.mubr.f32.mxu0 0.0
      %856 = vmatmul.mubr.f32.gmra.mrb[0].mxu0 %v789
      %v857 = vpop.f32.mrb[0].mxu0
      %v858 = vadd.f32 0.0, %v857
      %v859 = vpop.f32.mrb[0].mxu0
      %v860 = vadd.f32 0.0, %v859
      %861 = vdwg.mxu0
      %v862 = vadd.f32 %v771, %v858
      %v863 = vadd.f32 %v772, %v860
      %s864 = scalar_lea.vmem %s1, 56
      %v865 = vld [vmem:[%s864] sm:$0xff]
      %866 = vrot.lane.b32.xlu0 %v676, 112
      %v867 = vpop.permute.xlu0 %866
      %868 = vrot.lane.b32.xlu0 %v677, 112
      %v869 = vpop.permute.xlu0 %868
      %870 = vrot.lane.b32.xlu0 %v678, 112
      %v871 = vpop.permute.xlu0 %870
      %vm872 = vcmask 916480
      %v873 = vsel %vm872, %v867, %v869
      %v874 = vsel %vm872, %v869, %v871
      %v878 = vsel %vm267, %v865, 0
      %880 = vmatprep.subr.mxu0 %v874
      %881 = vmatpush1.msra.mxu0 %v873
      %882 = vmatprep.subr.mxu0 0.0
      %883 = vmatpush1.msra.mxu0 0.0
      %884 = vmatprep.subr.mxu0 0.0
      %885 = vmatpush1.msra.mxu0 0.0
      %886 = vmatprep.subr.mxu0 0.0
      %887 = vmatpush1.msra.mxu0 0.0
      %888 = vmatprep.subr.mxu0 0.0
      %889 = vmatpush1.msra.mxu0 0.0
      %890 = vmatprep.subr.mxu0 0.0
      %891 = vmatpush1.msra.mxu0 0.0
      %892 = vmatprep.subr.mxu0 0.0
      %893 = vmatpush1.msra.mxu0 0.0
      %894 = vmatprep.subr.mxu0 0.0
      %895 = vmatpush1.msra.mxu0 0.0
      %896 = vmatprep.subr.mxu0 0.0
      %897 = vmatpush1.msra.mxu0 0.0
      %898 = vmatprep.subr.mxu0 0.0
      %899 = vmatpush1.msra.mxu0 0.0
      %900 = vmatprep.subr.mxu0 0.0
      %901 = vmatpush1.msra.mxu0 0.0
      %902 = vmatprep.subr.mxu0 0.0
      %903 = vmatpush1.msra.mxu0 0.0
      %904 = vmatprep.subr.mxu0 0.0
      %905 = vmatpush1.msra.mxu0 0.0
      %906 = vmatprep.subr.mxu0 0.0
      %907 = vmatpush1.msra.mxu0 0.0
      %908 = vmatprep.subr.mxu0 0.0
      %909 = vmatpush1.msra.mxu0 0.0
      %910 = vmatprep.subr.mxu0 0.0
      %911 = vmatpush1.msra.mxu0 0.0
      %912 = vmatprep.subr.mxu0 0.0
      %913 = vmatpush1.msra.mxu0 0.0
      %914 = vmatprep.subr.mxu0 0.0
      %915 = vmatpush1.msra.mxu0 0.0
      %916 = vmatprep.subr.mxu0 0.0
      %917 = vmatpush1.msra.mxu0 0.0
      %918 = vmatprep.subr.mxu0 0.0
      %919 = vmatpush1.msra.mxu0 0.0
      %920 = vmatprep.subr.mxu0 0.0
      %921 = vmatpush1.msra.mxu0 0.0
      %922 = vmatprep.subr.mxu0 0.0
      %923 = vmatpush1.msra.mxu0 0.0
      %924 = vmatprep.subr.mxu0 0.0
      %925 = vmatpush1.msra.mxu0 0.0
      %926 = vmatprep.subr.mxu0 0.0
      %927 = vmatpush1.msra.mxu0 0.0
      %928 = vmatprep.subr.mxu0 0.0
      %929 = vmatpush1.msra.mxu0 0.0
      %930 = vmatprep.subr.mxu0 0.0
      %931 = vmatpush1.msra.mxu0 0.0
      %932 = vmatprep.subr.mxu0 0.0
      %933 = vmatpush1.msra.mxu0 0.0
      %934 = vmatprep.subr.mxu0 0.0
      %935 = vmatpush1.msra.mxu0 0.0
      %936 = vmatprep.subr.mxu0 0.0
      %937 = vmatpush1.msra.mxu0 0.0
      %938 = vmatprep.subr.mxu0 0.0
      %939 = vmatpush1.msra.mxu0 0.0
      %940 = vmatprep.subr.mxu0 0.0
      %941 = vmatpush1.msra.mxu0 0.0
      %942 = vmatprep.subr.mxu0 0.0
      %943 = vmatpush1.msra.mxu0 0.0
      %944 = vmatprep.mubr.f32.mxu0 0.0
      %945 = vmatmul.mubr.f32.gmra.mrb[0].mxu0 %v878
      %v946 = vpop.f32.mrb[0].mxu0
      %v947 = vadd.f32 0.0, %v946
      %v948 = vpop.f32.mrb[0].mxu0
      %v949 = vadd.f32 0.0, %v948
      %950 = vdwg.mxu0
      %v951 = vadd.f32 %v862, %v947
      %v952 = vadd.f32 %v863, %v949
      %953 = vrot.lane.b32.xlu0 %v676, 111
      %v954 = vpop.permute.xlu0 %953
      %955 = vrot.lane.b32.xlu0 %v677, 111
      %v956 = vpop.permute.xlu0 %955
      %957 = vrot.lane.b32.xlu0 %v678, 111
      %v958 = vpop.permute.xlu0 %957
      %vm959 = vcmask 908288
      %v960 = vsel %vm959, %v954, %v956
      %v961 = vsel %vm959, %v956, %v958
      %v964 = vsel %vm232, %v960, 0.0
      %v965 = vsel %vm233, %v961, 0.0
      %s966 = scalar_lea.vmem %s1, 64
      %v967 = vld [vmem:[%s966] sm:$0xff]
      %v969 = vsel %vm267, %v967, 0
      %971 = vmatprep.subr.mxu0 %v965
      %972 = vmatpush1.msra.mxu0 %v964
      %973 = vmatprep.subr.mxu0 0.0
      %974 = vmatpush1.msra.mxu0 0.0
      %975 = vmatprep.subr.mxu0 0.0
      %976 = vmatpush1.msra.mxu0 0.0
      %977 = vmatprep.subr.mxu0 0.0
      %978 = vmatpush1.msra.mxu0 0.0
      %979 = vmatprep.subr.mxu0 0.0
      %980 = vmatpush1.msra.mxu0 0.0
      %981 = vmatprep.subr.mxu0 0.0
      %982 = vmatpush1.msra.mxu0 0.0
      %983 = vmatprep.subr.mxu0 0.0
      %984 = vmatpush1.msra.mxu0 0.0
      %985 = vmatprep.subr.mxu0 0.0
      %986 = vmatpush1.msra.mxu0 0.0
      %987 = vmatprep.subr.mxu0 0.0
      %988 = vmatpush1.msra.mxu0 0.0
      %989 = vmatprep.subr.mxu0 0.0
      %990 = vmatpush1.msra.mxu0 0.0
      %991 = vmatprep.subr.mxu0 0.0
      %992 = vmatpush1.msra.mxu0 0.0
      %993 = vmatprep.subr.mxu0 0.0
      %994 = vmatpush1.msra.mxu0 0.0
      %995 = vmatprep.subr.mxu0 0.0
      %996 = vmatpush1.msra.mxu0 0.0
      %997 = vmatprep.subr.mxu0 0.0
      %998 = vmatpush1.msra.mxu0 0.0
      %999 = vmatprep.subr.mxu0 0.0
      %1000 = vmatpush1.msra.mxu0 0.0
      %1001 = vmatprep.subr.mxu0 0.0
      %1002 = vmatpush1.msra.mxu0 0.0
      %1003 = vmatprep.subr.mxu0 0.0
      %1004 = vmatpush1.msra.mxu0 0.0
      %1005 = vmatprep.subr.mxu0 0.0
      %1006 = vmatpush1.msra.mxu0 0.0
      %1007 = vmatprep.subr.mxu0 0.0
      %1008 = vmatpush1.msra.mxu0 0.0
      %1009 = vmatprep.subr.mxu0 0.0
      %1010 = vmatpush1.msra.mxu0 0.0
      %1011 = vmatprep.subr.mxu0 0.0
      %1012 = vmatpush1.msra.mxu0 0.0
      %1013 = vmatprep.subr.mxu0 0.0
      %1014 = vmatpush1.msra.mxu0 0.0
      %1015 = vmatprep.subr.mxu0 0.0
      %1016 = vmatpush1.msra.mxu0 0.0
      %1017 = vmatprep.subr.mxu0 0.0
      %1018 = vmatpush1.msra.mxu0 0.0
      %1019 = vmatprep.subr.mxu0 0.0
      %1020 = vmatpush1.msra.mxu0 0.0
      %1021 = vmatprep.subr.mxu0 0.0
      %1022 = vmatpush1.msra.mxu0 0.0
      %1023 = vmatprep.subr.mxu0 0.0
      %1024 = vmatpush1.msra.mxu0 0.0
      %1025 = vmatprep.subr.mxu0 0.0
      %1026 = vmatpush1.msra.mxu0 0.0
      %1027 = vmatprep.subr.mxu0 0.0
      %1028 = vmatpush1.msra.mxu0 0.0
      %1029 = vmatprep.subr.mxu0 0.0
      %1030 = vmatpush1.msra.mxu0 0.0
      %1031 = vmatprep.subr.mxu0 0.0
      %1032 = vmatpush1.msra.mxu0 0.0
      %1033 = vmatprep.subr.mxu0 0.0
      %1034 = vmatpush1.msra.mxu0 0.0
      %1035 = vmatprep.mubr.f32.mxu0 0.0
      %1036 = vmatmul.mubr.f32.gmra.mrb[0].mxu0 %v969
      %v1037 = vpop.f32.mrb[0].mxu0
      %v1038 = vadd.f32 0.0, %v1037
      %v1039 = vpop.f32.mrb[0].mxu0
      %v1040 = vadd.f32 0.0, %v1039
      %1041 = vdwg.mxu0
      %v1042 = vadd.f32 %v951, %v1038
      %v1043 = vadd.f32 %v952, %v1040
      %1044 = vst [vmem:[%s192] sm:$0xff] %v1042
      %1045 = vst [vmem:[%s192 + $0x8] sm:$0xff] %v1043
      %v1046 = vadd.f32 %v1042, %v1043
      %1047 = vadd.xlane.f32.xlu0 %v1046
      %v1048 = vpop.xlane.xlu0 %1047
      %v1049 = vmul.f32 %v1042, %v1042
      %v1050 = vmul.f32 %v1043, %v1043
      %v1051 = vadd.f32 %v1049, %v1050
      %1052 = vadd.xlane.f32.xlu0 %v1051
      %v1053 = vpop.xlane.xlu0 %1052
      // Predicated region
      $region33: #{basic_block_pallas.3} parent=27 // pred_check
        %p1054 = pneg %p193
      $region34: #{basic_block_pallas.3} parent=27 // pred_check_branch
        %1056 = sbr.rel (%p1054) target = $region36
      $region35: #{basic_block_pallas.3} parent=27 // pred_region
        %1057 = vst.msk [vmem:[%s3] sm:$0xff] %vm513, %v1048
        %1058 = vst.msk [vmem:[%s4] sm:$0xff] %vm513, %v1053
      $region36: #{basic_block_pallas.3} parent=27 // pred_fallthru
        _
      %p1059 = scmp.gt.s32.totalorder %s16, 0
      // Predicated region
      $region37: #{basic_block_pallas.3} parent=27 // pred_check
        %p1060 = pneg %p1059
      $region38: #{basic_block_pallas.3} parent=27 // pred_check_branch
        %1062 = sbr.rel (%p1060) target = $region40
      $region39: #{basic_block_pallas.3} parent=27 // pred_region
        %v1063 = vld [vmem:[%s3] sm:$0xff]
        %v1064 = vadd.f32 %v1063, %v1048
        %1065 = vst.msk [vmem:[%s3] sm:$0xff] %vm513, %v1064
        %v1066 = vld [vmem:[%s4] sm:$0xff]
        %v1067 = vadd.f32 %v1066, %v1053
        %1068 = vst.msk [vmem:[%s4] sm:$0xff] %vm513, %v1067
      $region40: #{basic_block_pallas.3} parent=27 // pred_fallthru
        _
      %p1069 = scmp.lt.s32.totalorder %s16, 1
      %s1070 = scalar_select %p1069, %s16, 1
      %s1071 = smul.addr %s1070, 2
      %s1072 = smul.addr %s1071, 8
      %s1073 = scalar_lea.vmem %s2, %s1072
      // Predicated region
      $region41: #{basic_block_pallas.3} parent=27 // pred_check
        %p1074 = pneg %p81
      $region42: #{basic_block_pallas.3} parent=27 // pred_check_branch
        %1076 = sbr.rel (%p1074) target = $region44
      $region43: #{basic_block_pallas.3} parent=27 // pred_region
        _
      $region44: #{basic_block_pallas.3} parent=27 // pred_fallthru
        _
      // Predicated region
      $region45: #{basic_block_pallas.3} parent=27 // pred_check
        %p1077 = pneg %p102
      $region46: #{basic_block_pallas.3} parent=27 // pred_check_branch
        %1079 = sbr.rel (%p1077) target = $region48
      $region47: #{basic_block_pallas.3} parent=27 // pred_region
        _
      $region48: #{basic_block_pallas.3} parent=27 // pred_fallthru
        _
      // Predicated region
      $region49: #{basic_block_pallas.3} parent=27 // pred_check
        %p1080 = pneg %p123
      $region50: #{basic_block_pallas.3} parent=27 // pred_check_branch
        %1082 = sbr.rel (%p1080) target = $region52
      $region51: #{basic_block_pallas.3} parent=27 // pred_region
        _
      $region52: #{basic_block_pallas.3} parent=27 // pred_fallthru
        _
      // Predicated region
      $region53: #{basic_block_pallas.3} parent=27 // pred_check
        %p1083 = pneg %p102
      $region54: #{basic_block_pallas.3} parent=27 // pred_check_branch
        %1085 = sbr.rel (%p1083) target = $region56
      $region55: #{basic_block_pallas.3} parent=27 // pred_region
        _
      $region56: #{basic_block_pallas.3} parent=27 // pred_fallthru
        _
      // Predicated region
      $region57: #{basic_block_pallas.3} parent=27 // pred_check
        %p1086 = pneg %p123
      $region58: #{basic_block_pallas.3} parent=27 // pred_check_branch
        %1088 = sbr.rel (%p1086) target = $region60
      $region59: #{basic_block_pallas.3} parent=27 // pred_region
        _
      $region60: #{basic_block_pallas.3} parent=27 // pred_fallthru
        _
    $region28: #{basic_block_pallas.3} parent=5 // pred_fallthru
      _
    %p1089 = scmp.le.s32.totalorder 2, %s11
    // Predicated region
    $region61: #{basic_block_pallas.3} parent=5 // pred_check
      %p1090 = pneg %p1089
    $region62: #{basic_block_pallas.3} parent=5 // pred_check_branch
      %1092 = sbr.rel (%p1090) target = $region64
    $region63: #{basic_block_pallas.3} parent=5 // pred_region
      %s1093 = ssub.s32 %s11, 2
      // Predicated region
      $region65: #{basic_block_pallas.3} parent=63 // pred_check
        %p1094 = pneg %p87
      $region66: #{basic_block_pallas.3} parent=63 // pred_check_branch
        %1096 = sbr.rel (%p1094) target = $region68
      $region67: #{basic_block_pallas.3} parent=63 // pred_region
        %p1097 = scmp.lt.s32.totalorder %s17, 1
        %s1098 = scalar_select %p1097, %s17, 1
        %s1099 = smul.addr %s1098, 2
        %s1100 = smul.addr %s1099, 8
        %s1101 = scalar_lea.vmem %s2, %s1100
      $region68: #{basic_block_pallas.3} parent=63 // pred_fallthru
        _
    $region64: #{basic_block_pallas.3} parent=5 // pred_fallthru
      _
  $region6: #{basic_block_pallas.3} parent=0 // loop_footer
    %s15 = sadd.s32 1, %s11
  $region7: #{basic_block_pallas.3} parent=0 // loop_footer_branch
    %10 = sbr.rel target = $region3
  $region8: #{basic_block_pallas.3} parent=0 // loop_exit
    _

// kernel: basic_block_pallas.4
$region0: #{basic_block_pallas.4}
  #allocation0 [shape = 'u32[]', space=smem, size = 0x4, offset = 0x4, fixed_abs, tag = 'smem constant byte address 0x4 - core index']
  #allocation1 [shape = 'u32[144,128]{1,0:T(1,128)}', space=vmem, size = 0x12000, scoped, tag = 'internal scratch']
  #allocation2 [shape = 'f32[8,512]{1,0:T(8,128)}', space=vmem, size = 0x4000, scoped, tag = 'scratch operand']
  %s0 = inlined_call_operand.vmem [shape: f32[8,1], index: 0, kind: input, shape index: {}]
  %s1 = inlined_call_operand.vmem [shape: f32[8,1], index: 1, kind: input, shape index: {}]
  %s2 = inlined_call_operand.vmem [shape: f32[2,8,256], index: 2, kind: input, shape index: {}]
  %s3 = inlined_call_operand.vmem [shape: f32[9,8,8], index: 3, kind: input, shape index: {}]
  %s4 = inlined_call_operand.vmem [shape: f32[2,8,256], index: 4, kind: output, shape index: {0}]
  %s5 = inlined_call_operand.vmem [shape: f32[8,1], index: 5, kind: output, shape index: {1}]
  %s6 = inlined_call_operand.vmem [shape: f32[8,1], index: 6, kind: output, shape index: {2}]
  %7 = xla_tuple %s4, %s5, %s6
  %s8 = sld [smem:[#allocation0]]
  $region77: #{basic_block_pallas.4} parent=0
    _
  %s10 = ssub.s32 1, %s8
  %s11 = scalar_select 0, %s10, %s8
  loop: start=0, step=1, limit=4
  $region2: #{basic_block_pallas.4} parent=0 // loop_pre_header
    _
  $region3: #{basic_block_pallas.4} parent=0 // loop_header
    %s13 = sphi 0, %s17
    %p14 = scmp.ge.s32.totalorder %s13, 4
    %s21 = sphi 0, %s21
    %s23 = sphi 0, %s21
    %s24 = sphi 0, %s23
    %s38 = sphi 0, %s24
    %s42 = sphi 0, %s42
    %s44 = sphi 0, %s42
    %s45 = sphi 0, %s44
    %s59 = sphi 0, %s45
    %s65 = sphi 0, %s67
    %s68 = sphi 0, %s65
    %s69 = sphi 0, %s68
    %s85 = sphi 0, %s69
    %s89 = sphi 0, %s89
    %s91 = sphi 0, %s89
    %s92 = sphi 0, %s91
    %s106 = sphi 0, %s92
    %s112 = sphi 0, %s114
    %s115 = sphi 0, %s112
    %s116 = sphi 0, %s115
    %s132 = sphi 0, %s116
    %s136 = sphi 0, %s136
    %s138 = sphi 0, %s136
    %s139 = sphi 0, %s138
    %s153 = sphi 0, %s139
    %s157 = sphi 0, %s157
    %s159 = sphi 0, %s157
    %s160 = sphi 0, %s159
    %s174 = sphi 0, %s160
  $region4: #{basic_block_pallas.4} parent=0 // loop_header_branch
    %16 = sbr.rel (%p14) target = $region8
  $region5: #{basic_block_pallas.4} parent=0 // loop_body
    %s18 = ssub.s32 %s13, 1
    %s19 = ssub.s32 %s13, 2
    %s20 = sadd.s32 %s13, 1
    %s22 = sadd.s32 %s21, 1
    %p25 = scmp.eq.s32.totalorder %s13, 1
    %p26 = scmp.ne.s32.totalorder %s21, %s23
    %p27 = scmp.eq.s32.totalorder %s13, 0
    %p28 = por %p26, %p27
    %p29 = scmp.ne.s32.totalorder %s21, %s23
    %p30 = scmp.eq.s32.totalorder %s18, 1
    %p31 = por %p29, %p30
    %p32 = scmp.ne.s32.totalorder %s23, %s24
    %p33 = scmp.eq.s32.totalorder %s18, 0
    %p34 = por %p32, %p33
    %p35 = scmp.ne.s32.totalorder %s23, %s24
    %p36 = scmp.eq.s32.totalorder %s19, 1
    %p37 = por %p35, %p36
    %p39 = scmp.ne.s32.totalorder %s24, %s38
    %p40 = scmp.eq.s32.totalorder %s19, 0
    %p41 = por %p39, %p40
    %s43 = sadd.s32 %s42, 1
    %p46 = scmp.eq.s32.totalorder %s13, 1
    %p47 = scmp.ne.s32.totalorder %s42, %s44
    %p48 = scmp.eq.s32.totalorder %s13, 0
    %p49 = por %p47, %p48
    %p50 = scmp.ne.s32.totalorder %s42, %s44
    %p51 = scmp.eq.s32.totalorder %s18, 1
    %p52 = por %p50, %p51
    %p53 = scmp.ne.s32.totalorder %s44, %s45
    %p54 = scmp.eq.s32.totalorder %s18, 0
    %p55 = por %p53, %p54
    %p56 = scmp.ne.s32.totalorder %s44, %s45
    %p57 = scmp.eq.s32.totalorder %s19, 1
    %p58 = por %p56, %p57
    %p60 = scmp.ne.s32.totalorder %s45, %s59
    %p61 = scmp.eq.s32.totalorder %s19, 0
    %p62 = por %p60, %p61
    %s63 = ssub.s32 %s13, %s20
    %p64 = scmp.eq.s32.totalorder %s63, 0
    %s66 = sadd.s32 %s65, 1
    %s67 = scalar_select %p64, %s65, %s66
    %p70 = pneg %p64
    %p71 = scmp.eq.s32.totalorder %s13, 1
    %p72 = por %p70, %p71
    %p73 = scmp.ne.s32.totalorder %s65, %s68
    %p74 = scmp.eq.s32.totalorder %s13, 0
    %p75 = por %p73, %p74
    %p76 = scmp.ne.s32.totalorder %s65, %s68
    %p77 = scmp.eq.s32.totalorder %s18, 1
    %p78 = por %p76, %p77
    %p79 = scmp.ne.s32.totalorder %s68, %s69
    %p80 = scmp.eq.s32.totalorder %s18, 0
    %p81 = por %p79, %p80
    %p82 = scmp.ne.s32.totalorder %s68, %s69
    %p83 = scmp.eq.s32.totalorder %s19, 1
    %p84 = por %p82, %p83
    %p86 = scmp.ne.s32.totalorder %s69, %s85
    %p87 = scmp.eq.s32.totalorder %s19, 0
    %p88 = por %p86, %p87
    %s90 = sadd.s32 %s89, 1
    %p93 = scmp.eq.s32.totalorder %s13, 1
    %p94 = scmp.ne.s32.totalorder %s89, %s91
    %p95 = scmp.eq.s32.totalorder %s13, 0
    %p96 = por %p94, %p95
    %p97 = scmp.ne.s32.totalorder %s89, %s91
    %p98 = scmp.eq.s32.totalorder %s18, 1
    %p99 = por %p97, %p98
    %p100 = scmp.ne.s32.totalorder %s91, %s92
    %p101 = scmp.eq.s32.totalorder %s18, 0
    %p102 = por %p100, %p101
    %p103 = scmp.ne.s32.totalorder %s91, %s92
    %p104 = scmp.eq.s32.totalorder %s19, 1
    %p105 = por %p103, %p104
    %p107 = scmp.ne.s32.totalorder %s92, %s106
    %p108 = scmp.eq.s32.totalorder %s19, 0
    %p109 = por %p107, %p108
    %s110 = ssub.s32 %s13, %s20
    %p111 = scmp.eq.s32.totalorder %s110, 0
    %s113 = sadd.s32 %s112, 1
    %s114 = scalar_select %p111, %s112, %s113
    %p117 = pneg %p111
    %p118 = scmp.eq.s32.totalorder %s13, 1
    %p119 = por %p117, %p118
    %p120 = scmp.ne.s32.totalorder %s112, %s115
    %p121 = scmp.eq.s32.totalorder %s13, 0
    %p122 = por %p120, %p121
    %p123 = scmp.ne.s32.totalorder %s112, %s115
    %p124 = scmp.eq.s32.totalorder %s18, 1
    %p125 = por %p123, %p124
    %p126 = scmp.ne.s32.totalorder %s115, %s116
    %p127 = scmp.eq.s32.totalorder %s18, 0
    %p128 = por %p126, %p127
    %p129 = scmp.ne.s32.totalorder %s115, %s116
    %p130 = scmp.eq.s32.totalorder %s19, 1
    %p131 = por %p129, %p130
    %p133 = scmp.ne.s32.totalorder %s116, %s132
    %p134 = scmp.eq.s32.totalorder %s19, 0
    %p135 = por %p133, %p134
    %s137 = sadd.s32 %s136, 1
    %p140 = scmp.eq.s32.totalorder %s13, 1
    %p141 = scmp.ne.s32.totalorder %s136, %s138
    %p142 = scmp.eq.s32.totalorder %s13, 0
    %p143 = por %p141, %p142
    %p144 = scmp.ne.s32.totalorder %s136, %s138
    %p145 = scmp.eq.s32.totalorder %s18, 1
    %p146 = por %p144, %p145
    %p147 = scmp.ne.s32.totalorder %s138, %s139
    %p148 = scmp.eq.s32.totalorder %s18, 0
    %p149 = por %p147, %p148
    %p150 = scmp.ne.s32.totalorder %s138, %s139
    %p151 = scmp.eq.s32.totalorder %s19, 1
    %p152 = por %p150, %p151
    %p154 = scmp.ne.s32.totalorder %s139, %s153
    %p155 = scmp.eq.s32.totalorder %s19, 0
    %p156 = por %p154, %p155
    %s158 = sadd.s32 %s157, 1
    %p161 = scmp.eq.s32.totalorder %s13, 1
    %p162 = scmp.ne.s32.totalorder %s157, %s159
    %p163 = scmp.eq.s32.totalorder %s13, 0
    %p164 = por %p162, %p163
    %p165 = scmp.ne.s32.totalorder %s157, %s159
    %p166 = scmp.eq.s32.totalorder %s18, 1
    %p167 = por %p165, %p166
    %p168 = scmp.ne.s32.totalorder %s159, %s160
    %p169 = scmp.eq.s32.totalorder %s18, 0
    %p170 = por %p168, %p169
    %p171 = scmp.ne.s32.totalorder %s159, %s160
    %p172 = scmp.eq.s32.totalorder %s19, 1
    %p173 = por %p171, %p172
    %p175 = scmp.ne.s32.totalorder %s160, %s174
    %p176 = scmp.eq.s32.totalorder %s19, 0
    %p177 = por %p175, %p176
    %p178 = scmp.le.s32.totalorder 1, %s13
    %p179 = scmp.lt.s32.totalorder %s13, 3
    %p180 = pnand %p178, %p179
    %p181 = pneg %p180
    // Predicated region
    $region9: #{basic_block_pallas.4} parent=5 // pred_check
      _
    $region10: #{basic_block_pallas.4} parent=5 // pred_check_branch
      %183 = sbr.rel (%p180) target = $region12
    $region11: #{basic_block_pallas.4} parent=5 // pred_region
      %s184 = ssub.s32 %s13, 1
      // Predicated region
      $region13: #{basic_block_pallas.4} parent=11 // pred_check
        %p185 = pneg %p34
      $region14: #{basic_block_pallas.4} parent=11 // pred_check_branch
        %187 = sbr.rel (%p185) target = $region16
      $region15: #{basic_block_pallas.4} parent=11 // pred_region
        _
      $region16: #{basic_block_pallas.4} parent=11 // pred_fallthru
        _
      // Predicated region
      $region17: #{basic_block_pallas.4} parent=11 // pred_check
        %p188 = pneg %p55
      $region18: #{basic_block_pallas.4} parent=11 // pred_check_branch
        %190 = sbr.rel (%p188) target = $region20
      $region19: #{basic_block_pallas.4} parent=11 // pred_region
        _
      $region20: #{basic_block_pallas.4} parent=11 // pred_fallthru
        _
      // Predicated region
      $region21: #{basic_block_pallas.4} parent=11 // pred_check
        %p191 = pneg %p102
      $region22: #{basic_block_pallas.4} parent=11 // pred_check_branch
        %193 = sbr.rel (%p191) target = $region24
      $region23: #{basic_block_pallas.4} parent=11 // pred_region
        _
      $region24: #{basic_block_pallas.4} parent=11 // pred_fallthru
        _
    $region12: #{basic_block_pallas.4} parent=5 // pred_fallthru
      _
    %p194 = scmp.lt.s32.totalorder %s13, 2
    // Predicated region
    $region25: #{basic_block_pallas.4} parent=5 // pred_check
      %p195 = pneg %p194
    $region26: #{basic_block_pallas.4} parent=5 // pred_check_branch
      %197 = sbr.rel (%p195) target = $region28
    $region27: #{basic_block_pallas.4} parent=5 // pred_region
      // Predicated region
      $region29: #{basic_block_pallas.4} parent=27 // pred_check
        %p198 = pneg %p75
      $region30: #{basic_block_pallas.4} parent=27 // pred_check_branch
        %200 = sbr.rel (%p198) target = $region32
      $region31: #{basic_block_pallas.4} parent=27 // pred_region
        %p201 = scmp.lt.s32.totalorder %s13, 1
        %s202 = scalar_select %p201, %s13, 1
        %s203 = smul.addr %s202, 2
        %s204 = smul.addr %s203, 8
        %s205 = scalar_lea.vmem %s2, %s204
      $region32: #{basic_block_pallas.4} parent=27 // pred_fallthru
        _
    $region28: #{basic_block_pallas.4} parent=5 // pred_fallthru
      _
    %p206 = scmp.le.s32.totalorder 1, %s13
    %p207 = scmp.lt.s32.totalorder %s13, 3
    %p208 = pnand %p206, %p207
    %p209 = pneg %p208
    // Predicated region
    $region33: #{basic_block_pallas.4} parent=5 // pred_check
      _
    $region34: #{basic_block_pallas.4} parent=5 // pred_check_branch
      %211 = sbr.rel (%p208) target = $region36
    $region35: #{basic_block_pallas.4} parent=5 // pred_region
      %s212 = ssub.s32 %s13, 1
      %p213 = pneg %p34
      %p214 = pneg %p31
      %p215 = pneg %p55
      %p216 = pneg %p52
      %p217 = scmp.lt.s32.totalorder %s18, 1
      %s218 = scalar_select %p217, %s18, 1
      %s219 = smul.addr %s218, 2
      %s220 = smul.addr %s219, 8
      %s221 = scalar_lea.vmem %s2, %s220
      %p222 = pneg %p81
      %p223 = pneg %p78
      %p224 = pneg %p102
      %p225 = pneg %p99
      %p226 = pneg %p128
      %p227 = pneg %p125
      %p228 = scmp.lt.s32.totalorder %s18, 1
      %s229 = scalar_select %p228, %s18, 1
      %s230 = smul.addr %s229, 2
      %s231 = smul.addr %s230, 8
      %s232 = scalar_lea.vmem %s4, %s231
      %p233 = pneg %p149
      %p234 = pneg %p146
      %p235 = pneg %p170
      %p236 = pneg %p167
      %p237 = scmp.lt.s32.totalorder %s18, 1
      %s238 = scalar_select %p237, %s18, 1
      %s239 = smul.addr %s238, 2
      %s240 = smul.addr %s239, 8
      %s241 = scalar_lea.vmem %s2, %s240
      %p242 = scmp.lt.s32.totalorder %s18, 1
      %s243 = scalar_select %p242, %s18, 1
      %s244 = smul.addr %s243, 2
      %s245 = smul.addr %s244, 8
      %s246 = scalar_lea.vmem %s4, %s245
      %p247 = scmp.eq.s32.totalorder %s18, 0
      // Predicated region
      $region37: #{basic_block_pallas.4} parent=35 // pred_check
        %p248 = pneg %p247
      $region38: #{basic_block_pallas.4} parent=35 // pred_check_branch
        %250 = sbr.rel (%p248) target = $region40
      $region39: #{basic_block_pallas.4} parent=35 // pred_region
        %251 = vst [vmem:[#allocation2] sm:$0xff] 0.0
        %252 = vst [vmem:[#allocation2 + $0x18] sm:$0xff] 0.0
      $region40: #{basic_block_pallas.4} parent=35 // pred_fallthru
        _
      %v253 = vld [vmem:[%s241] sm:$0xff]
      %v254 = vld [vmem:[%s241 + $0x8] sm:$0xff]
      %v255 = vld [vmem:[%s0] sm:$0xff]
      %257 = vset.pattern.permute.xlu0 0
      %258 = vperm.xlu0 %257, %v255
      %v259 = vpop.permute.xlu0 %258
      %v261 = vmul.f32 %v253, %v259
      %v262 = vmul.f32 %v254, %v259
      %v263 = vld [vmem:[%s1] sm:$0xff]
      %265 = vset.pattern.permute.xlu0 0
      %266 = vperm.xlu0 %265, %v263
      %v267 = vpop.permute.xlu0 %266
      %v269 = vadd.f32 %v261, %v267
      %v270 = vadd.f32 %v262, %v267
      %v271 = vmax.f32 %v269, 0.0
      %v272 = vmax.f32 %v270, 0.0
      %273 = vst [vmem:[#allocation2 + $0x8] sm:$0xff] %v271
      %274 = vst [vmem:[#allocation2 + $0x10] sm:$0xff] %v272
      %v275 = vlaneseq
      %v276 = vand.u32 %v275, 127
      %v277 = vadd.s32 %v276, 128
      %vm278 = vcmp.lt.s32.totalorder %v276, 0
      %v279 = vsub.s32 0, %v276
      %v280 = vsel %vm278, %v279, %v276
      %v281 = vshrl.u32 %v280, 4
      %v282 = vand.u32 %v280, 15
      %v283 = vsub.s32 0, %v282
      %v284 = vsel %vm278, %v283, %v282
      %vm285 = vcmp.lt.s32.totalorder %v277, 0
      %v286 = vsub.s32 0, %v277
      %v287 = vsel %vm285, %v286, %v277
      %v288 = vshrl.u32 %v287, 4
      %v289 = vand.u32 %v287, 15
      %v290 = vsub.s32 0, %v289
      %v291 = vsel %vm285, %v290, %v289
      %vm292 = vcmp.ne.s32.totalorder %v284, 0
      %vm293 = vcmp.ne.s32.totalorder %v291, 0
      %vm294 = vcmp.lt.s32.totalorder %v284, 0
      %vm295 = vcmp.lt.s32.totalorder %v291, 0
      %vm296 = vmand %vm294, %vm292
      %vm297 = vmand %vm295, %vm293
      %v298 = vadd.s32 %v284, 16
      %v299 = vadd.s32 %v291, 16
      %v300 = vsel %vm296, %v298, %v284
      %v301 = vsel %vm297, %v299, %v291
      %vm302 = vcmp.ne.s32.totalorder %v300, 0
      %vm303 = vcmp.ne.s32.totalorder %v301, 0
      %vm304 = vcmp.ne.s32.totalorder %v300, 15
      %vm305 = vcmp.ne.s32.totalorder %v301, 15
      %v306 = vld [vmem:[#allocation2] sm:$0xff]
      %v307 = vld [vmem:[#allocation2 + $0x8] sm:$0xff]
      %v308 = vld [vmem:[#allocation2 + $0x10] sm:$0xff]
      %312 = vrot.lane.b32.xlu0 %v306, 17
      %v313 = vpop.permute.xlu0 %312
      %314 = vrot.lane.b32.xlu0 %v307, 17
      %v315 = vpop.permute.xlu0 %314
      %316 = vrot.lane.b32.xlu0 %v308, 17
      %v317 = vpop.permute.xlu0 %316
      %vm318 = vcmask 138240
      %v319 = vsel %vm318, %v313, %v315
      %v320 = vsel %vm318, %v315, %v317
      %v323 = vsel %vm302, %v319, 0.0
      %v324 = vsel %vm303, %v320, 0.0
      %v325 = vld [vmem:[%s3] sm:$0xff]
      %s326 = scalar_lea.vmem %s3, 8
      %v327 = vld [vmem:[%s326] sm:$0xff]
      %328 = vrot.lane.b32.xlu0 %v306, 16
      %v329 = vpop.permute.xlu0 %328
      %330 = vrot.lane.b32.xlu0 %v307, 16
      %v331 = vpop.permute.xlu0 %330
      %332 = vrot.lane.b32.xlu0 %v308, 16
      %v333 = vpop.permute.xlu0 %332
      %vm334 = vcmask 130048
      %v335 = vsel %vm334, %v329, %v331
      %v336 = vsel %vm334, %v331, %v333
      %vm339 = vcmask 64512
      %v341 = vsel %vm339, %v327, 0
      %343 = vmatprep.subr.mxu0 %v336
      %344 = vmatpush1.msra.mxu0 %v335
      %345 = vmatprep.subr.mxu0 0.0
      %346 = vmatpush1.msra.mxu0 0.0
      %347 = vmatprep.subr.mxu0 0.0
      %348 = vmatpush1.msra.mxu0 0.0
      %349 = vmatprep.subr.mxu0 0.0
      %350 = vmatpush1.msra.mxu0 0.0
      %351 = vmatprep.subr.mxu0 0.0
      %352 = vmatpush1.msra.mxu0 0.0
      %353 = vmatprep.subr.mxu0 0.0
      %354 = vmatpush1.msra.mxu0 0.0
      %355 = vmatprep.subr.mxu0 0.0
      %356 = vmatpush1.msra.mxu0 0.0
      %357 = vmatprep.subr.mxu0 0.0
      %358 = vmatpush1.msra.mxu0 0.0
      %359 = vmatprep.subr.mxu0 0.0
      %360 = vmatpush1.msra.mxu0 0.0
      %361 = vmatprep.subr.mxu0 0.0
      %362 = vmatpush1.msra.mxu0 0.0
      %363 = vmatprep.subr.mxu0 0.0
      %364 = vmatpush1.msra.mxu0 0.0
      %365 = vmatprep.subr.mxu0 0.0
      %366 = vmatpush1.msra.mxu0 0.0
      %367 = vmatprep.subr.mxu0 0.0
      %368 = vmatpush1.msra.mxu0 0.0
      %369 = vmatprep.subr.mxu0 0.0
      %370 = vmatpush1.msra.mxu0 0.0
      %371 = vmatprep.subr.mxu0 0.0
      %372 = vmatpush1.msra.mxu0 0.0
      %373 = vmatprep.subr.mxu0 0.0
      %374 = vmatpush1.msra.mxu0 0.0
      %375 = vmatprep.subr.mxu0 0.0
      %376 = vmatpush1.msra.mxu0 0.0
      %377 = vmatprep.subr.mxu0 0.0
      %378 = vmatpush1.msra.mxu0 0.0
      %379 = vmatprep.subr.mxu0 0.0
      %380 = vmatpush1.msra.mxu0 0.0
      %381 = vmatprep.subr.mxu0 0.0
      %382 = vmatpush1.msra.mxu0 0.0
      %383 = vmatprep.subr.mxu0 0.0
      %384 = vmatpush1.msra.mxu0 0.0
      %385 = vmatprep.subr.mxu0 0.0
      %386 = vmatpush1.msra.mxu0 0.0
      %387 = vmatprep.subr.mxu0 0.0
      %388 = vmatpush1.msra.mxu0 0.0
      %389 = vmatprep.subr.mxu0 0.0
      %390 = vmatpush1.msra.mxu0 0.0
      %391 = vmatprep.subr.mxu0 0.0
      %392 = vmatpush1.msra.mxu0 0.0
      %393 = vmatprep.subr.mxu0 0.0
      %394 = vmatpush1.msra.mxu0 0.0
      %395 = vmatprep.subr.mxu0 0.0
      %396 = vmatpush1.msra.mxu0 0.0
      %397 = vmatprep.subr.mxu0 0.0
      %398 = vmatpush1.msra.mxu0 0.0
      %399 = vmatprep.subr.mxu0 0.0
      %400 = vmatpush1.msra.mxu0 0.0
      %401 = vmatprep.subr.mxu0 0.0
      %402 = vmatpush1.msra.mxu0 0.0
      %403 = vmatprep.subr.mxu0 0.0
      %404 = vmatpush1.msra.mxu0 0.0
      %405 = vmatprep.subr.mxu0 0.0
      %406 = vmatpush1.msra.mxu0 0.0
      %407 = vmatprep.mubr.f32.mxu0 0.0
      %408 = vmatmul.mubr.f32.gmra.mrb[0].mxu0 %v341
      %v409 = vpop.f32.mrb[0].mxu0
      %v410 = vadd.f32 0.0, %v409
      %v411 = vpop.f32.mrb[0].mxu0
      %v412 = vadd.f32 0.0, %v411
      %413 = vdwg.mxu0
      %v415 = vsel %vm339, %v325, 0
      %417 = vmatprep.subr.mxu0 %v324
      %418 = vmatpush1.msra.mxu0 %v323
      %419 = vmatprep.subr.mxu0 0.0
      %420 = vmatpush1.msra.mxu0 0.0
      %421 = vmatprep.subr.mxu0 0.0
      %422 = vmatpush1.msra.mxu0 0.0
      %423 = vmatprep.subr.mxu0 0.0
      %424 = vmatpush1.msra.mxu0 0.0
      %425 = vmatprep.subr.mxu0 0.0
      %426 = vmatpush1.msra.mxu0 0.0
      %427 = vmatprep.subr.mxu0 0.0
      %428 = vmatpush1.msra.mxu0 0.0
      %429 = vmatprep.subr.mxu0 0.0
      %430 = vmatpush1.msra.mxu0 0.0
      %431 = vmatprep.subr.mxu0 0.0
      %432 = vmatpush1.msra.mxu0 0.0
      %433 = vmatprep.subr.mxu0 0.0
      %434 = vmatpush1.msra.mxu0 0.0
      %435 = vmatprep.subr.mxu0 0.0
      %436 = vmatpush1.msra.mxu0 0.0
      %437 = vmatprep.subr.mxu0 0.0
      %438 = vmatpush1.msra.mxu0 0.0
      %439 = vmatprep.subr.mxu0 0.0
      %440 = vmatpush1.msra.mxu0 0.0
      %441 = vmatprep.subr.mxu0 0.0
      %442 = vmatpush1.msra.mxu0 0.0
      %443 = vmatprep.subr.mxu0 0.0
      %444 = vmatpush1.msra.mxu0 0.0
      %445 = vmatprep.subr.mxu0 0.0
      %446 = vmatpush1.msra.mxu0 0.0
      %447 = vmatprep.subr.mxu0 0.0
      %448 = vmatpush1.msra.mxu0 0.0
      %449 = vmatprep.subr.mxu0 0.0
      %450 = vmatpush1.msra.mxu0 0.0
      %451 = vmatprep.subr.mxu0 0.0
      %452 = vmatpush1.msra.mxu0 0.0
      %453 = vmatprep.subr.mxu0 0.0
      %454 = vmatpush1.msra.mxu0 0.0
      %455 = vmatprep.subr.mxu0 0.0
      %456 = vmatpush1.msra.mxu0 0.0
      %457 = vmatprep.subr.mxu0 0.0
      %458 = vmatpush1.msra.mxu0 0.0
      %459 = vmatprep.subr.mxu0 0.0
      %460 = vmatpush1.msra.mxu0 0.0
      %461 = vmatprep.subr.mxu0 0.0
      %462 = vmatpush1.msra.mxu0 0.0
      %463 = vmatprep.subr.mxu0 0.0
      %464 = vmatpush1.msra.mxu0 0.0
      %465 = vmatprep.subr.mxu0 0.0
      %466 = vmatpush1.msra.mxu0 0.0
      %467 = vmatprep.subr.mxu0 0.0
      %468 = vmatpush1.msra.mxu0 0.0
      %469 = vmatprep.subr.mxu0 0.0
      %470 = vmatpush1.msra.mxu0 0.0
      %471 = vmatprep.subr.mxu0 0.0
      %472 = vmatpush1.msra.mxu0 0.0
      %473 = vmatprep.subr.mxu0 0.0
      %474 = vmatpush1.msra.mxu0 0.0
      %475 = vmatprep.subr.mxu0 0.0
      %476 = vmatpush1.msra.mxu0 0.0
      %477 = vmatprep.subr.mxu0 0.0
      %478 = vmatpush1.msra.mxu0 0.0
      %479 = vmatprep.subr.mxu0 0.0
      %480 = vmatpush1.msra.mxu0 0.0
      %481 = vmatprep.mubr.f32.mxu0 0.0
      %482 = vmatmul.mubr.f32.gmra.mrb[0].mxu0 %v415
      %v483 = vpop.f32.mrb[0].mxu0
      %v484 = vadd.f32 %v410, %v483
      %v485 = vpop.f32.mrb[0].mxu0
      %v486 = vadd.f32 %v412, %v485
      %487 = vdwg.mxu0
      %488 = vrot.lane.b32.xlu0 %v306, 15
      %v489 = vpop.permute.xlu0 %488
      %490 = vrot.lane.b32.xlu0 %v307, 15
      %v491 = vpop.permute.xlu0 %490
      %492 = vrot.lane.b32.xlu0 %v308, 15
      %v493 = vpop.permute.xlu0 %492
      %vm494 = vcmask 121856
      %v495 = vsel %vm494, %v489, %v491
      %v496 = vsel %vm494, %v491, %v493
      %v499 = vsel %vm304, %v495, 0.0
      %v500 = vsel %vm305, %v496, 0.0
      %s501 = scalar_lea.vmem %s3, 16
      %v502 = vld [vmem:[%s501] sm:$0xff]
      %v504 = vsel %vm339, %v502, 0
      %506 = vmatprep.subr.mxu0 %v500
      %507 = vmatpush1.msra.mxu0 %v499
      %508 = vmatprep.subr.mxu0 0.0
      %509 = vmatpush1.msra.mxu0 0.0
      %510 = vmatprep.subr.mxu0 0.0
      %511 = vmatpush1.msra.mxu0 0.0
      %512 = vmatprep.subr.mxu0 0.0
      %513 = vmatpush1.msra.mxu0 0.0
      %514 = vmatprep.subr.mxu0 0.0
      %515 = vmatpush1.msra.mxu0 0.0
      %516 = vmatprep.subr.mxu0 0.0
      %517 = vmatpush1.msra.mxu0 0.0
      %518 = vmatprep.subr.mxu0 0.0
      %519 = vmatpush1.msra.mxu0 0.0
      %520 = vmatprep.subr.mxu0 0.0
      %521 = vmatpush1.msra.mxu0 0.0
      %522 = vmatprep.subr.mxu0 0.0
      %523 = vmatpush1.msra.mxu0 0.0
      %524 = vmatprep.subr.mxu0 0.0
      %525 = vmatpush1.msra.mxu0 0.0
      %526 = vmatprep.subr.mxu0 0.0
      %527 = vmatpush1.msra.mxu0 0.0
      %528 = vmatprep.subr.mxu0 0.0
      %529 = vmatpush1.msra.mxu0 0.0
      %530 = vmatprep.subr.mxu0 0.0
      %531 = vmatpush1.msra.mxu0 0.0
      %532 = vmatprep.subr.mxu0 0.0
      %533 = vmatpush1.msra.mxu0 0.0
      %534 = vmatprep.subr.mxu0 0.0
      %535 = vmatpush1.msra.mxu0 0.0
      %536 = vmatprep.subr.mxu0 0.0
      %537 = vmatpush1.msra.mxu0 0.0
      %538 = vmatprep.subr.mxu0 0.0
      %539 = vmatpush1.msra.mxu0 0.0
      %540 = vmatprep.subr.mxu0 0.0
      %541 = vmatpush1.msra.mxu0 0.0
      %542 = vmatprep.subr.mxu0 0.0
      %543 = vmatpush1.msra.mxu0 0.0
      %544 = vmatprep.subr.mxu0 0.0
      %545 = vmatpush1.msra.mxu0 0.0
      %546 = vmatprep.subr.mxu0 0.0
      %547 = vmatpush1.msra.mxu0 0.0
      %548 = vmatprep.subr.mxu0 0.0
      %549 = vmatpush1.msra.mxu0 0.0
      %550 = vmatprep.subr.mxu0 0.0
      %551 = vmatpush1.msra.mxu0 0.0
      %552 = vmatprep.subr.mxu0 0.0
      %553 = vmatpush1.msra.mxu0 0.0
      %554 = vmatprep.subr.mxu0 0.0
      %555 = vmatpush1.msra.mxu0 0.0
      %556 = vmatprep.subr.mxu0 0.0
      %557 = vmatpush1.msra.mxu0 0.0
      %558 = vmatprep.subr.mxu0 0.0
      %559 = vmatpush1.msra.mxu0 0.0
      %560 = vmatprep.subr.mxu0 0.0
      %561 = vmatpush1.msra.mxu0 0.0
      %562 = vmatprep.subr.mxu0 0.0
      %563 = vmatpush1.msra.mxu0 0.0
      %564 = vmatprep.subr.mxu0 0.0
      %565 = vmatpush1.msra.mxu0 0.0
      %566 = vmatprep.subr.mxu0 0.0
      %567 = vmatpush1.msra.mxu0 0.0
      %568 = vmatprep.subr.mxu0 0.0
      %569 = vmatpush1.msra.mxu0 0.0
      %570 = vmatprep.mubr.f32.mxu0 0.0
      %571 = vmatmul.mubr.f32.gmra.mrb[0].mxu0 %v504
      %v572 = vpop.f32.mrb[0].mxu0
      %v573 = vadd.f32 0.0, %v572
      %v574 = vpop.f32.mrb[0].mxu0
      %v575 = vadd.f32 0.0, %v574
      %576 = vdwg.mxu0
      %v577 = vadd.f32 %v484, %v573
      %v578 = vadd.f32 %v486, %v575
      %579 = vrot.lane.b32.xlu0 %v306, 1
      %v580 = vpop.permute.xlu0 %579
      %581 = vrot.lane.b32.xlu0 %v307, 1
      %v582 = vpop.permute.xlu0 %581
      %583 = vrot.lane.b32.xlu0 %v308, 1
      %v584 = vpop.permute.xlu0 %583
      %vm585 = vcmask 7168
      %v586 = vsel %vm585, %v580, %v582
      %v587 = vsel %vm585, %v582, %v584
      %v590 = vsel %vm302, %v586, 0.0
      %v591 = vsel %vm303, %v587, 0.0
      %s592 = scalar_lea.vmem %s3, 24
      %v593 = vld [vmem:[%s592] sm:$0xff]
      %v595 = vsel %vm339, %v593, 0
      %597 = vmatprep.subr.mxu0 %v591
      %598 = vmatpush1.msra.mxu0 %v590
      %599 = vmatprep.subr.mxu0 0.0
      %600 = vmatpush1.msra.mxu0 0.0
      %601 = vmatprep.subr.mxu0 0.0
      %602 = vmatpush1.msra.mxu0 0.0
      %603 = vmatprep.subr.mxu0 0.0
      %604 = vmatpush1.msra.mxu0 0.0
      %605 = vmatprep.subr.mxu0 0.0
      %606 = vmatpush1.msra.mxu0 0.0
      %607 = vmatprep.subr.mxu0 0.0
      %608 = vmatpush1.msra.mxu0 0.0
      %609 = vmatprep.subr.mxu0 0.0
      %610 = vmatpush1.msra.mxu0 0.0
      %611 = vmatprep.subr.mxu0 0.0
      %612 = vmatpush1.msra.mxu0 0.0
      %613 = vmatprep.subr.mxu0 0.0
      %614 = vmatpush1.msra.mxu0 0.0
      %615 = vmatprep.subr.mxu0 0.0
      %616 = vmatpush1.msra.mxu0 0.0
      %617 = vmatprep.subr.mxu0 0.0
      %618 = vmatpush1.msra.mxu0 0.0
      %619 = vmatprep.subr.mxu0 0.0
      %620 = vmatpush1.msra.mxu0 0.0
      %621 = vmatprep.subr.mxu0 0.0
      %622 = vmatpush1.msra.mxu0 0.0
      %623 = vmatprep.subr.mxu0 0.0
      %624 = vmatpush1.msra.mxu0 0.0
      %625 = vmatprep.subr.mxu0 0.0
      %626 = vmatpush1.msra.mxu0 0.0
      %627 = vmatprep.subr.mxu0 0.0
      %628 = vmatpush1.msra.mxu0 0.0
      %629 = vmatprep.subr.mxu0 0.0
      %630 = vmatpush1.msra.mxu0 0.0
      %631 = vmatprep.subr.mxu0 0.0
      %632 = vmatpush1.msra.mxu0 0.0
      %633 = vmatprep.subr.mxu0 0.0
      %634 = vmatpush1.msra.mxu0 0.0
      %635 = vmatprep.subr.mxu0 0.0
      %636 = vmatpush1.msra.mxu0 0.0
      %637 = vmatprep.subr.mxu0 0.0
      %638 = vmatpush1.msra.mxu0 0.0
      %639 = vmatprep.subr.mxu0 0.0
      %640 = vmatpush1.msra.mxu0 0.0
      %641 = vmatprep.subr.mxu0 0.0
      %642 = vmatpush1.msra.mxu0 0.0
      %643 = vmatprep.subr.mxu0 0.0
      %644 = vmatpush1.msra.mxu0 0.0
      %645 = vmatprep.subr.mxu0 0.0
      %646 = vmatpush1.msra.mxu0 0.0
      %647 = vmatprep.subr.mxu0 0.0
      %648 = vmatpush1.msra.mxu0 0.0
      %649 = vmatprep.subr.mxu0 0.0
      %650 = vmatpush1.msra.mxu0 0.0
      %651 = vmatprep.subr.mxu0 0.0
      %652 = vmatpush1.msra.mxu0 0.0
      %653 = vmatprep.subr.mxu0 0.0
      %654 = vmatpush1.msra.mxu0 0.0
      %655 = vmatprep.subr.mxu0 0.0
      %656 = vmatpush1.msra.mxu0 0.0
      %657 = vmatprep.subr.mxu0 0.0
      %658 = vmatpush1.msra.mxu0 0.0
      %659 = vmatprep.subr.mxu0 0.0
      %660 = vmatpush1.msra.mxu0 0.0
      %661 = vmatprep.mubr.f32.mxu0 0.0
      %662 = vmatmul.mubr.f32.gmra.mrb[0].mxu0 %v595
      %v663 = vpop.f32.mrb[0].mxu0
      %v664 = vadd.f32 0.0, %v663
      %v665 = vpop.f32.mrb[0].mxu0
      %v666 = vadd.f32 0.0, %v665
      %667 = vdwg.mxu0
      %v668 = vadd.f32 %v577, %v664
      %v669 = vadd.f32 %v578, %v666
      %s670 = scalar_lea.vmem %s3, 32
      %v671 = vld [vmem:[%s670] sm:$0xff]
      %v673 = vsel %vm339, %v671, 0
      %675 = vmatprep.subr.mxu0 %v308
      %676 = vmatpush1.msra.mxu0 %v307
      %677 = vmatprep.subr.mxu0 0.0
      %678 = vmatpush1.msra.mxu0 0.0
      %679 = vmatprep.subr.mxu0 0.0
      %680 = vmatpush1.msra.mxu0 0.0
      %681 = vmatprep.subr.mxu0 0.0
      %682 = vmatpush1.msra.mxu0 0.0
      %683 = vmatprep.subr.mxu0 0.0
      %684 = vmatpush1.msra.mxu0 0.0
      %685 = vmatprep.subr.mxu0 0.0
      %686 = vmatpush1.msra.mxu0 0.0
      %687 = vmatprep.subr.mxu0 0.0
      %688 = vmatpush1.msra.mxu0 0.0
      %689 = vmatprep.subr.mxu0 0.0
      %690 = vmatpush1.msra.mxu0 0.0
      %691 = vmatprep.subr.mxu0 0.0
      %692 = vmatpush1.msra.mxu0 0.0
      %693 = vmatprep.subr.mxu0 0.0
      %694 = vmatpush1.msra.mxu0 0.0
      %695 = vmatprep.subr.mxu0 0.0
      %696 = vmatpush1.msra.mxu0 0.0
      %697 = vmatprep.subr.mxu0 0.0
      %698 = vmatpush1.msra.mxu0 0.0
      %699 = vmatprep.subr.mxu0 0.0
      %700 = vmatpush1.msra.mxu0 0.0
      %701 = vmatprep.subr.mxu0 0.0
      %702 = vmatpush1.msra.mxu0 0.0
      %703 = vmatprep.subr.mxu0 0.0
      %704 = vmatpush1.msra.mxu0 0.0
      %705 = vmatprep.subr.mxu0 0.0
      %706 = vmatpush1.msra.mxu0 0.0
      %707 = vmatprep.subr.mxu0 0.0
      %708 = vmatpush1.msra.mxu0 0.0
      %709 = vmatprep.subr.mxu0 0.0
      %710 = vmatpush1.msra.mxu0 0.0
      %711 = vmatprep.subr.mxu0 0.0
      %712 = vmatpush1.msra.mxu0 0.0
      %713 = vmatprep.subr.mxu0 0.0
      %714 = vmatpush1.msra.mxu0 0.0
      %715 = vmatprep.subr.mxu0 0.0
      %716 = vmatpush1.msra.mxu0 0.0
      %717 = vmatprep.subr.mxu0 0.0
      %718 = vmatpush1.msra.mxu0 0.0
      %719 = vmatprep.subr.mxu0 0.0
      %720 = vmatpush1.msra.mxu0 0.0
      %721 = vmatprep.subr.mxu0 0.0
      %722 = vmatpush1.msra.mxu0 0.0
      %723 = vmatprep.subr.mxu0 0.0
      %724 = vmatpush1.msra.mxu0 0.0
      %725 = vmatprep.subr.mxu0 0.0
      %726 = vmatpush1.msra.mxu0 0.0
      %727 = vmatprep.subr.mxu0 0.0
      %728 = vmatpush1.msra.mxu0 0.0
      %729 = vmatprep.subr.mxu0 0.0
      %730 = vmatpush1.msra.mxu0 0.0
      %731 = vmatprep.subr.mxu0 0.0
      %732 = vmatpush1.msra.mxu0 0.0
      %733 = vmatprep.subr.mxu0 0.0
      %734 = vmatpush1.msra.mxu0 0.0
      %735 = vmatprep.subr.mxu0 0.0
      %736 = vmatpush1.msra.mxu0 0.0
      %737 = vmatprep.subr.mxu0 0.0
      %738 = vmatpush1.msra.mxu0 0.0
      %739 = vmatprep.mubr.f32.mxu0 0.0
      %740 = vmatmul.mubr.f32.gmra.mrb[0].mxu0 %v673
      %v741 = vpop.f32.mrb[0].mxu0
      %v742 = vadd.f32 0.0, %v741
      %v743 = vpop.f32.mrb[0].mxu0
      %v744 = vadd.f32 0.0, %v743
      %745 = vdwg.mxu0
      %v746 = vadd.f32 %v668, %v742
      %v747 = vadd.f32 %v669, %v744
      %v748 = vld [vmem:[#allocation2 + $0x8] sm:$0xff]
      %v749 = vld [vmem:[#allocation2 + $0x10] sm:$0xff]
      %v750 = vld [vmem:[#allocation2 + $0x18] sm:$0xff]
      %754 = vrot.lane.b32.xlu0 %v748, 127
      %v755 = vpop.permute.xlu0 %754
      %756 = vrot.lane.b32.xlu0 %v749, 127
      %v757 = vpop.permute.xlu0 %756
      %758 = vrot.lane.b32.xlu0 %v750, 127
      %v759 = vpop.permute.xlu0 %758
      %vm760 = vcmask 1039360
      %v761 = vsel %vm760, %v755, %v757
      %v762 = vsel %vm760, %v757, %v759
      %v765 = vsel %vm304, %v761, 0.0
      %v766 = vsel %vm305, %v762, 0.0
      %s767 = scalar_lea.vmem %s3, 40
      %v768 = vld [vmem:[%s767] sm:$0xff]
      %v770 = vsel %vm339, %v768, 0
      %772 = vmatprep.subr.mxu0 %v766
      %773 = vmatpush1.msra.mxu0 %v765
      %774 = vmatprep.subr.mxu0 0.0
      %775 = vmatpush1.msra.mxu0 0.0
      %776 = vmatprep.subr.mxu0 0.0
      %777 = vmatpush1.msra.mxu0 0.0
      %778 = vmatprep.subr.mxu0 0.0
      %779 = vmatpush1.msra.mxu0 0.0
      %780 = vmatprep.subr.mxu0 0.0
      %781 = vmatpush1.msra.mxu0 0.0
      %782 = vmatprep.subr.mxu0 0.0
      %783 = vmatpush1.msra.mxu0 0.0
      %784 = vmatprep.subr.mxu0 0.0
      %785 = vmatpush1.msra.mxu0 0.0
      %786 = vmatprep.subr.mxu0 0.0
      %787 = vmatpush1.msra.mxu0 0.0
      %788 = vmatprep.subr.mxu0 0.0
      %789 = vmatpush1.msra.mxu0 0.0
      %790 = vmatprep.subr.mxu0 0.0
      %791 = vmatpush1.msra.mxu0 0.0
      %792 = vmatprep.subr.mxu0 0.0
      %793 = vmatpush1.msra.mxu0 0.0
      %794 = vmatprep.subr.mxu0 0.0
      %795 = vmatpush1.msra.mxu0 0.0
      %796 = vmatprep.subr.mxu0 0.0
      %797 = vmatpush1.msra.mxu0 0.0
      %798 = vmatprep.subr.mxu0 0.0
      %799 = vmatpush1.msra.mxu0 0.0
      %800 = vmatprep.subr.mxu0 0.0
      %801 = vmatpush1.msra.mxu0 0.0
      %802 = vmatprep.subr.mxu0 0.0
      %803 = vmatpush1.msra.mxu0 0.0
      %804 = vmatprep.subr.mxu0 0.0
      %805 = vmatpush1.msra.mxu0 0.0
      %806 = vmatprep.subr.mxu0 0.0
      %807 = vmatpush1.msra.mxu0 0.0
      %808 = vmatprep.subr.mxu0 0.0
      %809 = vmatpush1.msra.mxu0 0.0
      %810 = vmatprep.subr.mxu0 0.0
      %811 = vmatpush1.msra.mxu0 0.0
      %812 = vmatprep.subr.mxu0 0.0
      %813 = vmatpush1.msra.mxu0 0.0
      %814 = vmatprep.subr.mxu0 0.0
      %815 = vmatpush1.msra.mxu0 0.0
      %816 = vmatprep.subr.mxu0 0.0
      %817 = vmatpush1.msra.mxu0 0.0
      %818 = vmatprep.subr.mxu0 0.0
      %819 = vmatpush1.msra.mxu0 0.0
      %820 = vmatprep.subr.mxu0 0.0
      %821 = vmatpush1.msra.mxu0 0.0
      %822 = vmatprep.subr.mxu0 0.0
      %823 = vmatpush1.msra.mxu0 0.0
      %824 = vmatprep.subr.mxu0 0.0
      %825 = vmatpush1.msra.mxu0 0.0
      %826 = vmatprep.subr.mxu0 0.0
      %827 = vmatpush1.msra.mxu0 0.0
      %828 = vmatprep.subr.mxu0 0.0
      %829 = vmatpush1.msra.mxu0 0.0
      %830 = vmatprep.subr.mxu0 0.0
      %831 = vmatpush1.msra.mxu0 0.0
      %832 = vmatprep.subr.mxu0 0.0
      %833 = vmatpush1.msra.mxu0 0.0
      %834 = vmatprep.subr.mxu0 0.0
      %835 = vmatpush1.msra.mxu0 0.0
      %836 = vmatprep.mubr.f32.mxu0 0.0
      %837 = vmatmul.mubr.f32.gmra.mrb[0].mxu0 %v770
      %v838 = vpop.f32.mrb[0].mxu0
      %v839 = vadd.f32 0.0, %v838
      %v840 = vpop.f32.mrb[0].mxu0
      %v841 = vadd.f32 0.0, %v840
      %842 = vdwg.mxu0
      %v843 = vadd.f32 %v746, %v839
      %v844 = vadd.f32 %v747, %v841
      %845 = vrot.lane.b32.xlu0 %v748, 113
      %v846 = vpop.permute.xlu0 %845
      %847 = vrot.lane.b32.xlu0 %v749, 113
      %v848 = vpop.permute.xlu0 %847
      %849 = vrot.lane.b32.xlu0 %v750, 113
      %v850 = vpop.permute.xlu0 %849
      %vm851 = vcmask 924672
      %v852 = vsel %vm851, %v846, %v848
      %v853 = vsel %vm851, %v848, %v850
      %v856 = vsel %vm302, %v852, 0.0
      %v857 = vsel %vm303, %v853, 0.0
      %s858 = scalar_lea.vmem %s3, 48
      %v859 = vld [vmem:[%s858] sm:$0xff]
      %v861 = vsel %vm339, %v859, 0
      %863 = vmatprep.subr.mxu0 %v857
      %864 = vmatpush1.msra.mxu0 %v856
      %865 = vmatprep.subr.mxu0 0.0
      %866 = vmatpush1.msra.mxu0 0.0
      %867 = vmatprep.subr.mxu0 0.0
      %868 = vmatpush1.msra.mxu0 0.0
      %869 = vmatprep.subr.mxu0 0.0
      %870 = vmatpush1.msra.mxu0 0.0
      %871 = vmatprep.subr.mxu0 0.0
      %872 = vmatpush1.msra.mxu0 0.0
      %873 = vmatprep.subr.mxu0 0.0
      %874 = vmatpush1.msra.mxu0 0.0
      %875 = vmatprep.subr.mxu0 0.0
      %876 = vmatpush1.msra.mxu0 0.0
      %877 = vmatprep.subr.mxu0 0.0
      %878 = vmatpush1.msra.mxu0 0.0
      %879 = vmatprep.subr.mxu0 0.0
      %880 = vmatpush1.msra.mxu0 0.0
      %881 = vmatprep.subr.mxu0 0.0
      %882 = vmatpush1.msra.mxu0 0.0
      %883 = vmatprep.subr.mxu0 0.0
      %884 = vmatpush1.msra.mxu0 0.0
      %885 = vmatprep.subr.mxu0 0.0
      %886 = vmatpush1.msra.mxu0 0.0
      %887 = vmatprep.subr.mxu0 0.0
      %888 = vmatpush1.msra.mxu0 0.0
      %889 = vmatprep.subr.mxu0 0.0
      %890 = vmatpush1.msra.mxu0 0.0
      %891 = vmatprep.subr.mxu0 0.0
      %892 = vmatpush1.msra.mxu0 0.0
      %893 = vmatprep.subr.mxu0 0.0
      %894 = vmatpush1.msra.mxu0 0.0
      %895 = vmatprep.subr.mxu0 0.0
      %896 = vmatpush1.msra.mxu0 0.0
      %897 = vmatprep.subr.mxu0 0.0
      %898 = vmatpush1.msra.mxu0 0.0
      %899 = vmatprep.subr.mxu0 0.0
      %900 = vmatpush1.msra.mxu0 0.0
      %901 = vmatprep.subr.mxu0 0.0
      %902 = vmatpush1.msra.mxu0 0.0
      %903 = vmatprep.subr.mxu0 0.0
      %904 = vmatpush1.msra.mxu0 0.0
      %905 = vmatprep.subr.mxu0 0.0
      %906 = vmatpush1.msra.mxu0 0.0
      %907 = vmatprep.subr.mxu0 0.0
      %908 = vmatpush1.msra.mxu0 0.0
      %909 = vmatprep.subr.mxu0 0.0
      %910 = vmatpush1.msra.mxu0 0.0
      %911 = vmatprep.subr.mxu0 0.0
      %912 = vmatpush1.msra.mxu0 0.0
      %913 = vmatprep.subr.mxu0 0.0
      %914 = vmatpush1.msra.mxu0 0.0
      %915 = vmatprep.subr.mxu0 0.0
      %916 = vmatpush1.msra.mxu0 0.0
      %917 = vmatprep.subr.mxu0 0.0
      %918 = vmatpush1.msra.mxu0 0.0
      %919 = vmatprep.subr.mxu0 0.0
      %920 = vmatpush1.msra.mxu0 0.0
      %921 = vmatprep.subr.mxu0 0.0
      %922 = vmatpush1.msra.mxu0 0.0
      %923 = vmatprep.subr.mxu0 0.0
      %924 = vmatpush1.msra.mxu0 0.0
      %925 = vmatprep.subr.mxu0 0.0
      %926 = vmatpush1.msra.mxu0 0.0
      %927 = vmatprep.mubr.f32.mxu0 0.0
      %928 = vmatmul.mubr.f32.gmra.mrb[0].mxu0 %v861
      %v929 = vpop.f32.mrb[0].mxu0
      %v930 = vadd.f32 0.0, %v929
      %v931 = vpop.f32.mrb[0].mxu0
      %v932 = vadd.f32 0.0, %v931
      %933 = vdwg.mxu0
      %v934 = vadd.f32 %v843, %v930
      %v935 = vadd.f32 %v844, %v932
      %s936 = scalar_lea.vmem %s3, 56
      %v937 = vld [vmem:[%s936] sm:$0xff]
      %938 = vrot.lane.b32.xlu0 %v748, 112
      %v939 = vpop.permute.xlu0 %938
      %940 = vrot.lane.b32.xlu0 %v749, 112
      %v941 = vpop.permute.xlu0 %940
      %942 = vrot.lane.b32.xlu0 %v750, 112
      %v943 = vpop.permute.xlu0 %942
      %vm944 = vcmask 916480
      %v945 = vsel %vm944, %v939, %v941
      %v946 = vsel %vm944, %v941, %v943
      %v950 = vsel %vm339, %v937, 0
      %952 = vmatprep.subr.mxu0 %v946
      %953 = vmatpush1.msra.mxu0 %v945
      %954 = vmatprep.subr.mxu0 0.0
      %955 = vmatpush1.msra.mxu0 0.0
      %956 = vmatprep.subr.mxu0 0.0
      %957 = vmatpush1.msra.mxu0 0.0
      %958 = vmatprep.subr.mxu0 0.0
      %959 = vmatpush1.msra.mxu0 0.0
      %960 = vmatprep.subr.mxu0 0.0
      %961 = vmatpush1.msra.mxu0 0.0
      %962 = vmatprep.subr.mxu0 0.0
      %963 = vmatpush1.msra.mxu0 0.0
      %964 = vmatprep.subr.mxu0 0.0
      %965 = vmatpush1.msra.mxu0 0.0
      %966 = vmatprep.subr.mxu0 0.0
      %967 = vmatpush1.msra.mxu0 0.0
      %968 = vmatprep.subr.mxu0 0.0
      %969 = vmatpush1.msra.mxu0 0.0
      %970 = vmatprep.subr.mxu0 0.0
      %971 = vmatpush1.msra.mxu0 0.0
      %972 = vmatprep.subr.mxu0 0.0
      %973 = vmatpush1.msra.mxu0 0.0
      %974 = vmatprep.subr.mxu0 0.0
      %975 = vmatpush1.msra.mxu0 0.0
      %976 = vmatprep.subr.mxu0 0.0
      %977 = vmatpush1.msra.mxu0 0.0
      %978 = vmatprep.subr.mxu0 0.0
      %979 = vmatpush1.msra.mxu0 0.0
      %980 = vmatprep.subr.mxu0 0.0
      %981 = vmatpush1.msra.mxu0 0.0
      %982 = vmatprep.subr.mxu0 0.0
      %983 = vmatpush1.msra.mxu0 0.0
      %984 = vmatprep.subr.mxu0 0.0
      %985 = vmatpush1.msra.mxu0 0.0
      %986 = vmatprep.subr.mxu0 0.0
      %987 = vmatpush1.msra.mxu0 0.0
      %988 = vmatprep.subr.mxu0 0.0
      %989 = vmatpush1.msra.mxu0 0.0
      %990 = vmatprep.subr.mxu0 0.0
      %991 = vmatpush1.msra.mxu0 0.0
      %992 = vmatprep.subr.mxu0 0.0
      %993 = vmatpush1.msra.mxu0 0.0
      %994 = vmatprep.subr.mxu0 0.0
      %995 = vmatpush1.msra.mxu0 0.0
      %996 = vmatprep.subr.mxu0 0.0
      %997 = vmatpush1.msra.mxu0 0.0
      %998 = vmatprep.subr.mxu0 0.0
      %999 = vmatpush1.msra.mxu0 0.0
      %1000 = vmatprep.subr.mxu0 0.0
      %1001 = vmatpush1.msra.mxu0 0.0
      %1002 = vmatprep.subr.mxu0 0.0
      %1003 = vmatpush1.msra.mxu0 0.0
      %1004 = vmatprep.subr.mxu0 0.0
      %1005 = vmatpush1.msra.mxu0 0.0
      %1006 = vmatprep.subr.mxu0 0.0
      %1007 = vmatpush1.msra.mxu0 0.0
      %1008 = vmatprep.subr.mxu0 0.0
      %1009 = vmatpush1.msra.mxu0 0.0
      %1010 = vmatprep.subr.mxu0 0.0
      %1011 = vmatpush1.msra.mxu0 0.0
      %1012 = vmatprep.subr.mxu0 0.0
      %1013 = vmatpush1.msra.mxu0 0.0
      %1014 = vmatprep.subr.mxu0 0.0
      %1015 = vmatpush1.msra.mxu0 0.0
      %1016 = vmatprep.mubr.f32.mxu0 0.0
      %1017 = vmatmul.mubr.f32.gmra.mrb[0].mxu0 %v950
      %v1018 = vpop.f32.mrb[0].mxu0
      %v1019 = vadd.f32 0.0, %v1018
      %v1020 = vpop.f32.mrb[0].mxu0
      %v1021 = vadd.f32 0.0, %v1020
      %1022 = vdwg.mxu0
      %v1023 = vadd.f32 %v934, %v1019
      %v1024 = vadd.f32 %v935, %v1021
      %1025 = vrot.lane.b32.xlu0 %v748, 111
      %v1026 = vpop.permute.xlu0 %1025
      %1027 = vrot.lane.b32.xlu0 %v749, 111
      %v1028 = vpop.permute.xlu0 %1027
      %1029 = vrot.lane.b32.xlu0 %v750, 111
      %v1030 = vpop.permute.xlu0 %1029
      %vm1031 = vcmask 908288
      %v1032 = vsel %vm1031, %v1026, %v1028
      %v1033 = vsel %vm1031, %v1028, %v1030
      %v1036 = vsel %vm304, %v1032, 0.0
      %v1037 = vsel %vm305, %v1033, 0.0
      %s1038 = scalar_lea.vmem %s3, 64
      %v1039 = vld [vmem:[%s1038] sm:$0xff]
      %v1041 = vsel %vm339, %v1039, 0
      %1043 = vmatprep.subr.mxu0 %v1037
      %1044 = vmatpush1.msra.mxu0 %v1036
      %1045 = vmatprep.subr.mxu0 0.0
      %1046 = vmatpush1.msra.mxu0 0.0
      %1047 = vmatprep.subr.mxu0 0.0
      %1048 = vmatpush1.msra.mxu0 0.0
      %1049 = vmatprep.subr.mxu0 0.0
      %1050 = vmatpush1.msra.mxu0 0.0
      %1051 = vmatprep.subr.mxu0 0.0
      %1052 = vmatpush1.msra.mxu0 0.0
      %1053 = vmatprep.subr.mxu0 0.0
      %1054 = vmatpush1.msra.mxu0 0.0
      %1055 = vmatprep.subr.mxu0 0.0
      %1056 = vmatpush1.msra.mxu0 0.0
      %1057 = vmatprep.subr.mxu0 0.0
      %1058 = vmatpush1.msra.mxu0 0.0
      %1059 = vmatprep.subr.mxu0 0.0
      %1060 = vmatpush1.msra.mxu0 0.0
      %1061 = vmatprep.subr.mxu0 0.0
      %1062 = vmatpush1.msra.mxu0 0.0
      %1063 = vmatprep.subr.mxu0 0.0
      %1064 = vmatpush1.msra.mxu0 0.0
      %1065 = vmatprep.subr.mxu0 0.0
      %1066 = vmatpush1.msra.mxu0 0.0
      %1067 = vmatprep.subr.mxu0 0.0
      %1068 = vmatpush1.msra.mxu0 0.0
      %1069 = vmatprep.subr.mxu0 0.0
      %1070 = vmatpush1.msra.mxu0 0.0
      %1071 = vmatprep.subr.mxu0 0.0
      %1072 = vmatpush1.msra.mxu0 0.0
      %1073 = vmatprep.subr.mxu0 0.0
      %1074 = vmatpush1.msra.mxu0 0.0
      %1075 = vmatprep.subr.mxu0 0.0
      %1076 = vmatpush1.msra.mxu0 0.0
      %1077 = vmatprep.subr.mxu0 0.0
      %1078 = vmatpush1.msra.mxu0 0.0
      %1079 = vmatprep.subr.mxu0 0.0
      %1080 = vmatpush1.msra.mxu0 0.0
      %1081 = vmatprep.subr.mxu0 0.0
      %1082 = vmatpush1.msra.mxu0 0.0
      %1083 = vmatprep.subr.mxu0 0.0
      %1084 = vmatpush1.msra.mxu0 0.0
      %1085 = vmatprep.subr.mxu0 0.0
      %1086 = vmatpush1.msra.mxu0 0.0
      %1087 = vmatprep.subr.mxu0 0.0
      %1088 = vmatpush1.msra.mxu0 0.0
      %1089 = vmatprep.subr.mxu0 0.0
      %1090 = vmatpush1.msra.mxu0 0.0
      %1091 = vmatprep.subr.mxu0 0.0
      %1092 = vmatpush1.msra.mxu0 0.0
      %1093 = vmatprep.subr.mxu0 0.0
      %1094 = vmatpush1.msra.mxu0 0.0
      %1095 = vmatprep.subr.mxu0 0.0
      %1096 = vmatpush1.msra.mxu0 0.0
      %1097 = vmatprep.subr.mxu0 0.0
      %1098 = vmatpush1.msra.mxu0 0.0
      %1099 = vmatprep.subr.mxu0 0.0
      %1100 = vmatpush1.msra.mxu0 0.0
      %1101 = vmatprep.subr.mxu0 0.0
      %1102 = vmatpush1.msra.mxu0 0.0
      %1103 = vmatprep.subr.mxu0 0.0
      %1104 = vmatpush1.msra.mxu0 0.0
      %1105 = vmatprep.subr.mxu0 0.0
      %1106 = vmatpush1.msra.mxu0 0.0
      %1107 = vmatprep.mubr.f32.mxu0 0.0
      %1108 = vmatmul.mubr.f32.gmra.mrb[0].mxu0 %v1041
      %v1109 = vpop.f32.mrb[0].mxu0
      %v1110 = vadd.f32 0.0, %v1109
      %v1111 = vpop.f32.mrb[0].mxu0
      %v1112 = vadd.f32 0.0, %v1111
      %1113 = vdwg.mxu0
      %v1114 = vadd.f32 %v1023, %v1110
      %v1115 = vadd.f32 %v1024, %v1112
      %1116 = vst [vmem:[%s246] sm:$0xff] %v1114
      %1117 = vst [vmem:[%s246 + $0x8] sm:$0xff] %v1115
      %v1118 = vadd.f32 %v1114, %v1115
      %1119 = vadd.xlane.f32.xlu0 %v1118
      %v1120 = vpop.xlane.xlu0 %1119
      %v1121 = vmul.f32 %v1114, %v1114
      %v1122 = vmul.f32 %v1115, %v1115
      %v1123 = vadd.f32 %v1121, %v1122
      %1124 = vadd.xlane.f32.xlu0 %v1123
      %v1125 = vpop.xlane.xlu0 %1124
      // Predicated region
      $region41: #{basic_block_pallas.4} parent=35 // pred_check
        %p1126 = pneg %p247
      $region42: #{basic_block_pallas.4} parent=35 // pred_check_branch
        %1128 = sbr.rel (%p1126) target = $region44
      $region43: #{basic_block_pallas.4} parent=35 // pred_region
        %1129 = vst.msk [vmem:[%s5] sm:$0xff] %vm585, %v1120
        %1130 = vst.msk [vmem:[%s6] sm:$0xff] %vm585, %v1125
      $region44: #{basic_block_pallas.4} parent=35 // pred_fallthru
        _
      %p1131 = scmp.gt.s32.totalorder %s18, 0
      // Predicated region
      $region45: #{basic_block_pallas.4} parent=35 // pred_check
        %p1132 = pneg %p1131
      $region46: #{basic_block_pallas.4} parent=35 // pred_check_branch
        %1134 = sbr.rel (%p1132) target = $region48
      $region47: #{basic_block_pallas.4} parent=35 // pred_region
        %v1135 = vld [vmem:[%s5] sm:$0xff]
        %v1136 = vadd.f32 %v1135, %v1120
        %1137 = vst.msk [vmem:[%s5] sm:$0xff] %vm585, %v1136
        %v1138 = vld [vmem:[%s6] sm:$0xff]
        %v1139 = vadd.f32 %v1138, %v1125
        %1140 = vst.msk [vmem:[%s6] sm:$0xff] %vm585, %v1139
      $region48: #{basic_block_pallas.4} parent=35 // pred_fallthru
        _
      %p1141 = scmp.lt.s32.totalorder %s18, 1
      %s1142 = scalar_select %p1141, %s18, 1
      %s1143 = smul.addr %s1142, 2
      %s1144 = smul.addr %s1143, 8
      %s1145 = scalar_lea.vmem %s4, %s1144
      // Predicated region
      $region49: #{basic_block_pallas.4} parent=35 // pred_check
        %p1146 = pneg %p125
      $region50: #{basic_block_pallas.4} parent=35 // pred_check_branch
        %1148 = sbr.rel (%p1146) target = $region52
      $region51: #{basic_block_pallas.4} parent=35 // pred_region
        _
      $region52: #{basic_block_pallas.4} parent=35 // pred_fallthru
        _
      // Predicated region
      $region53: #{basic_block_pallas.4} parent=35 // pred_check
        %p1149 = pneg %p146
      $region54: #{basic_block_pallas.4} parent=35 // pred_check_branch
        %1151 = sbr.rel (%p1149) target = $region56
      $region55: #{basic_block_pallas.4} parent=35 // pred_region
        _
      $region56: #{basic_block_pallas.4} parent=35 // pred_fallthru
        _
      // Predicated region
      $region57: #{basic_block_pallas.4} parent=35 // pred_check
        %p1152 = pneg %p167
      $region58: #{basic_block_pallas.4} parent=35 // pred_check_branch
        %1154 = sbr.rel (%p1152) target = $region60
      $region59: #{basic_block_pallas.4} parent=35 // pred_region
        _
      $region60: #{basic_block_pallas.4} parent=35 // pred_fallthru
        _
      // Predicated region
      $region61: #{basic_block_pallas.4} parent=35 // pred_check
        %p1155 = pneg %p146
      $region62: #{basic_block_pallas.4} parent=35 // pred_check_branch
        %1157 = sbr.rel (%p1155) target = $region64
      $region63: #{basic_block_pallas.4} parent=35 // pred_region
        _
      $region64: #{basic_block_pallas.4} parent=35 // pred_fallthru
        _
      // Predicated region
      $region65: #{basic_block_pallas.4} parent=35 // pred_check
        %p1158 = pneg %p167
      $region66: #{basic_block_pallas.4} parent=35 // pred_check_branch
        %1160 = sbr.rel (%p1158) target = $region68
      $region67: #{basic_block_pallas.4} parent=35 // pred_region
        _
      $region68: #{basic_block_pallas.4} parent=35 // pred_fallthru
        _
    $region36: #{basic_block_pallas.4} parent=5 // pred_fallthru
      _
    %p1161 = scmp.le.s32.totalorder 2, %s13
    // Predicated region
    $region69: #{basic_block_pallas.4} parent=5 // pred_check
      %p1162 = pneg %p1161
    $region70: #{basic_block_pallas.4} parent=5 // pred_check_branch
      %1164 = sbr.rel (%p1162) target = $region72
    $region71: #{basic_block_pallas.4} parent=5 // pred_region
      %s1165 = ssub.s32 %s13, 2
      // Predicated region
      $region73: #{basic_block_pallas.4} parent=71 // pred_check
        %p1166 = pneg %p131
      $region74: #{basic_block_pallas.4} parent=71 // pred_check_branch
        %1168 = sbr.rel (%p1166) target = $region76
      $region75: #{basic_block_pallas.4} parent=71 // pred_region
        %p1169 = scmp.lt.s32.totalorder %s19, 1
        %s1170 = scalar_select %p1169, %s19, 1
        %s1171 = smul.addr %s1170, 2
        %s1172 = smul.addr %s1171, 8
        %s1173 = scalar_lea.vmem %s4, %s1172
      $region76: #{basic_block_pallas.4} parent=71 // pred_fallthru
        _
    $region72: #{basic_block_pallas.4} parent=5 // pred_fallthru
      _
  $region6: #{basic_block_pallas.4} parent=0 // loop_footer
    %s17 = sadd.s32 1, %s13
  $region7: #{basic_block_pallas.4} parent=0 // loop_footer_branch
    %12 = sbr.rel target = $region3
  $region8: #{basic_block_pallas.4} parent=0 // loop_exit
    _

</llo_original>
